<compile_context>
chip_gen: v7x
topology: tpu7x:2x2x1
jax: 0.10.0
libtpu: 0.0.40
codegen_flags: <defaults>
</compile_context>

<pallas_src>
import functools

import jax
import jax.numpy as jnp
from jax.experimental import pallas as pl
from jax.experimental.pallas import tpu as pltpu


_CP = pltpu.CompilerParams(
    dimension_semantics=("parallel",),
    vmem_limit_bytes=32 * 1024 * 1024,
)


# ------------------------------ Pallas kernels ------------------------------ #


def _build_patches(zfull, patch_ref, *, Wp, Lpad, margin, cin):
    """Scatter the nine 3x3-tap slices of a halo'd (C, Mtot) image into the
    (9*C, Lpad) patch buffer so the whole conv is a single K=9*C matmul."""
    base = margin - Wp - 1
    for k in range(9):
        dh, dw = divmod(k, 3)
        off = base + dh * Wp + dw
        patch_ref[pl.ds(k * cin, cin), :] = zfull[:, off:off + Lpad]


def _conv_bn_relu_stats_kernel(x_ref, a_ref, s_ref, w_ref, b_ref, m_ref,
                               y_ref, sum_ref, ssq_ref, patch,
                               *, Wp, Lpad, margin, nb, cin_p, apply_affine):
    """(prev-layer BN affine) -> 3x3 conv -> bias -> ReLU -> per-image stats."""
    mask = m_ref[...]                                     # (1, Lpad)
    halo = jnp.zeros((cin_p, margin), jnp.float32)

    for b in range(nb):
        if apply_affine:
            # fold previous BatchNorm as a per-channel affine; mask re-zeroes
            # the padded border / lane tail so halo'd taps see true zeros.
            z = (x_ref[b] * a_ref[...] + s_ref[...]) * mask
        else:
            z = x_ref[b]            # first layer: input already zero-padded

        zfull = jnp.concatenate([halo, z, halo], axis=1)  # (cin_p, Mtot)
        _build_patches(zfull, patch, Wp=Wp, Lpad=Lpad, margin=margin,
                       cin=cin_p)

        acc = jnp.dot(w_ref[...], patch[...],
                      preferred_element_type=jnp.float32)  # (cout, Lpad)
        y = jnp.maximum(acc + b_ref[...], 0.0) * mask

        y_ref[b] = y
        # partial batch-norm statistics (masked rows/tail contribute zero)
        sum_ref[b] = jnp.sum(y, axis=1, keepdims=True)
        ssq_ref[b] = jnp.sum(y * y, axis=1, keepdims=True)


def _decoder_kernel(x_ref, a_ref, s_ref, w1_ref, b1_ref, w2_ref, b2_ref,
                    m_ref, wl_ref, hl_ref, out_ref, pool_ref, patch,
                    *, Wp, Lpad, margin, nb, c):
    """BN2 affine -> fused MaxPool/MaxUnpool -> ConvT+ReLU -> ConvT+ReLU."""
    mask = m_ref[...]                # (1, Lpad): 1 on interior pixels
    wl = wl_ref[...]                 # (1, Lpad): 1 where pixel's w is even
    hl = hl_ref[...]                 # (1, Lpad): 1 where pixel's h is even
    wlc, hlc = 1.0 - wl, 1.0 - hl
    halo = jnp.zeros((c, margin), jnp.float32)

    def conv(z, w_r, b_r):
        zfull = jnp.concatenate([halo, z, halo], axis=1)
        _build_patches(zfull, patch, Wp=Wp, Lpad=Lpad, margin=margin, cin=c)
        acc = jnp.dot(w_r[...], patch[...], preferred_element_type=jnp.float32)
        return jnp.maximum(acc + b_r[...], 0.0)

    for b in range(nb):
        # BN2 folded as per-channel affine; border/tail forced back to zero.
        z0 = (x_ref[b] * a_ref[...] + s_ref[...]) * mask
        zfull = jnp.concatenate([halo, z0, halo], axis=1)

        def S(d):  # value at flat offset d (inside the zero halo)
            return zfull[:, margin + d: margin + d + Lpad]

        # 2x2 window partners via parity blends (weights are exactly 0/1).
        horiz = wl * S(1) + wlc * S(-1)
        vert = hl * S(Wp) + hlc * S(-Wp)
        diag = (hl * (wl * S(Wp + 1) + wlc * S(Wp - 1))
                + hlc * (wl * S(-(Wp - 1)) + wlc * S(-(Wp + 1))))
        wmax = jnp.maximum(jnp.maximum(z0, horiz), jnp.maximum(vert, diag))

        def eq(v):
            return jnp.where(v == wmax, 1.0, 0.0)

        # Number of earlier (flat-index order) window members that also hit
        # the max: only the first max keeps its value after unpool (matches
        # PyTorch MaxPool2d(return_indices=True) + MaxUnpool2d).
        earlier = (hl * wlc * eq(S(-1))
                   + hlc * wl * (eq(S(-Wp)) + eq(S(-(Wp - 1))))
                   + hlc * wlc * (eq(S(-(Wp + 1))) + eq(S(-Wp)) + eq(S(-1))))
        keep = jnp.logical_and(z0 == wmax, earlier < 0.5)
        unpooled = jnp.where(keep, z0, 0.0)

        pool_ref[b] = wmax * mask            # window max at every pixel

        # deconv1 (ConvTranspose == conv with flipped kernel) + ReLU
        y3 = conv(unpooled, w1_ref, b1_ref) * mask
        # deconv2 + ReLU (border/tail discarded by the wrapper slice)
        out_ref[b] = conv(y3, w2_ref, b2_ref)


# --------------------------- pallas_call wrappers --------------------------- #


def _conv_layer(x_flat, a, s, w, bias, mask, *, Wp, Lpad, margin, nb,
                apply_affine):
    N, cin_p, _ = x_flat.shape
    cout = w.shape[0]
    Mtot = Lpad + 2 * margin
    kern = functools.partial(_conv_bn_relu_stats_kernel, Wp=Wp, Lpad=Lpad,
                             margin=margin, nb=nb, cin_p=cin_p,
                             apply_affine=apply_affine)
    flops = 2 * N * cout * 9 * cin_p * Lpad
    bytes_accessed = 4 * N * (cin_p + cout) * Lpad + 4 * cout * 9 * cin_p
    del Mtot  # (buffer sizes are derived inside the kernel from Lpad/margin)
    return pl.pallas_call(
        kern,
        out_shape=(jax.ShapeDtypeStruct((N, cout, Lpad), jnp.float32),
                   jax.ShapeDtypeStruct((N, cout, 1), jnp.float32),
                   jax.ShapeDtypeStruct((N, cout, 1), jnp.float32)),
        grid=(N // nb,),
        in_specs=[pl.BlockSpec((nb, cin_p, Lpad), lambda n: (n, 0, 0)),
                  pl.BlockSpec((cin_p, 1), lambda n: (0, 0)),
                  pl.BlockSpec((cin_p, 1), lambda n: (0, 0)),
                  pl.BlockSpec((cout, 9 * cin_p), lambda n: (0, 0)),
                  pl.BlockSpec((cout, 1), lambda n: (0, 0)),
                  pl.BlockSpec((1, Lpad), lambda n: (0, 0))],
        out_specs=(pl.BlockSpec((nb, cout, Lpad), lambda n: (n, 0, 0)),
                   pl.BlockSpec((nb, cout, 1), lambda n: (n, 0, 0)),
                   pl.BlockSpec((nb, cout, 1), lambda n: (n, 0, 0))),
        scratch_shapes=[pltpu.VMEM((9 * cin_p, Lpad), jnp.float32)],
        compiler_params=_CP,
        cost_estimate=pl.CostEstimate(flops=flops, transcendentals=0,
                                      bytes_accessed=bytes_accessed),
    )(x_flat, a, s, w, bias, mask)


def _decoder(y2, a, s, w1, b1, w2, b2, mask, wlow, hlow,
             *, Wp, Lpad, margin, nb):
    N, c, _ = y2.shape
    cout_p = w2.shape[0]
    kern = functools.partial(_decoder_kernel, Wp=Wp, Lpad=Lpad, margin=margin,
                             nb=nb, c=c)
    flops = 2 * N * 9 * c * (c + cout_p) * Lpad
    bytes_accessed = 4 * N * (2 * c + cout_p) * Lpad
    return pl.pallas_call(
        kern,
        out_shape=(jax.ShapeDtypeStruct((N, cout_p, Lpad), jnp.float32),
                   jax.ShapeDtypeStruct((N, c, Lpad), jnp.float32)),
        grid=(N // nb,),
        in_specs=[pl.BlockSpec((nb, c, Lpad), lambda n: (n, 0, 0)),
                  pl.BlockSpec((c, 1), lambda n: (0, 0)),
                  pl.BlockSpec((c, 1), lambda n: (0, 0)),
                  pl.BlockSpec((c, 9 * c), lambda n: (0, 0)),
                  pl.BlockSpec((c, 1), lambda n: (0, 0)),
                  pl.BlockSpec((cout_p, 9 * c), lambda n: (0, 0)),
                  pl.BlockSpec((cout_p, 1), lambda n: (0, 0)),
                  pl.BlockSpec((1, Lpad), lambda n: (0, 0)),
                  pl.BlockSpec((1, Lpad), lambda n: (0, 0)),
                  pl.BlockSpec((1, Lpad), lambda n: (0, 0))],
        out_specs=(pl.BlockSpec((nb, cout_p, Lpad), lambda n: (n, 0, 0)),
                   pl.BlockSpec((nb, c, Lpad), lambda n: (n, 0, 0))),
        scratch_shapes=[pltpu.VMEM((9 * c, Lpad), jnp.float32)],
        compiler_params=_CP,
        cost_estimate=pl.CostEstimate(flops=flops, transcendentals=0,
                                      bytes_accessed=bytes_accessed),
    )(y2, a, s, w1, b1, w2, b2, mask, wlow, hlow)


# ------------------------------- JAX glue ----------------------------------- #


def _conv_w(w, cin_pad):
    # PyTorch Conv2d weight [Cout, Cin, kh, kw] -> (Cout, 9*cin_pad), tap-major.
    cout, cin = w.shape[0], w.shape[1]
    wt = jnp.transpose(w, (0, 2, 3, 1))                     # (Cout, kh, kw, Cin)
    wt = jnp.pad(wt, ((0, 0), (0, 0), (0, 0), (0, cin_pad - cin)))
    return wt.reshape(cout, 9 * cin_pad).astype(jnp.float32)


def _convT_w(w, cout_pad):
    # ConvTranspose2d weight [Cin, Cout, kh, kw] (stride=1, pad=1) == conv with
    # spatially flipped kernel, channels swapped, same padding.
    cin, cout = w.shape[0], w.shape[1]
    wt = jnp.transpose(w[:, :, ::-1, ::-1], (1, 2, 3, 0))   # (Cout, kh, kw, Cin)
    wt = wt.reshape(cout, 9 * cin)
    return jnp.pad(wt, ((0, cout_pad - cout), (0, 0))).astype(jnp.float32)


def _bn_affine(sm, sq, gamma, beta, count, eps=1e-5):
    # Training-mode BN: batch mean + biased variance from per-image partials.
    total = jnp.sum(sm, axis=0)[:, 0]
    total_sq = jnp.sum(sq, axis=0)[:, 0]
    mean = total / count
    var = jnp.maximum(total_sq / count - mean * mean, 0.0)
    a = gamma * jax.lax.rsqrt(var + eps)
    s = beta - mean * a
    return a.reshape(-1, 1), s.reshape(-1, 1)


def _pick_nb(n, cap=4):
    # Largest divisor of n (<= cap) that keeps the grid extent >= 2 so v7x
    # megacore still gets both TensorCores busy.
    nb = 1
    for d in range(1, min(cap, n) + 1):
        if n % d == 0 and n // d >= 2:
            nb = d
    return nb


def init_params(key):
    ks = jax.random.split(key, 6)
    s = 0.1
    return {
        "conv1_w": s * jax.random.normal(ks[0], (16, 3, 3, 3), jnp.float32),
        "conv1_b": s * jax.random.normal(ks[1], (16,), jnp.float32),
        "conv2_w": s * jax.random.normal(ks[2], (16, 16, 3, 3), jnp.float32),
        "conv2_b": s * jax.random.normal(ks[3], (16,), jnp.float32),
        "bn1_g": jnp.ones((16,), jnp.float32),
        "bn1_b": jnp.zeros((16,), jnp.float32),
        "bn2_g": jnp.ones((16,), jnp.float32),
        "bn2_b": jnp.zeros((16,), jnp.float32),
        # ConvTranspose2d weights are [Cin, Cout, kh, kw]
        "deconv1_w": s * jax.random.normal(ks[4], (16, 16, 3, 3), jnp.float32),
        "deconv1_b": jnp.zeros((16,), jnp.float32),
        "deconv2_w": s * jax.random.normal(ks[5], (16, 3, 3, 3), jnp.float32),
        "deconv2_b": jnp.zeros((3,), jnp.float32),
    }


def simple_conv_ae_forward(x_nchw, params):
    N, Cin, H, W = x_nchw.shape
    assert H % 2 == 0 and W % 2 == 0, "2x2 pooling needs even spatial dims"
    Hp, Wp = H + 2, W + 2
    Lp = Hp * Wp                                   # zero-padded frame, flat
    Lpad = ((Lp + 127) // 128) * 128               # lane-dense spatial length
    margin = ((Wp + 1 + 127) // 128) * 128         # aligned in-register halo
    Cin_p = 8                                      # 3 input ch -> 1 sublane tile
    C = 16
    Cout_p = 8                                     # 3 output ch -> 1 sublane tile

    # Layout plumbing: NCHW -> channels-on-sublanes, padded-flat-spatial-on-lanes.
    x = x_nchw.astype(jnp.float32)
    xp = jnp.pad(x, ((0, 0), (0, Cin_p - Cin), (1, 1), (1, 1)))  # (N,8,Hp,Wp)
    x_flat = jnp.pad(xp.reshape(N, Cin_p, Lp),
                     ((0, 0), (0, 0), (0, Lpad - Lp)))

    # Static per-pixel row vectors shared by all kernels (constant-folded).
    q = jnp.arange(Lp)
    h_i, w_i = q // Wp, q % Wp
    interior = (h_i >= 1) & (h_i <= H) & (w_i >= 1) & (w_i <= W)

    def _rowvec(v):
        return jnp.pad(v.astype(jnp.float32), (0, Lpad - Lp)).reshape(1, Lpad)

    mask = _rowvec(interior)
    wlow = _rowvec(((w_i - 1) % 2) == 0)
    hlow = _rowvec(((h_i - 1) % 2) == 0)

    nb = _pick_nb(N)
    dims = dict(Wp=Wp, Lpad=Lpad, margin=margin, nb=nb)
    count = jnp.float32(N * H * W)

    w1 = _conv_w(params["conv1_w"], Cin_p)          # (16, 72)
    w2 = _conv_w(params["conv2_w"], C)              # (16, 144)
    wd1 = _convT_w(params["deconv1_w"], C)          # (16, 144)
    wd2 = _convT_w(params["deconv2_w"], Cout_p)     # (8, 144)

    b1 = params["conv1_b"].reshape(C, 1)
    b2 = params["conv2_b"].reshape(C, 1)
    bd1 = params["deconv1_b"].reshape(C, 1)
    bd2 = jnp.pad(params["deconv2_b"], (0, Cout_p - Cin)).reshape(Cout_p, 1)

    ident_a = jnp.ones((Cin_p, 1), jnp.float32)
    ident_s = jnp.zeros((Cin_p, 1), jnp.float32)

    # encoder: Conv -> ReLU (+BN stats); BN folded as affine into next kernel.
    y1, sm1, sq1 = _conv_layer(x_flat, ident_a, ident_s, w1, b1, mask,
                               apply_affine=False, **dims)
    a1, s1 = _bn_affine(sm1, sq1, params["bn1_g"], params["bn1_b"], count)

    y2, sm2, sq2 = _conv_layer(y1, a1, s1, w2, b2, mask,
                               apply_affine=True, **dims)
    a2, s2 = _bn_affine(sm2, sq2, params["bn2_g"], params["bn2_b"], count)

    # decoder: BN2 affine + MaxPool/MaxUnpool + ConvT+ReLU + ConvT+ReLU, fused.
    out_flat, pool_flat = _decoder(y2, a2, s2, wd1, bd1, wd2, bd2,
                                   mask, wlow, hlow, **dims)

    out = out_flat[:, :Cin, :Lp].reshape(N, Cin, Hp, Wp)[:, :, 1:H + 1, 1:W + 1]
    encoded = pool_flat[:, :, :Lp].reshape(N, C, Hp, Wp)[
        :, :, 1:H + 1:2, 1:W + 1:2]
    return out, encoded


if __name__ == "__main__":
    key = jax.random.PRNGKey(0)
    kx, kp = jax.random.split(key)
    x = jax.random.normal(kx, (2, 3, 16, 16), jnp.float32)  # NCHW like PyTorch
    params = init_params(kp)

    out, encoded = jax.jit(simple_conv_ae_forward)(x, params)
    jax.block_until_ready((out, encoded))

    assert out.shape == (2, 3, 16, 16), out.shape
    assert encoded.shape == (2, 16, 8, 8), encoded.shape
    assert bool(jnp.all(jnp.isfinite(out))) and bool(jnp.all(jnp.isfinite(encoded)))
    print("KERNEL_OK")
</pallas_src>

<mosaic_0001>
module attributes {stable_mosaic.version = 11 : i64} {
  func.func @_conv_bn_relu_stats_kernel(%arg0: i32, %arg1: memref<1x8x384xf32, #tpu.memory_space<vmem>>, %arg2: memref<8x1xf32, #tpu.memory_space<vmem>>, %arg3: memref<8x1xf32, #tpu.memory_space<vmem>>, %arg4: memref<16x72xf32, #tpu.memory_space<vmem>>, %arg5: memref<16x1xf32, #tpu.memory_space<vmem>>, %arg6: memref<1x384xf32, #tpu.memory_space<vmem>>, %arg7: memref<1x16x384xf32, #tpu.memory_space<vmem>>, %arg8: memref<1x16x1xf32, #tpu.memory_space<vmem>>, %arg9: memref<1x16x1xf32, #tpu.memory_space<vmem>>, %arg10: memref<72x384xf32, #tpu.memory_space<vmem>>) attributes {dimension_semantics = [#tpu.dimension_semantics<parallel>], iteration_bounds = array<i64: 2>, scalar_prefetch = 0 : i64, scratch_operands = 1 : i64, tpu.core_type = #tpu.core_type<tc>, window_params = [{transform_indices = @transform_0, window_bounds = array<i64: 1, 8, 384>}, {pipeline_mode = #tpu.pipeline_mode<synchronous>, transform_indices = @transform_1, window_bounds = array<i64: 8, 1>}, {pipeline_mode = #tpu.pipeline_mode<synchronous>, transform_indices = @transform_2, window_bounds = array<i64: 8, 1>}, {pipeline_mode = #tpu.pipeline_mode<synchronous>, transform_indices = @transform_3, window_bounds = array<i64: 16, 72>}, {pipeline_mode = #tpu.pipeline_mode<synchronous>, transform_indices = @transform_4, window_bounds = array<i64: 16, 1>}, {pipeline_mode = #tpu.pipeline_mode<synchronous>, transform_indices = @transform_5, window_bounds = array<i64: 1, 384>}, {transform_indices = @transform_6, window_bounds = array<i64: 1, 16, 384>}, {transform_indices = @transform_7, window_bounds = array<i64: 1, 16, 1>}, {transform_indices = @transform_8, window_bounds = array<i64: 1, 16, 1>}]} {
    %c0 = arith.constant 0 : index
    %c0_0 = arith.constant 0 : index
    %0 = vector.load %arg6[%c0, %c0_0] : memref<1x384xf32, #tpu.memory_space<vmem>>, vector<1x384xf32>
    %cst = arith.constant 0.000000e+00 : f32
    %1 = vector.broadcast %cst : f32 to vector<8x128xf32>
    %c0_1 = arith.constant 0 : index
    %c0_2 = arith.constant 0 : index
    %c0_3 = arith.constant 0 : index
    %2 = vector.load %arg1[%c0_1, %c0_2, %c0_3] : memref<1x8x384xf32, #tpu.memory_space<vmem>>, vector<1x8x384xf32>
    %3 = vector.shape_cast %2 : vector<1x8x384xf32> to vector<8x384xf32>
    %4 = tpu.concatenate %1, %3, %1 in 1 : vector<8x128xf32>, vector<8x384xf32>, vector<8x128xf32> -> vector<8x640xf32>
    %5 = vector.extract_strided_slice %4 {offsets = [0, 109], sizes = [8, 384], strides = [1, 1]} : vector<8x640xf32> to vector<8x384xf32>
    %c0_4 = arith.constant 0 : index
    %c0_5 = arith.constant 0 : index
    %6 = vector.load %arg10[%c0_4, %c0_5] : memref<72x384xf32, #tpu.memory_space<vmem>>, vector<8x384xf32>
    tpu.vector_store %arg10[%c0_4, %c0_5], %5 {strides = array<i32>} : memref<72x384xf32, #tpu.memory_space<vmem>>, vector<8x384xf32>,
    %7 = vector.extract_strided_slice %4 {offsets = [0, 110], sizes = [8, 384], strides = [1, 1]} : vector<8x640xf32> to vector<8x384xf32>
    %c8 = arith.constant 8 : index
    %c0_6 = arith.constant 0 : index
    %8 = vector.load %arg10[%c8, %c0_6] : memref<72x384xf32, #tpu.memory_space<vmem>>, vector<8x384xf32>
    tpu.vector_store %arg10[%c8, %c0_6], %7 {strides = array<i32>} : memref<72x384xf32, #tpu.memory_space<vmem>>, vector<8x384xf32>,
    %9 = vector.extract_strided_slice %4 {offsets = [0, 111], sizes = [8, 384], strides = [1, 1]} : vector<8x640xf32> to vector<8x384xf32>
    %c16 = arith.constant 16 : index
    %c0_7 = arith.constant 0 : index
    %10 = vector.load %arg10[%c16, %c0_7] : memref<72x384xf32, #tpu.memory_space<vmem>>, vector<8x384xf32>
    tpu.vector_store %arg10[%c16, %c0_7], %9 {strides = array<i32>} : memref<72x384xf32, #tpu.memory_space<vmem>>, vector<8x384xf32>,
    %11 = vector.extract_strided_slice %4 {offsets = [0, 127], sizes = [8, 384], strides = [1, 1]} : vector<8x640xf32> to vector<8x384xf32>
    %c24 = arith.constant 24 : index
    %c0_8 = arith.constant 0 : index
    %12 = vector.load %arg10[%c24, %c0_8] : memref<72x384xf32, #tpu.memory_space<vmem>>, vector<8x384xf32>
    tpu.vector_store %arg10[%c24, %c0_8], %11 {strides = array<i32>} : memref<72x384xf32, #tpu.memory_space<vmem>>, vector<8x384xf32>,
    %13 = vector.extract_strided_slice %4 {offsets = [0, 128], sizes = [8, 384], strides = [1, 1]} : vector<8x640xf32> to vector<8x384xf32>
    %c32 = arith.constant 32 : index
    %c0_9 = arith.constant 0 : index
    %14 = vector.load %arg10[%c32, %c0_9] : memref<72x384xf32, #tpu.memory_space<vmem>>, vector<8x384xf32>
    tpu.vector_store %arg10[%c32, %c0_9], %13 {strides = array<i32>} : memref<72x384xf32, #tpu.memory_space<vmem>>, vector<8x384xf32>,
    %15 = vector.extract_strided_slice %4 {offsets = [0, 129], sizes = [8, 384], strides = [1, 1]} : vector<8x640xf32> to vector<8x384xf32>
    %c40 = arith.constant 40 : index
    %c0_10 = arith.constant 0 : index
    %16 = vector.load %arg10[%c40, %c0_10] : memref<72x384xf32, #tpu.memory_space<vmem>>, vector<8x384xf32>
    tpu.vector_store %arg10[%c40, %c0_10], %15 {strides = array<i32>} : memref<72x384xf32, #tpu.memory_space<vmem>>, vector<8x384xf32>,
    %17 = vector.extract_strided_slice %4 {offsets = [0, 145], sizes = [8, 384], strides = [1, 1]} : vector<8x640xf32> to vector<8x384xf32>
    %c48 = arith.constant 48 : index
    %c0_11 = arith.constant 0 : index
    %18 = vector.load %arg10[%c48, %c0_11] : memref<72x384xf32, #tpu.memory_space<vmem>>, vector<8x384xf32>
    tpu.vector_store %arg10[%c48, %c0_11], %17 {strides = array<i32>} : memref<72x384xf32, #tpu.memory_space<vmem>>, vector<8x384xf32>,
    %19 = vector.extract_strided_slice %4 {offsets = [0, 146], sizes = [8, 384], strides = [1, 1]} : vector<8x640xf32> to vector<8x384xf32>
    %c56 = arith.constant 56 : index
    %c0_12 = arith.constant 0 : index
    %20 = vector.load %arg10[%c56, %c0_12] : memref<72x384xf32, #tpu.memory_space<vmem>>, vector<8x384xf32>
    tpu.vector_store %arg10[%c56, %c0_12], %19 {strides = array<i32>} : memref<72x384xf32, #tpu.memory_space<vmem>>, vector<8x384xf32>,
    %21 = vector.extract_strided_slice %4 {offsets = [0, 147], sizes = [8, 384], strides = [1, 1]} : vector<8x640xf32> to vector<8x384xf32>
    %c64 = arith.constant 64 : index
    %c0_13 = arith.constant 0 : index
    %22 = vector.load %arg10[%c64, %c0_13] : memref<72x384xf32, #tpu.memory_space<vmem>>, vector<8x384xf32>
    tpu.vector_store %arg10[%c64, %c0_13], %21 {strides = array<i32>} : memref<72x384xf32, #tpu.memory_space<vmem>>, vector<8x384xf32>,
    %c0_14 = arith.constant 0 : index
    %c0_15 = arith.constant 0 : index
    %23 = vector.load %arg4[%c0_14, %c0_15] : memref<16x72xf32, #tpu.memory_space<vmem>>, vector<16x72xf32>
    %c0_16 = arith.constant 0 : index
    %c0_17 = arith.constant 0 : index
    %24 = vector.load %arg10[%c0_16, %c0_17] : memref<72x384xf32, #tpu.memory_space<vmem>>, vector<72x384xf32>
    %cst_18 = arith.constant dense<0.000000e+00> : vector<16x384xf32>
    %25 = tpu.matmul %23, %24, %cst_18 {dimension_numbers = #tpu.dot_dimension_numbers<[1], [0], [0], [1], [0, 0, 1, 1], [], []>} : vector<16x72xf32>, vector<72x384xf32>, vector<16x384xf32> -> vector<16x384xf32>
    %c0_19 = arith.constant 0 : index
    %c0_20 = arith.constant 0 : index
    %26 = vector.load %arg5[%c0_19, %c0_20] : memref<16x1xf32, #tpu.memory_space<vmem>>, vector<16x1xf32>
    %27 = vector.broadcast %26 : vector<16x1xf32> to vector<16x384xf32>
    %28 = arith.addf %25, %27 : vector<16x384xf32>
    %cst_21 = arith.constant 0.000000e+00 : f32
    %29 = vector.broadcast %cst_21 : f32 to vector<16x384xf32>
    %30 = arith.maximumf %28, %29 : vector<16x384xf32>
    %31 = vector.broadcast %0 : vector<1x384xf32> to vector<16x384xf32>
    %32 = arith.mulf %30, %31 : vector<16x384xf32>
    %c0_22 = arith.constant 0 : index
    %c0_23 = arith.constant 0 : index
    %c0_24 = arith.constant 0 : index
    %33 = vector.load %arg7[%c0_22, %c0_23, %c0_24] : memref<1x16x384xf32, #tpu.memory_space<vmem>>, vector<1x16x384xf32>
    %34 = vector.shape_cast %33 : vector<1x16x384xf32> to vector<16x384xf32>
    %35 = vector.shape_cast %32 : vector<16x384xf32> to vector<1x16x384xf32>
    tpu.vector_store %arg7[%c0_22, %c0_23, %c0_24], %35 {strides = array<i32>} : memref<1x16x384xf32, #tpu.memory_space<vmem>>, vector<1x16x384xf32>,
    %cst_25 = arith.constant dense<0.000000e+00> : vector<16xf32>
    %36 = vector.multi_reduction <add>, %32, %cst_25 [1] : vector<16x384xf32> to vector<16xf32>
    %37 = vector.shape_cast %36 : vector<16xf32> to vector<16x1xf32>
    %c0_26 = arith.constant 0 : index
    %c0_27 = arith.constant 0 : index
    %c0_28 = arith.constant 0 : index
    %38 = vector.load %arg8[%c0_26, %c0_27, %c0_28] : memref<1x16x1xf32, #tpu.memory_space<vmem>>, vector<1x16x1xf32>
    %39 = vector.shape_cast %38 : vector<1x16x1xf32> to vector<16x1xf32>
    %40 = vector.shape_cast %37 : vector<16x1xf32> to vector<1x16x1xf32>
    tpu.vector_store %arg8[%c0_26, %c0_27, %c0_28], %40 {strides = array<i32>} : memref<1x16x1xf32, #tpu.memory_space<vmem>>, vector<1x16x1xf32>,
    %41 = arith.mulf %32, %32 : vector<16x384xf32>
    %cst_29 = arith.constant dense<0.000000e+00> : vector<16xf32>
    %42 = vector.multi_reduction <add>, %41, %cst_29 [1] : vector<16x384xf32> to vector<16xf32>
    %43 = vector.shape_cast %42 : vector<16xf32> to vector<16x1xf32>
    %c0_30 = arith.constant 0 : index
    %c0_31 = arith.constant 0 : index
    %c0_32 = arith.constant 0 : index
    %44 = vector.load %arg9[%c0_30, %c0_31, %c0_32] : memref<1x16x1xf32, #tpu.memory_space<vmem>>, vector<1x16x1xf32>
    %45 = vector.shape_cast %44 : vector<1x16x1xf32> to vector<16x1xf32>
    %46 = vector.shape_cast %43 : vector<16x1xf32> to vector<1x16x1xf32>
    tpu.vector_store %arg9[%c0_30, %c0_31, %c0_32], %46 {strides = array<i32>} : memref<1x16x1xf32, #tpu.memory_space<vmem>>, vector<1x16x1xf32>,
    return
  }
  func.func @transform_0(%arg0: i32) -> (i32, i32, i32) {
    %c0_i32 = arith.constant 0 : i32
    %c0_i32_0 = arith.constant 0 : i32
    %c0_i32_1 = arith.constant 0 : i32
    return %arg0, %c0_i32, %c0_i32_0 : i32, i32, i32
  }
  func.func @transform_1(%arg0: i32) -> (i32, i32) {
    %c0_i32 = arith.constant 0 : i32
    %c0_i32_0 = arith.constant 0 : i32
    %c0_i32_1 = arith.constant 0 : i32
    return %c0_i32, %c0_i32_0 : i32, i32
  }
  func.func @transform_2(%arg0: i32) -> (i32, i32) {
    %c0_i32 = arith.constant 0 : i32
    %c0_i32_0 = arith.constant 0 : i32
    %c0_i32_1 = arith.constant 0 : i32
    return %c0_i32, %c0_i32_0 : i32, i32
  }
  func.func @transform_3(%arg0: i32) -> (i32, i32) {
    %c0_i32 = arith.constant 0 : i32
    %c0_i32_0 = arith.constant 0 : i32
    %c0_i32_1 = arith.constant 0 : i32
    return %c0_i32, %c0_i32_0 : i32, i32
  }
  func.func @transform_4(%arg0: i32) -> (i32, i32) {
    %c0_i32 = arith.constant 0 : i32
    %c0_i32_0 = arith.constant 0 : i32
    %c0_i32_1 = arith.constant 0 : i32
    return %c0_i32, %c0_i32_0 : i32, i32
  }
  func.func @transform_5(%arg0: i32) -> (i32, i32) {
    %c0_i32 = arith.constant 0 : i32
    %c0_i32_0 = arith.constant 0 : i32
    %c0_i32_1 = arith.constant 0 : i32
    return %c0_i32, %c0_i32_0 : i32, i32
  }
  func.func @transform_6(%arg0: i32) -> (i32, i32, i32) {
    %c0_i32 = arith.constant 0 : i32
    %c0_i32_0 = arith.constant 0 : i32
    %c0_i32_1 = arith.constant 0 : i32
    return %arg0, %c0_i32, %c0_i32_0 : i32, i32, i32
  }
  func.func @transform_7(%arg0: i32) -> (i32, i32, i32) {
    %c0_i32 = arith.constant 0 : i32
    %c0_i32_0 = arith.constant 0 : i32
    %c0_i32_1 = arith.constant 0 : i32
    return %arg0, %c0_i32, %c0_i32_0 : i32, i32, i32
  }
  func.func @transform_8(%arg0: i32) -> (i32, i32, i32) {
    %c0_i32 = arith.constant 0 : i32
    %c0_i32_0 = arith.constant 0 : i32
    %c0_i32_1 = arith.constant 0 : i32
    return %arg0, %c0_i32, %c0_i32_0 : i32, i32, i32
  }
}

module attributes {stable_mosaic.version = 11 : i64} {
  func.func @_conv_bn_relu_stats_kernel(%arg0: i32, %arg1: memref<1x16x384xf32, #tpu.memory_space<vmem>>, %arg2: memref<16x1xf32, #tpu.memory_space<vmem>>, %arg3: memref<16x1xf32, #tpu.memory_space<vmem>>, %arg4: memref<16x144xf32, #tpu.memory_space<vmem>>, %arg5: memref<16x1xf32, #tpu.memory_space<vmem>>, %arg6: memref<1x384xf32, #tpu.memory_space<vmem>>, %arg7: memref<1x16x384xf32, #tpu.memory_space<vmem>>, %arg8: memref<1x16x1xf32, #tpu.memory_space<vmem>>, %arg9: memref<1x16x1xf32, #tpu.memory_space<vmem>>, %arg10: memref<144x384xf32, #tpu.memory_space<vmem>>) attributes {dimension_semantics = [#tpu.dimension_semantics<parallel>], iteration_bounds = array<i64: 2>, scalar_prefetch = 0 : i64, scratch_operands = 1 : i64, tpu.core_type = #tpu.core_type<tc>, window_params = [{transform_indices = @transform_0, window_bounds = array<i64: 1, 16, 384>}, {pipeline_mode = #tpu.pipeline_mode<synchronous>, transform_indices = @transform_1, window_bounds = array<i64: 16, 1>}, {pipeline_mode = #tpu.pipeline_mode<synchronous>, transform_indices = @transform_2, window_bounds = array<i64: 16, 1>}, {pipeline_mode = #tpu.pipeline_mode<synchronous>, transform_indices = @transform_3, window_bounds = array<i64: 16, 144>}, {pipeline_mode = #tpu.pipeline_mode<synchronous>, transform_indices = @transform_4, window_bounds = array<i64: 16, 1>}, {pipeline_mode = #tpu.pipeline_mode<synchronous>, transform_indices = @transform_5, window_bounds = array<i64: 1, 384>}, {transform_indices = @transform_6, window_bounds = array<i64: 1, 16, 384>}, {transform_indices = @transform_7, window_bounds = array<i64: 1, 16, 1>}, {transform_indices = @transform_8, window_bounds = array<i64: 1, 16, 1>}]} {
    %c0 = arith.constant 0 : index
    %c0_0 = arith.constant 0 : index
    %0 = vector.load %arg6[%c0, %c0_0] : memref<1x384xf32, #tpu.memory_space<vmem>>, vector<1x384xf32>
    %cst = arith.constant 0.000000e+00 : f32
    %1 = vector.broadcast %cst : f32 to vector<16x128xf32>
    %c0_1 = arith.constant 0 : index
    %c0_2 = arith.constant 0 : index
    %c0_3 = arith.constant 0 : index
    %2 = vector.load %arg1[%c0_1, %c0_2, %c0_3] : memref<1x16x384xf32, #tpu.memory_space<vmem>>, vector<1x16x384xf32>
    %3 = vector.shape_cast %2 : vector<1x16x384xf32> to vector<16x384xf32>
    %c0_4 = arith.constant 0 : index
    %c0_5 = arith.constant 0 : index
    %4 = vector.load %arg2[%c0_4, %c0_5] : memref<16x1xf32, #tpu.memory_space<vmem>>, vector<16x1xf32>
    %5 = vector.broadcast %4 : vector<16x1xf32> to vector<16x384xf32>
    %6 = arith.mulf %3, %5 : vector<16x384xf32>
    %c0_6 = arith.constant 0 : index
    %c0_7 = arith.constant 0 : index
    %7 = vector.load %arg3[%c0_6, %c0_7] : memref<16x1xf32, #tpu.memory_space<vmem>>, vector<16x1xf32>
    %8 = vector.broadcast %7 : vector<16x1xf32> to vector<16x384xf32>
    %9 = arith.addf %6, %8 : vector<16x384xf32>
    %10 = vector.broadcast %0 : vector<1x384xf32> to vector<16x384xf32>
    %11 = arith.mulf %9, %10 : vector<16x384xf32>
    %12 = tpu.concatenate %1, %11, %1 in 1 : vector<16x128xf32>, vector<16x384xf32>, vector<16x128xf32> -> vector<16x640xf32>
    %13 = vector.extract_strided_slice %12 {offsets = [0, 109], sizes = [16, 384], strides = [1, 1]} : vector<16x640xf32> to vector<16x384xf32>
    %c0_8 = arith.constant 0 : index
    %c0_9 = arith.constant 0 : index
    %14 = vector.load %arg10[%c0_8, %c0_9] : memref<144x384xf32, #tpu.memory_space<vmem>>, vector<16x384xf32>
    tpu.vector_store %arg10[%c0_8, %c0_9], %13 {strides = array<i32>} : memref<144x384xf32, #tpu.memory_space<vmem>>, vector<16x384xf32>,
    %15 = vector.extract_strided_slice %12 {offsets = [0, 110], sizes = [16, 384], strides = [1, 1]} : vector<16x640xf32> to vector<16x384xf32>
    %c16 = arith.constant 16 : index
    %c0_10 = arith.constant 0 : index
    %16 = vector.load %arg10[%c16, %c0_10] : memref<144x384xf32, #tpu.memory_space<vmem>>, vector<16x384xf32>
    tpu.vector_store %arg10[%c16, %c0_10], %15 {strides = array<i32>} : memref<144x384xf32, #tpu.memory_space<vmem>>, vector<16x384xf32>,
    %17 = vector.extract_strided_slice %12 {offsets = [0, 111], sizes = [16, 384], strides = [1, 1]} : vector<16x640xf32> to vector<16x384xf32>
    %c32 = arith.constant 32 : index
    %c0_11 = arith.constant 0 : index
    %18 = vector.load %arg10[%c32, %c0_11] : memref<144x384xf32, #tpu.memory_space<vmem>>, vector<16x384xf32>
    tpu.vector_store %arg10[%c32, %c0_11], %17 {strides = array<i32>} : memref<144x384xf32, #tpu.memory_space<vmem>>, vector<16x384xf32>,
    %19 = vector.extract_strided_slice %12 {offsets = [0, 127], sizes = [16, 384], strides = [1, 1]} : vector<16x640xf32> to vector<16x384xf32>
    %c48 = arith.constant 48 : index
    %c0_12 = arith.constant 0 : index
    %20 = vector.load %arg10[%c48, %c0_12] : memref<144x384xf32, #tpu.memory_space<vmem>>, vector<16x384xf32>
    tpu.vector_store %arg10[%c48, %c0_12], %19 {strides = array<i32>} : memref<144x384xf32, #tpu.memory_space<vmem>>, vector<16x384xf32>,
    %21 = vector.extract_strided_slice %12 {offsets = [0, 128], sizes = [16, 384], strides = [1, 1]} : vector<16x640xf32> to vector<16x384xf32>
    %c64 = arith.constant 64 : index
    %c0_13 = arith.constant 0 : index
    %22 = vector.load %arg10[%c64, %c0_13] : memref<144x384xf32, #tpu.memory_space<vmem>>, vector<16x384xf32>
    tpu.vector_store %arg10[%c64, %c0_13], %21 {strides = array<i32>} : memref<144x384xf32, #tpu.memory_space<vmem>>, vector<16x384xf32>,
    %23 = vector.extract_strided_slice %12 {offsets = [0, 129], sizes = [16, 384], strides = [1, 1]} : vector<16x640xf32> to vector<16x384xf32>
    %c80 = arith.constant 80 : index
    %c0_14 = arith.constant 0 : index
    %24 = vector.load %arg10[%c80, %c0_14] : memref<144x384xf32, #tpu.memory_space<vmem>>, vector<16x384xf32>
    tpu.vector_store %arg10[%c80, %c0_14], %23 {strides = array<i32>} : memref<144x384xf32, #tpu.memory_space<vmem>>, vector<16x384xf32>,
    %25 = vector.extract_strided_slice %12 {offsets = [0, 145], sizes = [16, 384], strides = [1, 1]} : vector<16x640xf32> to vector<16x384xf32>
    %c96 = arith.constant 96 : index
    %c0_15 = arith.constant 0 : index
    %26 = vector.load %arg10[%c96, %c0_15] : memref<144x384xf32, #tpu.memory_space<vmem>>, vector<16x384xf32>
    tpu.vector_store %arg10[%c96, %c0_15], %25 {strides = array<i32>} : memref<144x384xf32, #tpu.memory_space<vmem>>, vector<16x384xf32>,
    %27 = vector.extract_strided_slice %12 {offsets = [0, 146], sizes = [16, 384], strides = [1, 1]} : vector<16x640xf32> to vector<16x384xf32>
    %c112 = arith.constant 112 : index
    %c0_16 = arith.constant 0 : index
    %28 = vector.load %arg10[%c112, %c0_16] : memref<144x384xf32, #tpu.memory_space<vmem>>, vector<16x384xf32>
    tpu.vector_store %arg10[%c112, %c0_16], %27 {strides = array<i32>} : memref<144x384xf32, #tpu.memory_space<vmem>>, vector<16x384xf32>,
    %29 = vector.extract_strided_slice %12 {offsets = [0, 147], sizes = [16, 384], strides = [1, 1]} : vector<16x640xf32> to vector<16x384xf32>
    %c128 = arith.constant 128 : index
    %c0_17 = arith.constant 0 : index
    %30 = vector.load %arg10[%c128, %c0_17] : memref<144x384xf32, #tpu.memory_space<vmem>>, vector<16x384xf32>
    tpu.vector_store %arg10[%c128, %c0_17], %29 {strides = array<i32>} : memref<144x384xf32, #tpu.memory_space<vmem>>, vector<16x384xf32>,
    %c0_18 = arith.constant 0 : index
    %c0_19 = arith.constant 0 : index
    %31 = vector.load %arg4[%c0_18, %c0_19] : memref<16x144xf32, #tpu.memory_space<vmem>>, vector<16x144xf32>
    %c0_20 = arith.constant 0 : index
    %c0_21 = arith.constant 0 : index
    %32 = vector.load %arg10[%c0_20, %c0_21] : memref<144x384xf32, #tpu.memory_space<vmem>>, vector<144x384xf32>
    %cst_22 = arith.constant dense<0.000000e+00> : vector<16x384xf32>
    %33 = tpu.matmul %31, %32, %cst_22 {dimension_numbers = #tpu.dot_dimension_numbers<[1], [0], [0], [1], [0, 0, 1, 1], [], []>} : vector<16x144xf32>, vector<144x384xf32>, vector<16x384xf32> -> vector<16x384xf32>
    %c0_23 = arith.constant 0 : index
    %c0_24 = arith.constant 0 : index
    %34 = vector.load %arg5[%c0_23, %c0_24] : memref<16x1xf32, #tpu.memory_space<vmem>>, vector<16x1xf32>
    %35 = vector.broadcast %34 : vector<16x1xf32> to vector<16x384xf32>
    %36 = arith.addf %33, %35 : vector<16x384xf32>
    %cst_25 = arith.constant 0.000000e+00 : f32
    %37 = vector.broadcast %cst_25 : f32 to vector<16x384xf32>
    %38 = arith.maximumf %36, %37 : vector<16x384xf32>
    %39 = vector.broadcast %0 : vector<1x384xf32> to vector<16x384xf32>
    %40 = arith.mulf %38, %39 : vector<16x384xf32>
    %c0_26 = arith.constant 0 : index
    %c0_27 = arith.constant 0 : index
    %c0_28 = arith.constant 0 : index
    %41 = vector.load %arg7[%c0_26, %c0_27, %c0_28] : memref<1x16x384xf32, #tpu.memory_space<vmem>>, vector<1x16x384xf32>
    %42 = vector.shape_cast %41 : vector<1x16x384xf32> to vector<16x384xf32>
    %43 = vector.shape_cast %40 : vector<16x384xf32> to vector<1x16x384xf32>
    tpu.vector_store %arg7[%c0_26, %c0_27, %c0_28], %43 {strides = array<i32>} : memref<1x16x384xf32, #tpu.memory_space<vmem>>, vector<1x16x384xf32>,
    %cst_29 = arith.constant dense<0.000000e+00> : vector<16xf32>
    %44 = vector.multi_reduction <add>, %40, %cst_29 [1] : vector<16x384xf32> to vector<16xf32>
    %45 = vector.shape_cast %44 : vector<16xf32> to vector<16x1xf32>
    %c0_30 = arith.constant 0 : index
    %c0_31 = arith.constant 0 : index
    %c0_32 = arith.constant 0 : index
    %46 = vector.load %arg8[%c0_30, %c0_31, %c0_32] : memref<1x16x1xf32, #tpu.memory_space<vmem>>, vector<1x16x1xf32>
    %47 = vector.shape_cast %46 : vector<1x16x1xf32> to vector<16x1xf32>
    %48 = vector.shape_cast %45 : vector<16x1xf32> to vector<1x16x1xf32>
    tpu.vector_store %arg8[%c0_30, %c0_31, %c0_32], %48 {strides = array<i32>} : memref<1x16x1xf32, #tpu.memory_space<vmem>>, vector<1x16x1xf32>,
    %49 = arith.mulf %40, %40 : vector<16x384xf32>
    %cst_33 = arith.constant dense<0.000000e+00> : vector<16xf32>
    %50 = vector.multi_reduction <add>, %49, %cst_33 [1] : vector<16x384xf32> to vector<16xf32>
    %51 = vector.shape_cast %50 : vector<16xf32> to vector<16x1xf32>
    %c0_34 = arith.constant 0 : index
    %c0_35 = arith.constant 0 : index
    %c0_36 = arith.constant 0 : index
    %52 = vector.load %arg9[%c0_34, %c0_35, %c0_36] : memref<1x16x1xf32, #tpu.memory_space<vmem>>, vector<1x16x1xf32>
    %53 = vector.shape_cast %52 : vector<1x16x1xf32> to vector<16x1xf32>
    %54 = vector.shape_cast %51 : vector<16x1xf32> to vector<1x16x1xf32>
    tpu.vector_store %arg9[%c0_34, %c0_35, %c0_36], %54 {strides = array<i32>} : memref<1x16x1xf32, #tpu.memory_space<vmem>>, vector<1x16x1xf32>,
    return
  }
  func.func @transform_0(%arg0: i32) -> (i32, i32, i32) {
    %c0_i32 = arith.constant 0 : i32
    %c0_i32_0 = arith.constant 0 : i32
    %c0_i32_1 = arith.constant 0 : i32
    return %arg0, %c0_i32, %c0_i32_0 : i32, i32, i32
  }
  func.func @transform_1(%arg0: i32) -> (i32, i32) {
    %c0_i32 = arith.constant 0 : i32
    %c0_i32_0 = arith.constant 0 : i32
    %c0_i32_1 = arith.constant 0 : i32
    return %c0_i32, %c0_i32_0 : i32, i32
  }
  func.func @transform_2(%arg0: i32) -> (i32, i32) {
    %c0_i32 = arith.constant 0 : i32
    %c0_i32_0 = arith.constant 0 : i32
    %c0_i32_1 = arith.constant 0 : i32
    return %c0_i32, %c0_i32_0 : i32, i32
  }
  func.func @transform_3(%arg0: i32) -> (i32, i32) {
    %c0_i32 = arith.constant 0 : i32
    %c0_i32_0 = arith.constant 0 : i32
    %c0_i32_1 = arith.constant 0 : i32
    return %c0_i32, %c0_i32_0 : i32, i32
  }
  func.func @transform_4(%arg0: i32) -> (i32, i32) {
    %c0_i32 = arith.constant 0 : i32
    %c0_i32_0 = arith.constant 0 : i32
    %c0_i32_1 = arith.constant 0 : i32
    return %c0_i32, %c0_i32_0 : i32, i32
  }
  func.func @transform_5(%arg0: i32) -> (i32, i32) {
    %c0_i32 = arith.constant 0 : i32
    %c0_i32_0 = arith.constant 0 : i32
    %c0_i32_1 = arith.constant 0 : i32
    return %c0_i32, %c0_i32_0 : i32, i32
  }
  func.func @transform_6(%arg0: i32) -> (i32, i32, i32) {
    %c0_i32 = arith.constant 0 : i32
    %c0_i32_0 = arith.constant 0 : i32
    %c0_i32_1 = arith.constant 0 : i32
    return %arg0, %c0_i32, %c0_i32_0 : i32, i32, i32
  }
  func.func @transform_7(%arg0: i32) -> (i32, i32, i32) {
    %c0_i32 = arith.constant 0 : i32
    %c0_i32_0 = arith.constant 0 : i32
    %c0_i32_1 = arith.constant 0 : i32
    return %arg0, %c0_i32, %c0_i32_0 : i32, i32, i32
  }
  func.func @transform_8(%arg0: i32) -> (i32, i32, i32) {
    %c0_i32 = arith.constant 0 : i32
    %c0_i32_0 = arith.constant 0 : i32
    %c0_i32_1 = arith.constant 0 : i32
    return %arg0, %c0_i32, %c0_i32_0 : i32, i32, i32
  }
}

module attributes {stable_mosaic.version = 11 : i64} {
  func.func @_decoder_kernel(%arg0: i32, %arg1: memref<1x16x384xf32, #tpu.memory_space<vmem>>, %arg2: memref<16x1xf32, #tpu.memory_space<vmem>>, %arg3: memref<16x1xf32, #tpu.memory_space<vmem>>, %arg4: memref<16x144xf32, #tpu.memory_space<vmem>>, %arg5: memref<16x1xf32, #tpu.memory_space<vmem>>, %arg6: memref<8x144xf32, #tpu.memory_space<vmem>>, %arg7: memref<8x1xf32, #tpu.memory_space<vmem>>, %arg8: memref<1x384xf32, #tpu.memory_space<vmem>>, %arg9: memref<1x384xf32, #tpu.memory_space<vmem>>, %arg10: memref<1x384xf32, #tpu.memory_space<vmem>>, %arg11: memref<1x8x384xf32, #tpu.memory_space<vmem>>, %arg12: memref<1x16x384xf32, #tpu.memory_space<vmem>>, %arg13: memref<144x384xf32, #tpu.memory_space<vmem>>) attributes {dimension_semantics = [#tpu.dimension_semantics<parallel>], iteration_bounds = array<i64: 2>, scalar_prefetch = 0 : i64, scratch_operands = 1 : i64, tpu.core_type = #tpu.core_type<tc>, window_params = [{transform_indices = @transform_0, window_bounds = array<i64: 1, 16, 384>}, {pipeline_mode = #tpu.pipeline_mode<synchronous>, transform_indices = @transform_1, window_bounds = array<i64: 16, 1>}, {pipeline_mode = #tpu.pipeline_mode<synchronous>, transform_indices = @transform_2, window_bounds = array<i64: 16, 1>}, {pipeline_mode = #tpu.pipeline_mode<synchronous>, transform_indices = @transform_3, window_bounds = array<i64: 16, 144>}, {pipeline_mode = #tpu.pipeline_mode<synchronous>, transform_indices = @transform_4, window_bounds = array<i64: 16, 1>}, {pipeline_mode = #tpu.pipeline_mode<synchronous>, transform_indices = @transform_5, window_bounds = array<i64: 8, 144>}, {pipeline_mode = #tpu.pipeline_mode<synchronous>, transform_indices = @transform_6, window_bounds = array<i64: 8, 1>}, {pipeline_mode = #tpu.pipeline_mode<synchronous>, transform_indices = @transform_7, window_bounds = array<i64: 1, 384>}, {pipeline_mode = #tpu.pipeline_mode<synchronous>, transform_indices = @transform_8, window_bounds = array<i64: 1, 384>}, {pipeline_mode = #tpu.pipeline_mode<synchronous>, transform_indices = @transform_9, window_bounds = array<i64: 1, 384>}, {transform_indices = @transform_10, window_bounds = array<i64: 1, 8, 384>}, {transform_indices = @transform_11, window_bounds = array<i64: 1, 16, 384>}]} {
    %c0 = arith.constant 0 : index
    %c0_0 = arith.constant 0 : index
    %0 = vector.load %arg8[%c0, %c0_0] : memref<1x384xf32, #tpu.memory_space<vmem>>, vector<1x384xf32>
    %c0_1 = arith.constant 0 : index
    %c0_2 = arith.constant 0 : index
    %1 = vector.load %arg9[%c0_1, %c0_2] : memref<1x384xf32, #tpu.memory_space<vmem>>, vector<1x384xf32>
    %c0_3 = arith.constant 0 : index
    %c0_4 = arith.constant 0 : index
    %2 = vector.load %arg10[%c0_3, %c0_4] : memref<1x384xf32, #tpu.memory_space<vmem>>, vector<1x384xf32>
    %cst = arith.constant 1.000000e+00 : f32
    %3 = vector.broadcast %cst : f32 to vector<1x384xf32>
    %4 = arith.subf %3, %1 : vector<1x384xf32>
    %cst_5 = arith.constant 1.000000e+00 : f32
    %5 = vector.broadcast %cst_5 : f32 to vector<1x384xf32>
    %6 = arith.subf %5, %2 : vector<1x384xf32>
    %cst_6 = arith.constant 0.000000e+00 : f32
    %7 = vector.broadcast %cst_6 : f32 to vector<16x128xf32>
    %c0_7 = arith.constant 0 : index
    %c0_8 = arith.constant 0 : index
    %c0_9 = arith.constant 0 : index
    %8 = vector.load %arg1[%c0_7, %c0_8, %c0_9] : memref<1x16x384xf32, #tpu.memory_space<vmem>>, vector<1x16x384xf32>
    %9 = vector.shape_cast %8 : vector<1x16x384xf32> to vector<16x384xf32>
    %c0_10 = arith.constant 0 : index
    %c0_11 = arith.constant 0 : index
    %10 = vector.load %arg2[%c0_10, %c0_11] : memref<16x1xf32, #tpu.memory_space<vmem>>, vector<16x1xf32>
    %11 = vector.broadcast %10 : vector<16x1xf32> to vector<16x384xf32>
    %12 = arith.mulf %9, %11 : vector<16x384xf32>
    %c0_12 = arith.constant 0 : index
    %c0_13 = arith.constant 0 : index
    %13 = vector.load %arg3[%c0_12, %c0_13] : memref<16x1xf32, #tpu.memory_space<vmem>>, vector<16x1xf32>
    %14 = vector.broadcast %13 : vector<16x1xf32> to vector<16x384xf32>
    %15 = arith.addf %12, %14 : vector<16x384xf32>
    %16 = vector.broadcast %0 : vector<1x384xf32> to vector<16x384xf32>
    %17 = arith.mulf %15, %16 : vector<16x384xf32>
    %18 = tpu.concatenate %7, %17, %7 in 1 : vector<16x128xf32>, vector<16x384xf32>, vector<16x128xf32> -> vector<16x640xf32>
    %19 = vector.extract_strided_slice %18 {offsets = [0, 129], sizes = [16, 384], strides = [1, 1]} : vector<16x640xf32> to vector<16x384xf32>
    %20 = vector.broadcast %1 : vector<1x384xf32> to vector<16x384xf32>
    %21 = arith.mulf %20, %19 : vector<16x384xf32>
    %22 = vector.extract_strided_slice %18 {offsets = [0, 127], sizes = [16, 384], strides = [1, 1]} : vector<16x640xf32> to vector<16x384xf32>
    %23 = vector.broadcast %4 : vector<1x384xf32> to vector<16x384xf32>
    %24 = arith.mulf %23, %22 : vector<16x384xf32>
    %25 = arith.addf %21, %24 : vector<16x384xf32>
    %26 = vector.extract_strided_slice %18 {offsets = [0, 146], sizes = [16, 384], strides = [1, 1]} : vector<16x640xf32> to vector<16x384xf32>
    %27 = vector.broadcast %2 : vector<1x384xf32> to vector<16x384xf32>
    %28 = arith.mulf %27, %26 : vector<16x384xf32>
    %29 = vector.extract_strided_slice %18 {offsets = [0, 110], sizes = [16, 384], strides = [1, 1]} : vector<16x640xf32> to vector<16x384xf32>
    %30 = vector.broadcast %6 : vector<1x384xf32> to vector<16x384xf32>
    %31 = arith.mulf %30, %29 : vector<16x384xf32>
    %32 = arith.addf %28, %31 : vector<16x384xf32>
    %33 = vector.extract_strided_slice %18 {offsets = [0, 147], sizes = [16, 384], strides = [1, 1]} : vector<16x640xf32> to vector<16x384xf32>
    %34 = vector.broadcast %1 : vector<1x384xf32> to vector<16x384xf32>
    %35 = arith.mulf %34, %33 : vector<16x384xf32>
    %36 = vector.extract_strided_slice %18 {offsets = [0, 145], sizes = [16, 384], strides = [1, 1]} : vector<16x640xf32> to vector<16x384xf32>
    %37 = vector.broadcast %4 : vector<1x384xf32> to vector<16x384xf32>
    %38 = arith.mulf %37, %36 : vector<16x384xf32>
    %39 = arith.addf %35, %38 : vector<16x384xf32>
    %40 = vector.broadcast %2 : vector<1x384xf32> to vector<16x384xf32>
    %41 = arith.mulf %40, %39 : vector<16x384xf32>
    %42 = vector.extract_strided_slice %18 {offsets = [0, 111], sizes = [16, 384], strides = [1, 1]} : vector<16x640xf32> to vector<16x384xf32>
    %43 = vector.broadcast %1 : vector<1x384xf32> to vector<16x384xf32>
    %44 = arith.mulf %43, %42 : vector<16x384xf32>
    %45 = vector.extract_strided_slice %18 {offsets = [0, 109], sizes = [16, 384], strides = [1, 1]} : vector<16x640xf32> to vector<16x384xf32>
    %46 = vector.broadcast %4 : vector<1x384xf32> to vector<16x384xf32>
    %47 = arith.mulf %46, %45 : vector<16x384xf32>
    %48 = arith.addf %44, %47 : vector<16x384xf32>
    %49 = vector.broadcast %6 : vector<1x384xf32> to vector<16x384xf32>
    %50 = arith.mulf %49, %48 : vector<16x384xf32>
    %51 = arith.addf %41, %50 : vector<16x384xf32>
    %52 = arith.maximumf %17, %25 : vector<16x384xf32>
    %53 = arith.maximumf %32, %51 : vector<16x384xf32>
    %54 = arith.maximumf %52, %53 : vector<16x384xf32>
    %55 = arith.mulf %2, %4 : vector<1x384xf32>
    %56 = vector.extract_strided_slice %18 {offsets = [0, 127], sizes = [16, 384], strides = [1, 1]} : vector<16x640xf32> to vector<16x384xf32>
    %57 = arith.cmpf oeq, %56, %54 : vector<16x384xf32>
    %cst_14 = arith.constant 1.000000e+00 : f32
    %cst_15 = arith.constant 0.000000e+00 : f32
    %58 = vector.broadcast %cst_14 : f32 to vector<16x384xf32>
    %59 = vector.broadcast %cst_15 : f32 to vector<16x384xf32>
    %60 = arith.select %57, %58, %59 : vector<16x384xi1>, vector<16x384xf32>
    %61 = vector.broadcast %55 : vector<1x384xf32> to vector<16x384xf32>
    %62 = arith.mulf %61, %60 : vector<16x384xf32>
    %63 = arith.mulf %6, %1 : vector<1x384xf32>
    %64 = vector.extract_strided_slice %18 {offsets = [0, 110], sizes = [16, 384], strides = [1, 1]} : vector<16x640xf32> to vector<16x384xf32>
    %65 = arith.cmpf oeq, %64, %54 : vector<16x384xf32>
    %cst_16 = arith.constant 1.000000e+00 : f32
    %cst_17 = arith.constant 0.000000e+00 : f32
    %66 = vector.broadcast %cst_16 : f32 to vector<16x384xf32>
    %67 = vector.broadcast %cst_17 : f32 to vector<16x384xf32>
    %68 = arith.select %65, %66, %67 : vector<16x384xi1>, vector<16x384xf32>
    %69 = vector.extract_strided_slice %18 {offsets = [0, 111], sizes = [16, 384], strides = [1, 1]} : vector<16x640xf32> to vector<16x384xf32>
    %70 = arith.cmpf oeq, %69, %54 : vector<16x384xf32>
    %cst_18 = arith.constant 1.000000e+00 : f32
    %cst_19 = arith.constant 0.000000e+00 : f32
    %71 = vector.broadcast %cst_18 : f32 to vector<16x384xf32>
    %72 = vector.broadcast %cst_19 : f32 to vector<16x384xf32>
    %73 = arith.select %70, %71, %72 : vector<16x384xi1>, vector<16x384xf32>
    %74 = arith.addf %68, %73 : vector<16x384xf32>
    %75 = vector.broadcast %63 : vector<1x384xf32> to vector<16x384xf32>
    %76 = arith.mulf %75, %74 : vector<16x384xf32>
    %77 = arith.addf %62, %76 : vector<16x384xf32>
    %78 = arith.mulf %6, %4 : vector<1x384xf32>
    %79 = vector.extract_strided_slice %18 {offsets = [0, 109], sizes = [16, 384], strides = [1, 1]} : vector<16x640xf32> to vector<16x384xf32>
    %80 = arith.cmpf oeq, %79, %54 : vector<16x384xf32>
    %cst_20 = arith.constant 1.000000e+00 : f32
    %cst_21 = arith.constant 0.000000e+00 : f32
    %81 = vector.broadcast %cst_20 : f32 to vector<16x384xf32>
    %82 = vector.broadcast %cst_21 : f32 to vector<16x384xf32>
    %83 = arith.select %80, %81, %82 : vector<16x384xi1>, vector<16x384xf32>
    %84 = vector.extract_strided_slice %18 {offsets = [0, 110], sizes = [16, 384], strides = [1, 1]} : vector<16x640xf32> to vector<16x384xf32>
    %85 = arith.cmpf oeq, %84, %54 : vector<16x384xf32>
    %cst_22 = arith.constant 1.000000e+00 : f32
    %cst_23 = arith.constant 0.000000e+00 : f32
    %86 = vector.broadcast %cst_22 : f32 to vector<16x384xf32>
    %87 = vector.broadcast %cst_23 : f32 to vector<16x384xf32>
    %88 = arith.select %85, %86, %87 : vector<16x384xi1>, vector<16x384xf32>
    %89 = arith.addf %83, %88 : vector<16x384xf32>
    %90 = vector.extract_strided_slice %18 {offsets = [0, 127], sizes = [16, 384], strides = [1, 1]} : vector<16x640xf32> to vector<16x384xf32>
    %91 = arith.cmpf oeq, %90, %54 : vector<16x384xf32>
    %cst_24 = arith.constant 1.000000e+00 : f32
    %cst_25 = arith.constant 0.000000e+00 : f32
    %92 = vector.broadcast %cst_24 : f32 to vector<16x384xf32>
    %93 = vector.broadcast %cst_25 : f32 to vector<16x384xf32>
    %94 = arith.select %91, %92, %93 : vector<16x384xi1>, vector<16x384xf32>
    %95 = arith.addf %89, %94 : vector<16x384xf32>
    %96 = vector.broadcast %78 : vector<1x384xf32> to vector<16x384xf32>
    %97 = arith.mulf %96, %95 : vector<16x384xf32>
    %98 = arith.addf %77, %97 : vector<16x384xf32>
    %99 = arith.cmpf oeq, %17, %54 : vector<16x384xf32>
    %cst_26 = arith.constant 5.000000e-01 : f32
    %100 = vector.broadcast %cst_26 : f32 to vector<16x384xf32>
    %101 = arith.cmpf olt, %98, %100 : vector<16x384xf32>
    %102 = arith.andi %99, %101 : vector<16x384xi1>
    %cst_27 = arith.constant 0.000000e+00 : f32
    %103 = vector.broadcast %cst_27 : f32 to vector<16x384xf32>
    %104 = arith.select %102, %17, %103 : vector<16x384xi1>, vector<16x384xf32>
    %105 = vector.broadcast %0 : vector<1x384xf32> to vector<16x384xf32>
    %106 = arith.mulf %54, %105 : vector<16x384xf32>
    %c0_28 = arith.constant 0 : index
    %c0_29 = arith.constant 0 : index
    %c0_30 = arith.constant 0 : index
    %107 = vector.load %arg12[%c0_28, %c0_29, %c0_30] : memref<1x16x384xf32, #tpu.memory_space<vmem>>, vector<1x16x384xf32>
    %108 = vector.shape_cast %107 : vector<1x16x384xf32> to vector<16x384xf32>
    %109 = vector.shape_cast %106 : vector<16x384xf32> to vector<1x16x384xf32>
    tpu.vector_store %arg12[%c0_28, %c0_29, %c0_30], %109 {strides = array<i32>} : memref<1x16x384xf32, #tpu.memory_space<vmem>>, vector<1x16x384xf32>,
    %110 = tpu.concatenate %7, %104, %7 in 1 : vector<16x128xf32>, vector<16x384xf32>, vector<16x128xf32> -> vector<16x640xf32>
    %111 = vector.extract_strided_slice %110 {offsets = [0, 109], sizes = [16, 384], strides = [1, 1]} : vector<16x640xf32> to vector<16x384xf32>
    %c0_31 = arith.constant 0 : index
    %c0_32 = arith.constant 0 : index
    %112 = vector.load %arg13[%c0_31, %c0_32] : memref<144x384xf32, #tpu.memory_space<vmem>>, vector<16x384xf32>
    tpu.vector_store %arg13[%c0_31, %c0_32], %111 {strides = array<i32>} : memref<144x384xf32, #tpu.memory_space<vmem>>, vector<16x384xf32>,
    %113 = vector.extract_strided_slice %110 {offsets = [0, 110], sizes = [16, 384], strides = [1, 1]} : vector<16x640xf32> to vector<16x384xf32>
    %c16 = arith.constant 16 : index
    %c0_33 = arith.constant 0 : index
    %114 = vector.load %arg13[%c16, %c0_33] : memref<144x384xf32, #tpu.memory_space<vmem>>, vector<16x384xf32>
    tpu.vector_store %arg13[%c16, %c0_33], %113 {strides = array<i32>} : memref<144x384xf32, #tpu.memory_space<vmem>>, vector<16x384xf32>,
    %115 = vector.extract_strided_slice %110 {offsets = [0, 111], sizes = [16, 384], strides = [1, 1]} : vector<16x640xf32> to vector<16x384xf32>
    %c32 = arith.constant 32 : index
    %c0_34 = arith.constant 0 : index
    %116 = vector.load %arg13[%c32, %c0_34] : memref<144x384xf32, #tpu.memory_space<vmem>>, vector<16x384xf32>
    tpu.vector_store %arg13[%c32, %c0_34], %115 {strides = array<i32>} : memref<144x384xf32, #tpu.memory_space<vmem>>, vector<16x384xf32>,
    %117 = vector.extract_strided_slice %110 {offsets = [0, 127], sizes = [16, 384], strides = [1, 1]} : vector<16x640xf32> to vector<16x384xf32>
    %c48 = arith.constant 48 : index
    %c0_35 = arith.constant 0 : index
    %118 = vector.load %arg13[%c48, %c0_35] : memref<144x384xf32, #tpu.memory_space<vmem>>, vector<16x384xf32>
    tpu.vector_store %arg13[%c48, %c0_35], %117 {strides = array<i32>} : memref<144x384xf32, #tpu.memory_space<vmem>>, vector<16x384xf32>,
    %119 = vector.extract_strided_slice %110 {offsets = [0, 128], sizes = [16, 384], strides = [1, 1]} : vector<16x640xf32> to vector<16x384xf32>
    %c64 = arith.constant 64 : index
    %c0_36 = arith.constant 0 : index
    %120 = vector.load %arg13[%c64, %c0_36] : memref<144x384xf32, #tpu.memory_space<vmem>>, vector<16x384xf32>
    tpu.vector_store %arg13[%c64, %c0_36], %119 {strides = array<i32>} : memref<144x384xf32, #tpu.memory_space<vmem>>, vector<16x384xf32>,
    %121 = vector.extract_strided_slice %110 {offsets = [0, 129], sizes = [16, 384], strides = [1, 1]} : vector<16x640xf32> to vector<16x384xf32>
    %c80 = arith.constant 80 : index
    %c0_37 = arith.constant 0 : index
    %122 = vector.load %arg13[%c80, %c0_37] : memref<144x384xf32, #tpu.memory_space<vmem>>, vector<16x384xf32>
    tpu.vector_store %arg13[%c80, %c0_37], %121 {strides = array<i32>} : memref<144x384xf32, #tpu.memory_space<vmem>>, vector<16x384xf32>,
    %123 = vector.extract_strided_slice %110 {offsets = [0, 145], sizes = [16, 384], strides = [1, 1]} : vector<16x640xf32> to vector<16x384xf32>
    %c96 = arith.constant 96 : index
    %c0_38 = arith.constant 0 : index
    %124 = vector.load %arg13[%c96, %c0_38] : memref<144x384xf32, #tpu.memory_space<vmem>>, vector<16x384xf32>
    tpu.vector_store %arg13[%c96, %c0_38], %123 {strides = array<i32>} : memref<144x384xf32, #tpu.memory_space<vmem>>, vector<16x384xf32>,
    %125 = vector.extract_strided_slice %110 {offsets = [0, 146], sizes = [16, 384], strides = [1, 1]} : vector<16x640xf32> to vector<16x384xf32>
    %c112 = arith.constant 112 : index
    %c0_39 = arith.constant 0 : index
    %126 = vector.load %arg13[%c112, %c0_39] : memref<144x384xf32, #tpu.memory_space<vmem>>, vector<16x384xf32>
    tpu.vector_store %arg13[%c112, %c0_39], %125 {strides = array<i32>} : memref<144x384xf32, #tpu.memory_space<vmem>>, vector<16x384xf32>,
    %127 = vector.extract_strided_slice %110 {offsets = [0, 147], sizes = [16, 384], strides = [1, 1]} : vector<16x640xf32> to vector<16x384xf32>
    %c128 = arith.constant 128 : index
    %c0_40 = arith.constant 0 : index
    %128 = vector.load %arg13[%c128, %c0_40] : memref<144x384xf32, #tpu.memory_space<vmem>>, vector<16x384xf32>
    tpu.vector_store %arg13[%c128, %c0_40], %127 {strides = array<i32>} : memref<144x384xf32, #tpu.memory_space<vmem>>, vector<16x384xf32>,
    %c0_41 = arith.constant 0 : index
    %c0_42 = arith.constant 0 : index
    %129 = vector.load %arg4[%c0_41, %c0_42] : memref<16x144xf32, #tpu.memory_space<vmem>>, vector<16x144xf32>
    %c0_43 = arith.constant 0 : index
    %c0_44 = arith.constant 0 : index
    %130 = vector.load %arg13[%c0_43, %c0_44] : memref<144x384xf32, #tpu.memory_space<vmem>>, vector<144x384xf32>
    %cst_45 = arith.constant dense<0.000000e+00> : vector<16x384xf32>
    %131 = tpu.matmul %129, %130, %cst_45 {dimension_numbers = #tpu.dot_dimension_numbers<[1], [0], [0], [1], [0, 0, 1, 1], [], []>} : vector<16x144xf32>, vector<144x384xf32>, vector<16x384xf32> -> vector<16x384xf32>
    %c0_46 = arith.constant 0 : index
    %c0_47 = arith.constant 0 : index
    %132 = vector.load %arg5[%c0_46, %c0_47] : memref<16x1xf32, #tpu.memory_space<vmem>>, vector<16x1xf32>
    %133 = vector.broadcast %132 : vector<16x1xf32> to vector<16x384xf32>
    %134 = arith.addf %131, %133 : vector<16x384xf32>
    %cst_48 = arith.constant 0.000000e+00 : f32
    %135 = vector.broadcast %cst_48 : f32 to vector<16x384xf32>
    %136 = arith.maximumf %134, %135 : vector<16x384xf32>
    %137 = vector.broadcast %0 : vector<1x384xf32> to vector<16x384xf32>
    %138 = arith.mulf %136, %137 : vector<16x384xf32>
    %139 = tpu.concatenate %7, %138, %7 in 1 : vector<16x128xf32>, vector<16x384xf32>, vector<16x128xf32> -> vector<16x640xf32>
    %140 = vector.extract_strided_slice %139 {offsets = [0, 109], sizes = [16, 384], strides = [1, 1]} : vector<16x640xf32> to vector<16x384xf32>
    %c0_49 = arith.constant 0 : index
    %c0_50 = arith.constant 0 : index
    %141 = vector.load %arg13[%c0_49, %c0_50] : memref<144x384xf32, #tpu.memory_space<vmem>>, vector<16x384xf32>
    tpu.vector_store %arg13[%c0_49, %c0_50], %140 {strides = array<i32>} : memref<144x384xf32, #tpu.memory_space<vmem>>, vector<16x384xf32>,
    %142 = vector.extract_strided_slice %139 {offsets = [0, 110], sizes = [16, 384], strides = [1, 1]} : vector<16x640xf32> to vector<16x384xf32>
    %c16_51 = arith.constant 16 : index
    %c0_52 = arith.constant 0 : index
    %143 = vector.load %arg13[%c16_51, %c0_52] : memref<144x384xf32, #tpu.memory_space<vmem>>, vector<16x384xf32>
    tpu.vector_store %arg13[%c16_51, %c0_52], %142 {strides = array<i32>} : memref<144x384xf32, #tpu.memory_space<vmem>>, vector<16x384xf32>,
    %144 = vector.extract_strided_slice %139 {offsets = [0, 111], sizes = [16, 384], strides = [1, 1]} : vector<16x640xf32> to vector<16x384xf32>
    %c32_53 = arith.constant 32 : index
    %c0_54 = arith.constant 0 : index
    %145 = vector.load %arg13[%c32_53, %c0_54] : memref<144x384xf32, #tpu.memory_space<vmem>>, vector<16x384xf32>
    tpu.vector_store %arg13[%c32_53, %c0_54], %144 {strides = array<i32>} : memref<144x384xf32, #tpu.memory_space<vmem>>, vector<16x384xf32>,
    %146 = vector.extract_strided_slice %139 {offsets = [0, 127], sizes = [16, 384], strides = [1, 1]} : vector<16x640xf32> to vector<16x384xf32>
    %c48_55 = arith.constant 48 : index
    %c0_56 = arith.constant 0 : index
    %147 = vector.load %arg13[%c48_55, %c0_56] : memref<144x384xf32, #tpu.memory_space<vmem>>, vector<16x384xf32>
    tpu.vector_store %arg13[%c48_55, %c0_56], %146 {strides = array<i32>} : memref<144x384xf32, #tpu.memory_space<vmem>>, vector<16x384xf32>,
    %148 = vector.extract_strided_slice %139 {offsets = [0, 128], sizes = [16, 384], strides = [1, 1]} : vector<16x640xf32> to vector<16x384xf32>
    %c64_57 = arith.constant 64 : index
    %c0_58 = arith.constant 0 : index
    %149 = vector.load %arg13[%c64_57, %c0_58] : memref<144x384xf32, #tpu.memory_space<vmem>>, vector<16x384xf32>
    tpu.vector_store %arg13[%c64_57, %c0_58], %148 {strides = array<i32>} : memref<144x384xf32, #tpu.memory_space<vmem>>, vector<16x384xf32>,
    %150 = vector.extract_strided_slice %139 {offsets = [0, 129], sizes = [16, 384], strides = [1, 1]} : vector<16x640xf32> to vector<16x384xf32>
    %c80_59 = arith.constant 80 : index
    %c0_60 = arith.constant 0 : index
    %151 = vector.load %arg13[%c80_59, %c0_60] : memref<144x384xf32, #tpu.memory_space<vmem>>, vector<16x384xf32>
    tpu.vector_store %arg13[%c80_59, %c0_60], %150 {strides = array<i32>} : memref<144x384xf32, #tpu.memory_space<vmem>>, vector<16x384xf32>,
    %152 = vector.extract_strided_slice %139 {offsets = [0, 145], sizes = [16, 384], strides = [1, 1]} : vector<16x640xf32> to vector<16x384xf32>
    %c96_61 = arith.constant 96 : index
    %c0_62 = arith.constant 0 : index
    %153 = vector.load %arg13[%c96_61, %c0_62] : memref<144x384xf32, #tpu.memory_space<vmem>>, vector<16x384xf32>
    tpu.vector_store %arg13[%c96_61, %c0_62], %152 {strides = array<i32>} : memref<144x384xf32, #tpu.memory_space<vmem>>, vector<16x384xf32>,
    %154 = vector.extract_strided_slice %139 {offsets = [0, 146], sizes = [16, 384], strides = [1, 1]} : vector<16x640xf32> to vector<16x384xf32>
    %c112_63 = arith.constant 112 : index
    %c0_64 = arith.constant 0 : index
    %155 = vector.load %arg13[%c112_63, %c0_64] : memref<144x384xf32, #tpu.memory_space<vmem>>, vector<16x384xf32>
    tpu.vector_store %arg13[%c112_63, %c0_64], %154 {strides = array<i32>} : memref<144x384xf32, #tpu.memory_space<vmem>>, vector<16x384xf32>,
    %156 = vector.extract_strided_slice %139 {offsets = [0, 147], sizes = [16, 384], strides = [1, 1]} : vector<16x640xf32> to vector<16x384xf32>
    %c128_65 = arith.constant 128 : index
    %c0_66 = arith.constant 0 : index
    %157 = vector.load %arg13[%c128_65, %c0_66] : memref<144x384xf32, #tpu.memory_space<vmem>>, vector<16x384xf32>
    tpu.vector_store %arg13[%c128_65, %c0_66], %156 {strides = array<i32>} : memref<144x384xf32, #tpu.memory_space<vmem>>, vector<16x384xf32>,
    %c0_67 = arith.constant 0 : index
    %c0_68 = arith.constant 0 : index
    %158 = vector.load %arg6[%c0_67, %c0_68] : memref<8x144xf32, #tpu.memory_space<vmem>>, vector<8x144xf32>
    %c0_69 = arith.constant 0 : index
    %c0_70 = arith.constant 0 : index
    %159 = vector.load %arg13[%c0_69, %c0_70] : memref<144x384xf32, #tpu.memory_space<vmem>>, vector<144x384xf32>
    %cst_71 = arith.constant dense<0.000000e+00> : vector<8x384xf32>
    %160 = tpu.matmul %158, %159, %cst_71 {dimension_numbers = #tpu.dot_dimension_numbers<[1], [0], [0], [1], [0, 0, 1, 1], [], []>} : vector<8x144xf32>, vector<144x384xf32>, vector<8x384xf32> -> vector<8x384xf32>
    %c0_72 = arith.constant 0 : index
    %c0_73 = arith.constant 0 : index
    %161 = vector.load %arg7[%c0_72, %c0_73] : memref<8x1xf32, #tpu.memory_space<vmem>>, vector<8x1xf32>
    %162 = vector.broadcast %161 : vector<8x1xf32> to vector<8x384xf32>
    %163 = arith.addf %160, %162 : vector<8x384xf32>
    %cst_74 = arith.constant 0.000000e+00 : f32
    %164 = vector.broadcast %cst_74 : f32 to vector<8x384xf32>
    %165 = arith.maximumf %163, %164 : vector<8x384xf32>
    %c0_75 = arith.constant 0 : index
    %c0_76 = arith.constant 0 : index
    %c0_77 = arith.constant 0 : index
    %166 = vector.load %arg11[%c0_75, %c0_76, %c0_77] : memref<1x8x384xf32, #tpu.memory_space<vmem>>, vector<1x8x384xf32>
    %167 = vector.shape_cast %166 : vector<1x8x384xf32> to vector<8x384xf32>
    %168 = vector.shape_cast %165 : vector<8x384xf32> to vector<1x8x384xf32>
    tpu.vector_store %arg11[%c0_75, %c0_76, %c0_77], %168 {strides = array<i32>} : memref<1x8x384xf32, #tpu.memory_space<vmem>>, vector<1x8x384xf32>,
    return
  }
  func.func @transform_0(%arg0: i32) -> (i32, i32, i32) {
    %c0_i32 = arith.constant 0 : i32
    %c0_i32_0 = arith.constant 0 : i32
    %c0_i32_1 = arith.constant 0 : i32
    return %arg0, %c0_i32, %c0_i32_0 : i32, i32, i32
  }
  func.func @transform_1(%arg0: i32) -> (i32, i32) {
    %c0_i32 = arith.constant 0 : i32
    %c0_i32_0 = arith.constant 0 : i32
    %c0_i32_1 = arith.constant 0 : i32
    return %c0_i32, %c0_i32_0 : i32, i32
  }
  func.func @transform_2(%arg0: i32) -> (i32, i32) {
    %c0_i32 = arith.constant 0 : i32
    %c0_i32_0 = arith.constant 0 : i32
    %c0_i32_1 = arith.constant 0 : i32
    return %c0_i32, %c0_i32_0 : i32, i32
  }
  func.func @transform_3(%arg0: i32) -> (i32, i32) {
    %c0_i32 = arith.constant 0 : i32
    %c0_i32_0 = arith.constant 0 : i32
    %c0_i32_1 = arith.constant 0 : i32
    return %c0_i32, %c0_i32_0 : i32, i32
  }
  func.func @transform_4(%arg0: i32) -> (i32, i32) {
    %c0_i32 = arith.constant 0 : i32
    %c0_i32_0 = arith.constant 0 : i32
    %c0_i32_1 = arith.constant 0 : i32
    return %c0_i32, %c0_i32_0 : i32, i32
  }
  func.func @transform_5(%arg0: i32) -> (i32, i32) {
    %c0_i32 = arith.constant 0 : i32
    %c0_i32_0 = arith.constant 0 : i32
    %c0_i32_1 = arith.constant 0 : i32
    return %c0_i32, %c0_i32_0 : i32, i32
  }
  func.func @transform_6(%arg0: i32) -> (i32, i32) {
    %c0_i32 = arith.constant 0 : i32
    %c0_i32_0 = arith.constant 0 : i32
    %c0_i32_1 = arith.constant 0 : i32
    return %c0_i32, %c0_i32_0 : i32, i32
  }
  func.func @transform_7(%arg0: i32) -> (i32, i32) {
    %c0_i32 = arith.constant 0 : i32
    %c0_i32_0 = arith.constant 0 : i32
    %c0_i32_1 = arith.constant 0 : i32
    return %c0_i32, %c0_i32_0 : i32, i32
  }
  func.func @transform_8(%arg0: i32) -> (i32, i32) {
    %c0_i32 = arith.constant 0 : i32
    %c0_i32_0 = arith.constant 0 : i32
    %c0_i32_1 = arith.constant 0 : i32
    return %c0_i32, %c0_i32_0 : i32, i32
  }
  func.func @transform_9(%arg0: i32) -> (i32, i32) {
    %c0_i32 = arith.constant 0 : i32
    %c0_i32_0 = arith.constant 0 : i32
    %c0_i32_1 = arith.constant 0 : i32
    return %c0_i32, %c0_i32_0 : i32, i32
  }
  func.func @transform_10(%arg0: i32) -> (i32, i32, i32) {
    %c0_i32 = arith.constant 0 : i32
    %c0_i32_0 = arith.constant 0 : i32
    %c0_i32_1 = arith.constant 0 : i32
    return %arg0, %c0_i32, %c0_i32_0 : i32, i32, i32
  }
  func.func @transform_11(%arg0: i32) -> (i32, i32, i32) {
    %c0_i32 = arith.constant 0 : i32
    %c0_i32_0 = arith.constant 0 : i32
    %c0_i32_1 = arith.constant 0 : i32
    return %arg0, %c0_i32, %c0_i32_0 : i32, i32, i32
  }
}

</mosaic_0001>

<llo_original>
// kernel: simple_conv_ae_forward.3
$region0: #{simple_conv_ae_forward.3}
  #allocation0 [shape = 'u32[]', space=smem, size = 0x4, offset = 0x4, fixed_abs, tag = 'smem constant byte address 0x4 - core index']
  #allocation1 [shape = 'u32[144,128]{1,0:T(1,128)}', space=vmem, size = 0x12000, scoped, tag = 'internal scratch']
  #allocation2 [shape = 'f32[72,384]{1,0:T(8,128)}', space=vmem, size = 0x1b000, scoped, tag = 'scratch operand']
  %s0 = inlined_call_operand.vmem [shape: f32[2,8,384], index: 0, kind: input, shape index: {}]
  %s1 = inlined_call_operand.vmem [shape: f32[8,1], index: 1, kind: input, shape index: {}]
  %s2 = inlined_call_operand.vmem [shape: f32[8,1], index: 2, kind: input, shape index: {}]
  %s3 = inlined_call_operand.vmem [shape: f32[16,72], index: 3, kind: input, shape index: {}]
  %s4 = inlined_call_operand.vmem [shape: f32[16,1], index: 4, kind: input, shape index: {}]
  %s5 = inlined_call_operand.vmem [shape: f32[1,384], index: 5, kind: input, shape index: {}]
  %s6 = inlined_call_operand.vmem [shape: f32[2,16,384], index: 6, kind: output, shape index: {0}]
  %s7 = inlined_call_operand.vmem [shape: f32[2,16,1], index: 7, kind: output, shape index: {1}]
  %s8 = inlined_call_operand.vmem [shape: f32[2,16,1], index: 8, kind: output, shape index: {2}]
  %9 = xla_tuple %s6, %s7, %s8
  %s10 = sld [smem:[#allocation0]]
  $region73: #{simple_conv_ae_forward.3} parent=0
    _
  %s12 = ssub.s32 1, %s10
  %s13 = scalar_select 0, %s12, %s10
  loop: start=0, step=1, limit=4
  $region2: #{simple_conv_ae_forward.3} parent=0 // loop_pre_header
    _
  $region3: #{simple_conv_ae_forward.3} parent=0 // loop_header
    %s15 = sphi 0, %s19
    %p16 = scmp.ge.s32.totalorder %s15, 4
    %s25 = sphi 0, %s27
    %s28 = sphi 0, %s25
    %s29 = sphi 0, %s28
    %s45 = sphi 0, %s29
    %s49 = sphi 0, %s49
    %s51 = sphi 0, %s49
    %s52 = sphi 0, %s51
    %s66 = sphi 0, %s52
    %s70 = sphi 0, %s70
    %s72 = sphi 0, %s70
    %s73 = sphi 0, %s72
    %s87 = sphi 0, %s73
    %s91 = sphi 0, %s91
    %s93 = sphi 0, %s91
    %s94 = sphi 0, %s93
    %s108 = sphi 0, %s94
    %s112 = sphi 0, %s112
    %s114 = sphi 0, %s112
    %s115 = sphi 0, %s114
    %s129 = sphi 0, %s115
    %s133 = sphi 0, %s133
    %s135 = sphi 0, %s133
    %s136 = sphi 0, %s135
    %s150 = sphi 0, %s136
    %s156 = sphi 0, %s158
    %s159 = sphi 0, %s156
    %s160 = sphi 0, %s159
    %s176 = sphi 0, %s160
    %s182 = sphi 0, %s184
    %s185 = sphi 0, %s182
    %s186 = sphi 0, %s185
    %s202 = sphi 0, %s186
    %s208 = sphi 0, %s210
    %s211 = sphi 0, %s208
    %s212 = sphi 0, %s211
    %s228 = sphi 0, %s212
  $region4: #{simple_conv_ae_forward.3} parent=0 // loop_header_branch
    %18 = sbr.rel (%p16) target = $region8
  $region5: #{simple_conv_ae_forward.3} parent=0 // loop_body
    %s20 = ssub.s32 %s15, 1
    %s21 = ssub.s32 %s15, 2
    %s22 = sadd.s32 %s15, 1
    %s23 = ssub.s32 %s15, %s22
    %p24 = scmp.eq.s32.totalorder %s23, 0
    %s26 = sadd.s32 %s25, 1
    %s27 = scalar_select %p24, %s25, %s26
    %p30 = pneg %p24
    %p31 = scmp.eq.s32.totalorder %s15, 1
    %p32 = por %p30, %p31
    %p33 = scmp.ne.s32.totalorder %s25, %s28
    %p34 = scmp.eq.s32.totalorder %s15, 0
    %p35 = por %p33, %p34
    %p36 = scmp.ne.s32.totalorder %s25, %s28
    %p37 = scmp.eq.s32.totalorder %s20, 1
    %p38 = por %p36, %p37
    %p39 = scmp.ne.s32.totalorder %s28, %s29
    %p40 = scmp.eq.s32.totalorder %s20, 0
    %p41 = por %p39, %p40
    %p42 = scmp.ne.s32.totalorder %s28, %s29
    %p43 = scmp.eq.s32.totalorder %s21, 1
    %p44 = por %p42, %p43
    %p46 = scmp.ne.s32.totalorder %s29, %s45
    %p47 = scmp.eq.s32.totalorder %s21, 0
    %p48 = por %p46, %p47
    %s50 = sadd.s32 %s49, 1
    %p53 = scmp.eq.s32.totalorder %s15, 1
    %p54 = scmp.ne.s32.totalorder %s49, %s51
    %p55 = scmp.eq.s32.totalorder %s15, 0
    %p56 = por %p54, %p55
    %p57 = scmp.ne.s32.totalorder %s49, %s51
    %p58 = scmp.eq.s32.totalorder %s20, 1
    %p59 = por %p57, %p58
    %p60 = scmp.ne.s32.totalorder %s51, %s52
    %p61 = scmp.eq.s32.totalorder %s20, 0
    %p62 = por %p60, %p61
    %p63 = scmp.ne.s32.totalorder %s51, %s52
    %p64 = scmp.eq.s32.totalorder %s21, 1
    %p65 = por %p63, %p64
    %p67 = scmp.ne.s32.totalorder %s52, %s66
    %p68 = scmp.eq.s32.totalorder %s21, 0
    %p69 = por %p67, %p68
    %s71 = sadd.s32 %s70, 1
    %p74 = scmp.eq.s32.totalorder %s15, 1
    %p75 = scmp.ne.s32.totalorder %s70, %s72
    %p76 = scmp.eq.s32.totalorder %s15, 0
    %p77 = por %p75, %p76
    %p78 = scmp.ne.s32.totalorder %s70, %s72
    %p79 = scmp.eq.s32.totalorder %s20, 1
    %p80 = por %p78, %p79
    %p81 = scmp.ne.s32.totalorder %s72, %s73
    %p82 = scmp.eq.s32.totalorder %s20, 0
    %p83 = por %p81, %p82
    %p84 = scmp.ne.s32.totalorder %s72, %s73
    %p85 = scmp.eq.s32.totalorder %s21, 1
    %p86 = por %p84, %p85
    %p88 = scmp.ne.s32.totalorder %s73, %s87
    %p89 = scmp.eq.s32.totalorder %s21, 0
    %p90 = por %p88, %p89
    %s92 = sadd.s32 %s91, 1
    %p95 = scmp.eq.s32.totalorder %s15, 1
    %p96 = scmp.ne.s32.totalorder %s91, %s93
    %p97 = scmp.eq.s32.totalorder %s15, 0
    %p98 = por %p96, %p97
    %p99 = scmp.ne.s32.totalorder %s91, %s93
    %p100 = scmp.eq.s32.totalorder %s20, 1
    %p101 = por %p99, %p100
    %p102 = scmp.ne.s32.totalorder %s93, %s94
    %p103 = scmp.eq.s32.totalorder %s20, 0
    %p104 = por %p102, %p103
    %p105 = scmp.ne.s32.totalorder %s93, %s94
    %p106 = scmp.eq.s32.totalorder %s21, 1
    %p107 = por %p105, %p106
    %p109 = scmp.ne.s32.totalorder %s94, %s108
    %p110 = scmp.eq.s32.totalorder %s21, 0
    %p111 = por %p109, %p110
    %s113 = sadd.s32 %s112, 1
    %p116 = scmp.eq.s32.totalorder %s15, 1
    %p117 = scmp.ne.s32.totalorder %s112, %s114
    %p118 = scmp.eq.s32.totalorder %s15, 0
    %p119 = por %p117, %p118
    %p120 = scmp.ne.s32.totalorder %s112, %s114
    %p121 = scmp.eq.s32.totalorder %s20, 1
    %p122 = por %p120, %p121
    %p123 = scmp.ne.s32.totalorder %s114, %s115
    %p124 = scmp.eq.s32.totalorder %s20, 0
    %p125 = por %p123, %p124
    %p126 = scmp.ne.s32.totalorder %s114, %s115
    %p127 = scmp.eq.s32.totalorder %s21, 1
    %p128 = por %p126, %p127
    %p130 = scmp.ne.s32.totalorder %s115, %s129
    %p131 = scmp.eq.s32.totalorder %s21, 0
    %p132 = por %p130, %p131
    %s134 = sadd.s32 %s133, 1
    %p137 = scmp.eq.s32.totalorder %s15, 1
    %p138 = scmp.ne.s32.totalorder %s133, %s135
    %p139 = scmp.eq.s32.totalorder %s15, 0
    %p140 = por %p138, %p139
    %p141 = scmp.ne.s32.totalorder %s133, %s135
    %p142 = scmp.eq.s32.totalorder %s20, 1
    %p143 = por %p141, %p142
    %p144 = scmp.ne.s32.totalorder %s135, %s136
    %p145 = scmp.eq.s32.totalorder %s20, 0
    %p146 = por %p144, %p145
    %p147 = scmp.ne.s32.totalorder %s135, %s136
    %p148 = scmp.eq.s32.totalorder %s21, 1
    %p149 = por %p147, %p148
    %p151 = scmp.ne.s32.totalorder %s136, %s150
    %p152 = scmp.eq.s32.totalorder %s21, 0
    %p153 = por %p151, %p152
    %s154 = ssub.s32 %s15, %s22
    %p155 = scmp.eq.s32.totalorder %s154, 0
    %s157 = sadd.s32 %s156, 1
    %s158 = scalar_select %p155, %s156, %s157
    %p161 = pneg %p155
    %p162 = scmp.eq.s32.totalorder %s15, 1
    %p163 = por %p161, %p162
    %p164 = scmp.ne.s32.totalorder %s156, %s159
    %p165 = scmp.eq.s32.totalorder %s15, 0
    %p166 = por %p164, %p165
    %p167 = scmp.ne.s32.totalorder %s156, %s159
    %p168 = scmp.eq.s32.totalorder %s20, 1
    %p169 = por %p167, %p168
    %p170 = scmp.ne.s32.totalorder %s159, %s160
    %p171 = scmp.eq.s32.totalorder %s20, 0
    %p172 = por %p170, %p171
    %p173 = scmp.ne.s32.totalorder %s159, %s160
    %p174 = scmp.eq.s32.totalorder %s21, 1
    %p175 = por %p173, %p174
    %p177 = scmp.ne.s32.totalorder %s160, %s176
    %p178 = scmp.eq.s32.totalorder %s21, 0
    %p179 = por %p177, %p178
    %s180 = ssub.s32 %s15, %s22
    %p181 = scmp.eq.s32.totalorder %s180, 0
    %s183 = sadd.s32 %s182, 1
    %s184 = scalar_select %p181, %s182, %s183
    %p187 = pneg %p181
    %p188 = scmp.eq.s32.totalorder %s15, 1
    %p189 = por %p187, %p188
    %p190 = scmp.ne.s32.totalorder %s182, %s185
    %p191 = scmp.eq.s32.totalorder %s15, 0
    %p192 = por %p190, %p191
    %p193 = scmp.ne.s32.totalorder %s182, %s185
    %p194 = scmp.eq.s32.totalorder %s20, 1
    %p195 = por %p193, %p194
    %p196 = scmp.ne.s32.totalorder %s185, %s186
    %p197 = scmp.eq.s32.totalorder %s20, 0
    %p198 = por %p196, %p197
    %p199 = scmp.ne.s32.totalorder %s185, %s186
    %p200 = scmp.eq.s32.totalorder %s21, 1
    %p201 = por %p199, %p200
    %p203 = scmp.ne.s32.totalorder %s186, %s202
    %p204 = scmp.eq.s32.totalorder %s21, 0
    %p205 = por %p203, %p204
    %s206 = ssub.s32 %s15, %s22
    %p207 = scmp.eq.s32.totalorder %s206, 0
    %s209 = sadd.s32 %s208, 1
    %s210 = scalar_select %p207, %s208, %s209
    %p213 = pneg %p207
    %p214 = scmp.eq.s32.totalorder %s15, 1
    %p215 = por %p213, %p214
    %p216 = scmp.ne.s32.totalorder %s208, %s211
    %p217 = scmp.eq.s32.totalorder %s15, 0
    %p218 = por %p216, %p217
    %p219 = scmp.ne.s32.totalorder %s208, %s211
    %p220 = scmp.eq.s32.totalorder %s20, 1
    %p221 = por %p219, %p220
    %p222 = scmp.ne.s32.totalorder %s211, %s212
    %p223 = scmp.eq.s32.totalorder %s20, 0
    %p224 = por %p222, %p223
    %p225 = scmp.ne.s32.totalorder %s211, %s212
    %p226 = scmp.eq.s32.totalorder %s21, 1
    %p227 = por %p225, %p226
    %p229 = scmp.ne.s32.totalorder %s212, %s228
    %p230 = scmp.eq.s32.totalorder %s21, 0
    %p231 = por %p229, %p230
    %p232 = scmp.le.s32.totalorder 1, %s15
    %p233 = scmp.lt.s32.totalorder %s15, 3
    %p234 = pnand %p232, %p233
    %p235 = pneg %p234
    // Predicated region
    $region9: #{simple_conv_ae_forward.3} parent=5 // pred_check
      _
    $region10: #{simple_conv_ae_forward.3} parent=5 // pred_check_branch
      %237 = sbr.rel (%p234) target = $region12
    $region11: #{simple_conv_ae_forward.3} parent=5 // pred_region
      %s238 = ssub.s32 %s15, 1
      // Predicated region
      $region13: #{simple_conv_ae_forward.3} parent=11 // pred_check
        %p239 = pneg %p62
      $region14: #{simple_conv_ae_forward.3} parent=11 // pred_check_branch
        %241 = sbr.rel (%p239) target = $region16
      $region15: #{simple_conv_ae_forward.3} parent=11 // pred_region
        _
      $region16: #{simple_conv_ae_forward.3} parent=11 // pred_fallthru
        _
      // Predicated region
      $region17: #{simple_conv_ae_forward.3} parent=11 // pred_check
        %p242 = pneg %p83
      $region18: #{simple_conv_ae_forward.3} parent=11 // pred_check_branch
        %244 = sbr.rel (%p242) target = $region20
      $region19: #{simple_conv_ae_forward.3} parent=11 // pred_region
        _
      $region20: #{simple_conv_ae_forward.3} parent=11 // pred_fallthru
        _
      // Predicated region
      $region21: #{simple_conv_ae_forward.3} parent=11 // pred_check
        %p245 = pneg %p104
      $region22: #{simple_conv_ae_forward.3} parent=11 // pred_check_branch
        %247 = sbr.rel (%p245) target = $region24
      $region23: #{simple_conv_ae_forward.3} parent=11 // pred_region
        _
      $region24: #{simple_conv_ae_forward.3} parent=11 // pred_fallthru
        _
      // Predicated region
      $region25: #{simple_conv_ae_forward.3} parent=11 // pred_check
        %p248 = pneg %p125
      $region26: #{simple_conv_ae_forward.3} parent=11 // pred_check_branch
        %250 = sbr.rel (%p248) target = $region28
      $region27: #{simple_conv_ae_forward.3} parent=11 // pred_region
        _
      $region28: #{simple_conv_ae_forward.3} parent=11 // pred_fallthru
        _
      // Predicated region
      $region29: #{simple_conv_ae_forward.3} parent=11 // pred_check
        %p251 = pneg %p146
      $region30: #{simple_conv_ae_forward.3} parent=11 // pred_check_branch
        %253 = sbr.rel (%p251) target = $region32
      $region31: #{simple_conv_ae_forward.3} parent=11 // pred_region
        _
      $region32: #{simple_conv_ae_forward.3} parent=11 // pred_fallthru
        _
    $region12: #{simple_conv_ae_forward.3} parent=5 // pred_fallthru
      _
    %p254 = scmp.lt.s32.totalorder %s15, 2
    // Predicated region
    $region33: #{simple_conv_ae_forward.3} parent=5 // pred_check
      %p255 = pneg %p254
    $region34: #{simple_conv_ae_forward.3} parent=5 // pred_check_branch
      %257 = sbr.rel (%p255) target = $region36
    $region35: #{simple_conv_ae_forward.3} parent=5 // pred_region
      // Predicated region
      $region37: #{simple_conv_ae_forward.3} parent=35 // pred_check
        %p258 = pneg %p35
      $region38: #{simple_conv_ae_forward.3} parent=35 // pred_check_branch
        %260 = sbr.rel (%p258) target = $region40
      $region39: #{simple_conv_ae_forward.3} parent=35 // pred_region
        %p261 = scmp.lt.s32.totalorder %s15, 1
        %s262 = scalar_select %p261, %s15, 1
        %s263 = smul.addr %s262, 3
        %s264 = smul.addr %s263, 8
        %s265 = scalar_lea.vmem %s0, %s264
      $region40: #{simple_conv_ae_forward.3} parent=35 // pred_fallthru
        _
    $region36: #{simple_conv_ae_forward.3} parent=5 // pred_fallthru
      _
    %p266 = scmp.le.s32.totalorder 1, %s15
    %p267 = scmp.lt.s32.totalorder %s15, 3
    %p268 = pnand %p266, %p267
    %p269 = pneg %p268
    // Predicated region
    $region41: #{simple_conv_ae_forward.3} parent=5 // pred_check
      _
    $region42: #{simple_conv_ae_forward.3} parent=5 // pred_check_branch
      %271 = sbr.rel (%p268) target = $region44
    $region43: #{simple_conv_ae_forward.3} parent=5 // pred_region
      %s272 = ssub.s32 %s15, 1
      %p273 = scmp.lt.s32.totalorder %s20, 1
      %s274 = scalar_select %p273, %s20, 1
      %s275 = smul.addr %s274, 3
      %s276 = smul.addr %s275, 8
      %s277 = scalar_lea.vmem %s0, %s276
      %p278 = pneg %p41
      %p279 = pneg %p38
      %p280 = pneg %p62
      %p281 = pneg %p59
      %p282 = pneg %p83
      %p283 = pneg %p80
      %p284 = pneg %p104
      %p285 = pneg %p101
      %p286 = pneg %p125
      %p287 = pneg %p122
      %p288 = pneg %p146
      %p289 = pneg %p143
      %p290 = pneg %p172
      %p291 = pneg %p169
      %p292 = scmp.lt.s32.totalorder %s20, 1
      %s293 = scalar_select %p292, %s20, 1
      %s294 = smul.addr %s293, 6
      %s295 = smul.addr %s294, 8
      %s296 = scalar_lea.vmem %s6, %s295
      %p297 = pneg %p198
      %p298 = pneg %p195
      %p299 = scmp.lt.s32.totalorder %s20, 1
      %s300 = scalar_select %p299, %s20, 1
      %s301 = smul.addr %s300, 2
      %s302 = smul.addr %s301, 8
      %s303 = scalar_lea.vmem %s7, %s302
      %p304 = pneg %p224
      %p305 = pneg %p221
      %p306 = scmp.lt.s32.totalorder %s20, 1
      %s307 = scalar_select %p306, %s20, 1
      %s308 = smul.addr %s307, 2
      %s309 = smul.addr %s308, 8
      %s310 = scalar_lea.vmem %s8, %s309
      %p311 = scmp.lt.s32.totalorder %s20, 1
      %s312 = scalar_select %p311, %s20, 1
      %s313 = smul.addr %s312, 3
      %s314 = smul.addr %s313, 8
      %s315 = scalar_lea.vmem %s0, %s314
      %p316 = scmp.lt.s32.totalorder %s20, 1
      %s317 = scalar_select %p316, %s20, 1
      %s318 = smul.addr %s317, 6
      %s319 = smul.addr %s318, 8
      %s320 = scalar_lea.vmem %s6, %s319
      %p321 = scmp.lt.s32.totalorder %s20, 1
      %s322 = scalar_select %p321, %s20, 1
      %s323 = smul.addr %s322, 2
      %s324 = smul.addr %s323, 8
      %s325 = scalar_lea.vmem %s7, %s324
      %p326 = scmp.lt.s32.totalorder %s20, 1
      %s327 = scalar_select %p326, %s20, 1
      %s328 = smul.addr %s327, 2
      %s329 = smul.addr %s328, 8
      %s330 = scalar_lea.vmem %s8, %s329
      %v331 = vld [vmem:[%s5] sm:$0x7]
      %v332 = vld [vmem:[%s315] sm:$0xff]
      %v333 = vld [vmem:[%s315 + $0x8] sm:$0xff]
      %v334 = vld [vmem:[%s315 + $0x10] sm:$0xff]
      %339 = vrot.lane.b32.xlu0 0.0, 19
      %v340 = vpop.permute.xlu0 %339
      %341 = vrot.lane.b32.xlu0 %v332, 19
      %v342 = vpop.permute.xlu0 %341
      %343 = vrot.lane.b32.xlu0 %v333, 19
      %v344 = vpop.permute.xlu0 %343
      %345 = vrot.lane.b32.xlu0 %v334, 19
      %v346 = vpop.permute.xlu0 %345
      %vm347 = vcmask 154624
      %v348 = vsel %vm347, %v340, %v342
      %v349 = vsel %vm347, %v342, %v344
      %v350 = vsel %vm347, %v344, %v346
      %354 = vst [vmem:[#allocation2] sm:$0xff] %v348
      %355 = vst [vmem:[#allocation2 + $0x8] sm:$0xff] %v349
      %356 = vst [vmem:[#allocation2 + $0x10] sm:$0xff] %v350
      %357 = vrot.lane.b32.xlu0 0.0, 18
      %v358 = vpop.permute.xlu0 %357
      %359 = vrot.lane.b32.xlu0 %v332, 18
      %v360 = vpop.permute.xlu0 %359
      %361 = vrot.lane.b32.xlu0 %v333, 18
      %v362 = vpop.permute.xlu0 %361
      %363 = vrot.lane.b32.xlu0 %v334, 18
      %v364 = vpop.permute.xlu0 %363
      %vm365 = vcmask 146432
      %v366 = vsel %vm365, %v358, %v360
      %v367 = vsel %vm365, %v360, %v362
      %v368 = vsel %vm365, %v362, %v364
      %372 = vst [vmem:[#allocation2 + $0x18] sm:$0xff] %v366
      %373 = vst [vmem:[#allocation2 + $0x20] sm:$0xff] %v367
      %374 = vst [vmem:[#allocation2 + $0x28] sm:$0xff] %v368
      %375 = vrot.lane.b32.xlu0 0.0, 17
      %v376 = vpop.permute.xlu0 %375
      %377 = vrot.lane.b32.xlu0 %v332, 17
      %v378 = vpop.permute.xlu0 %377
      %379 = vrot.lane.b32.xlu0 %v333, 17
      %v380 = vpop.permute.xlu0 %379
      %381 = vrot.lane.b32.xlu0 %v334, 17
      %v382 = vpop.permute.xlu0 %381
      %vm383 = vcmask 138240
      %v384 = vsel %vm383, %v376, %v378
      %v385 = vsel %vm383, %v378, %v380
      %v386 = vsel %vm383, %v380, %v382
      %390 = vst [vmem:[#allocation2 + $0x30] sm:$0xff] %v384
      %391 = vst [vmem:[#allocation2 + $0x38] sm:$0xff] %v385
      %392 = vst [vmem:[#allocation2 + $0x40] sm:$0xff] %v386
      %393 = vrot.lane.b32.xlu0 0.0, 1
      %v394 = vpop.permute.xlu0 %393
      %395 = vrot.lane.b32.xlu0 %v332, 1
      %v396 = vpop.permute.xlu0 %395
      %397 = vrot.lane.b32.xlu0 %v333, 1
      %v398 = vpop.permute.xlu0 %397
      %399 = vrot.lane.b32.xlu0 %v334, 1
      %v400 = vpop.permute.xlu0 %399
      %vm401 = vcmask 7168
      %v402 = vsel %vm401, %v394, %v396
      %v403 = vsel %vm401, %v396, %v398
      %v404 = vsel %vm401, %v398, %v400
      %408 = vst [vmem:[#allocation2 + $0x48] sm:$0xff] %v402
      %409 = vst [vmem:[#allocation2 + $0x50] sm:$0xff] %v403
      %410 = vst [vmem:[#allocation2 + $0x58] sm:$0xff] %v404
      %411 = vst [vmem:[#allocation2 + $0x60] sm:$0xff] %v332
      %412 = vst [vmem:[#allocation2 + $0x68] sm:$0xff] %v333
      %413 = vst [vmem:[#allocation2 + $0x70] sm:$0xff] %v334
      %414 = vrot.lane.b32.xlu0 %v332, 127
      %v415 = vpop.permute.xlu0 %414
      %416 = vrot.lane.b32.xlu0 %v333, 127
      %v417 = vpop.permute.xlu0 %416
      %418 = vrot.lane.b32.xlu0 %v334, 127
      %v419 = vpop.permute.xlu0 %418
      %420 = vrot.lane.b32.xlu0 0.0, 127
      %v421 = vpop.permute.xlu0 %420
      %vm422 = vcmask 1039360
      %v423 = vsel %vm422, %v415, %v417
      %v424 = vsel %vm422, %v417, %v419
      %v425 = vsel %vm422, %v419, %v421
      %429 = vst [vmem:[#allocation2 + $0x78] sm:$0xff] %v423
      %430 = vst [vmem:[#allocation2 + $0x80] sm:$0xff] %v424
      %431 = vst [vmem:[#allocation2 + $0x88] sm:$0xff] %v425
      %432 = vrot.lane.b32.xlu0 %v332, 111
      %v433 = vpop.permute.xlu0 %432
      %434 = vrot.lane.b32.xlu0 %v333, 111
      %v435 = vpop.permute.xlu0 %434
      %436 = vrot.lane.b32.xlu0 %v334, 111
      %v437 = vpop.permute.xlu0 %436
      %438 = vrot.lane.b32.xlu0 0.0, 111
      %v439 = vpop.permute.xlu0 %438
      %vm440 = vcmask 908288
      %v441 = vsel %vm440, %v433, %v435
      %v442 = vsel %vm440, %v435, %v437
      %v443 = vsel %vm440, %v437, %v439
      %447 = vst [vmem:[#allocation2 + $0x90] sm:$0xff] %v441
      %448 = vst [vmem:[#allocation2 + $0x98] sm:$0xff] %v442
      %449 = vst [vmem:[#allocation2 + $0xa0] sm:$0xff] %v443
      %450 = vrot.lane.b32.xlu0 %v332, 110
      %v451 = vpop.permute.xlu0 %450
      %452 = vrot.lane.b32.xlu0 %v333, 110
      %v453 = vpop.permute.xlu0 %452
      %454 = vrot.lane.b32.xlu0 %v334, 110
      %v455 = vpop.permute.xlu0 %454
      %456 = vrot.lane.b32.xlu0 0.0, 110
      %v457 = vpop.permute.xlu0 %456
      %vm458 = vcmask 900096
      %v459 = vsel %vm458, %v451, %v453
      %v460 = vsel %vm458, %v453, %v455
      %v461 = vsel %vm458, %v455, %v457
      %465 = vst [vmem:[#allocation2 + $0xa8] sm:$0xff] %v459
      %466 = vst [vmem:[#allocation2 + $0xb0] sm:$0xff] %v460
      %467 = vst [vmem:[#allocation2 + $0xb8] sm:$0xff] %v461
      %468 = vrot.lane.b32.xlu0 %v332, 109
      %v469 = vpop.permute.xlu0 %468
      %470 = vrot.lane.b32.xlu0 %v333, 109
      %v471 = vpop.permute.xlu0 %470
      %472 = vrot.lane.b32.xlu0 %v334, 109
      %v473 = vpop.permute.xlu0 %472
      %474 = vrot.lane.b32.xlu0 0.0, 109
      %v475 = vpop.permute.xlu0 %474
      %vm476 = vcmask 891904
      %v477 = vsel %vm476, %v469, %v471
      %v478 = vsel %vm476, %v471, %v473
      %v479 = vsel %vm476, %v473, %v475
      %483 = vst [vmem:[#allocation2 + $0xc0] sm:$0xff] %v477
      %484 = vst [vmem:[#allocation2 + $0xc8] sm:$0xff] %v478
      %485 = vst [vmem:[#allocation2 + $0xd0] sm:$0xff] %v479
      %v486 = vld [vmem:[%s3] sm:$0xff]
      %v487 = vld [vmem:[%s3 + $0x8] sm:$0xff]
      %v488 = vld [vmem:[#allocation2] sm:$0xff]
      %v489 = vld [vmem:[#allocation2 + $0x8] sm:$0xff]
      %v490 = vld [vmem:[#allocation2 + $0x10] sm:$0xff]
      %v491 = vld [vmem:[#allocation2 + $0x18] sm:$0xff]
      %v492 = vld [vmem:[#allocation2 + $0x20] sm:$0xff]
      %v493 = vld [vmem:[#allocation2 + $0x28] sm:$0xff]
      %v494 = vld [vmem:[#allocation2 + $0x30] sm:$0xff]
      %v495 = vld [vmem:[#allocation2 + $0x38] sm:$0xff]
      %v496 = vld [vmem:[#allocation2 + $0x40] sm:$0xff]
      %v497 = vld [vmem:[#allocation2 + $0x48] sm:$0xff]
      %v498 = vld [vmem:[#allocation2 + $0x50] sm:$0xff]
      %v499 = vld [vmem:[#allocation2 + $0x58] sm:$0xff]
      %v500 = vld [vmem:[#allocation2 + $0x60] sm:$0xff]
      %v501 = vld [vmem:[#allocation2 + $0x68] sm:$0xff]
      %v502 = vld [vmem:[#allocation2 + $0x70] sm:$0xff]
      %v503 = vld [vmem:[#allocation2 + $0x78] sm:$0xff]
      %v504 = vld [vmem:[#allocation2 + $0x80] sm:$0xff]
      %v505 = vld [vmem:[#allocation2 + $0x88] sm:$0xff]
      %v506 = vld [vmem:[#allocation2 + $0x90] sm:$0xff]
      %v507 = vld [vmem:[#allocation2 + $0x98] sm:$0xff]
      %v508 = vld [vmem:[#allocation2 + $0xa0] sm:$0xff]
      %v509 = vld [vmem:[#allocation2 + $0xa8] sm:$0xff]
      %v510 = vld [vmem:[#allocation2 + $0xb0] sm:$0xff]
      %v511 = vld [vmem:[#allocation2 + $0xb8] sm:$0xff]
      %v512 = vld [vmem:[#allocation2 + $0xc0] sm:$0xff]
      %v513 = vld [vmem:[#allocation2 + $0xc8] sm:$0xff]
      %v514 = vld [vmem:[#allocation2 + $0xd0] sm:$0xff]
      %v515 = vld [vmem:[%s4] sm:$0xff]
      %v516 = vld [vmem:[%s4 + $0x8] sm:$0xff]
      %518 = vset.pattern.permute.xlu0 0
      %519 = vperm.xlu0 %518, %v515
      %v520 = vpop.permute.xlu0 %519
      %523 = vset.pattern.permute.xlu0 0
      %524 = vperm.xlu0 %523, %v516
      %v525 = vpop.permute.xlu0 %524
      %vm527 = vcmask 588800
      %v529 = vsel %vm527, %v486, 0
      %v532 = vsel %vm527, %v487, 0
      %534 = vmatprep.subr.mxu0 %v489
      %535 = vmatpush1.msra.mxu0 %v488
      %536 = vmatprep.subr.mxu0 %v492
      %537 = vmatpush1.msra.mxu0 %v491
      %538 = vmatprep.subr.mxu0 %v495
      %539 = vmatpush1.msra.mxu0 %v494
      %540 = vmatprep.subr.mxu0 %v498
      %541 = vmatpush1.msra.mxu0 %v497
      %542 = vmatprep.subr.mxu0 %v501
      %543 = vmatpush1.msra.mxu0 %v500
      %544 = vmatprep.subr.mxu0 %v504
      %545 = vmatpush1.msra.mxu0 %v503
      %546 = vmatprep.subr.mxu0 %v507
      %547 = vmatpush1.msra.mxu0 %v506
      %548 = vmatprep.subr.mxu0 %v510
      %549 = vmatpush1.msra.mxu0 %v509
      %550 = vmatprep.subr.mxu0 %v513
      %551 = vmatpush1.msra.mxu0 %v512
      %552 = vmatprep.subr.mxu0 0.0
      %553 = vmatpush1.msra.mxu0 0.0
      %554 = vmatprep.subr.mxu0 0.0
      %555 = vmatpush1.msra.mxu0 0.0
      %556 = vmatprep.subr.mxu0 0.0
      %557 = vmatpush1.msra.mxu0 0.0
      %558 = vmatprep.subr.mxu0 0.0
      %559 = vmatpush1.msra.mxu0 0.0
      %560 = vmatprep.subr.mxu0 0.0
      %561 = vmatpush1.msra.mxu0 0.0
      %562 = vmatprep.subr.mxu0 0.0
      %563 = vmatpush1.msra.mxu0 0.0
      %564 = vmatprep.subr.mxu0 0.0
      %565 = vmatpush1.msra.mxu0 0.0
      %566 = vmatprep.subr.mxu0 0.0
      %567 = vmatpush1.msra.mxu0 0.0
      %568 = vmatprep.subr.mxu0 0.0
      %569 = vmatpush1.msra.mxu0 0.0
      %570 = vmatprep.subr.mxu0 0.0
      %571 = vmatpush1.msra.mxu0 0.0
      %572 = vmatprep.subr.mxu0 0.0
      %573 = vmatpush1.msra.mxu0 0.0
      %574 = vmatprep.subr.mxu0 0.0
      %575 = vmatpush1.msra.mxu0 0.0
      %576 = vmatprep.subr.mxu0 0.0
      %577 = vmatpush1.msra.mxu0 0.0
      %578 = vmatprep.subr.mxu0 0.0
      %579 = vmatpush1.msra.mxu0 0.0
      %580 = vmatprep.subr.mxu0 0.0
      %581 = vmatpush1.msra.mxu0 0.0
      %582 = vmatprep.subr.mxu0 0.0
      %583 = vmatpush1.msra.mxu0 0.0
      %584 = vmatprep.subr.mxu0 0.0
      %585 = vmatpush1.msra.mxu0 0.0
      %586 = vmatprep.subr.mxu0 0.0
      %587 = vmatpush1.msra.mxu0 0.0
      %588 = vmatprep.subr.mxu0 0.0
      %589 = vmatpush1.msra.mxu0 0.0
      %590 = vmatprep.subr.mxu0 0.0
      %591 = vmatpush1.msra.mxu0 0.0
      %592 = vmatprep.subr.mxu0 0.0
      %593 = vmatpush1.msra.mxu0 0.0
      %594 = vmatprep.subr.mxu0 0.0
      %595 = vmatpush1.msra.mxu0 0.0
      %596 = vmatprep.subr.mxu0 0.0
      %597 = vmatpush1.msra.mxu0 0.0
      %598 = vmatprep.mubr.f32.mxu0 0.0
      %599 = vmatmul.mubr.f32.gmra.mrb[0].mxu0 %v529
      %v600 = vpop.f32.mrb[0].mxu0
      %v601 = vadd.f32 %v520, %v600
      %v602 = vpop.f32.mrb[0].mxu0
      %v603 = vadd.f32 %v520, %v602
      %604 = vmatprep.mubr.f32.mxu0 0.0
      %605 = vmatmul.mubr.f32.gmra.mrb[0].mxu0 %v532
      %v606 = vpop.f32.mrb[0].mxu0
      %v607 = vadd.f32 %v525, %v606
      %v608 = vpop.f32.mrb[0].mxu0
      %v609 = vadd.f32 %v525, %v608
      %610 = vdwg.mxu0
      %611 = vmatprep.subr.mxu0 0.0
      %612 = vmatpush1.msra.mxu0 %v490
      %613 = vmatprep.subr.mxu0 0.0
      %614 = vmatpush1.msra.mxu0 %v493
      %615 = vmatprep.subr.mxu0 0.0
      %616 = vmatpush1.msra.mxu0 %v496
      %617 = vmatprep.subr.mxu0 0.0
      %618 = vmatpush1.msra.mxu0 %v499
      %619 = vmatprep.subr.mxu0 0.0
      %620 = vmatpush1.msra.mxu0 %v502
      %621 = vmatprep.subr.mxu0 0.0
      %622 = vmatpush1.msra.mxu0 %v505
      %623 = vmatprep.subr.mxu0 0.0
      %624 = vmatpush1.msra.mxu0 %v508
      %625 = vmatprep.subr.mxu0 0.0
      %626 = vmatpush1.msra.mxu0 %v511
      %627 = vmatprep.subr.mxu0 0.0
      %628 = vmatpush1.msra.mxu0 %v514
      %629 = vmatprep.subr.mxu0 0.0
      %630 = vmatpush1.msra.mxu0 0.0
      %631 = vmatprep.subr.mxu0 0.0
      %632 = vmatpush1.msra.mxu0 0.0
      %633 = vmatprep.subr.mxu0 0.0
      %634 = vmatpush1.msra.mxu0 0.0
      %635 = vmatprep.subr.mxu0 0.0
      %636 = vmatpush1.msra.mxu0 0.0
      %637 = vmatprep.subr.mxu0 0.0
      %638 = vmatpush1.msra.mxu0 0.0
      %639 = vmatprep.subr.mxu0 0.0
      %640 = vmatpush1.msra.mxu0 0.0
      %641 = vmatprep.subr.mxu0 0.0
      %642 = vmatpush1.msra.mxu0 0.0
      %643 = vmatprep.subr.mxu0 0.0
      %644 = vmatpush1.msra.mxu0 0.0
      %645 = vmatprep.subr.mxu0 0.0
      %646 = vmatpush1.msra.mxu0 0.0
      %647 = vmatprep.subr.mxu0 0.0
      %648 = vmatpush1.msra.mxu0 0.0
      %649 = vmatprep.subr.mxu0 0.0
      %650 = vmatpush1.msra.mxu0 0.0
      %651 = vmatprep.subr.mxu0 0.0
      %652 = vmatpush1.msra.mxu0 0.0
      %653 = vmatprep.subr.mxu0 0.0
      %654 = vmatpush1.msra.mxu0 0.0
      %655 = vmatprep.subr.mxu0 0.0
      %656 = vmatpush1.msra.mxu0 0.0
      %657 = vmatprep.subr.mxu0 0.0
      %658 = vmatpush1.msra.mxu0 0.0
      %659 = vmatprep.subr.mxu0 0.0
      %660 = vmatpush1.msra.mxu0 0.0
      %661 = vmatprep.subr.mxu0 0.0
      %662 = vmatpush1.msra.mxu0 0.0
      %663 = vmatprep.subr.mxu0 0.0
      %664 = vmatpush1.msra.mxu0 0.0
      %665 = vmatprep.subr.mxu0 0.0
      %666 = vmatpush1.msra.mxu0 0.0
      %667 = vmatprep.subr.mxu0 0.0
      %668 = vmatpush1.msra.mxu0 0.0
      %669 = vmatprep.subr.mxu0 0.0
      %670 = vmatpush1.msra.mxu0 0.0
      %671 = vmatprep.subr.mxu0 0.0
      %672 = vmatpush1.msra.mxu0 0.0
      %673 = vmatprep.subr.mxu0 0.0
      %674 = vmatpush1.msra.mxu0 0.0
      %675 = vmatprep.mubr.f32.mxu0 0.0
      %676 = vmatmul.mubr.f32.gmra.mrb[0].mxu0 %v529
      %v677 = vpop.f32.mrb[0].mxu0
      %v678 = vadd.f32 %v520, %v677
      %v679 = vpop.f32.mrb[0].mxu0
      %680 = vmatprep.mubr.f32.mxu0 0.0
      %681 = vmatmul.mubr.f32.gmra.mrb[0].mxu0 %v532
      %v682 = vpop.f32.mrb[0].mxu0
      %v683 = vadd.f32 %v525, %v682
      %v684 = vpop.f32.mrb[0].mxu0
      %685 = vdwg.mxu0
      %v686 = vmax.f32 %v601, 0.0
      %v687 = vmax.f32 %v603, 0.0
      %v688 = vmax.f32 %v678, 0.0
      %v689 = vmax.f32 %v607, 0.0
      %v690 = vmax.f32 %v609, 0.0
      %v691 = vmax.f32 %v683, 0.0
      %v693 = vlaneseq
      %v694 = vshrl.u32 %v693, 7
      %v695 = vsub.s32 0, %v694
      %v696 = vrot.slane %v331, %v695
      %v697 = vlaneseq
      %v698 = vshrl.u32 %v697, 7
      %v699 = vsub.s32 1, %v698
      %v700 = vrot.slane %v331, %v699
      %v701 = vlaneseq
      %v702 = vshrl.u32 %v701, 7
      %v703 = vsub.s32 2, %v702
      %v704 = vrot.slane %v331, %v703
      %v708 = vmul.f32 %v686, %v696
      %v709 = vmul.f32 %v687, %v700
      %v710 = vmul.f32 %v688, %v704
      %v711 = vmul.f32 %v689, %v696
      %v712 = vmul.f32 %v690, %v700
      %v713 = vmul.f32 %v691, %v704
      %714 = vst [vmem:[%s320] sm:$0xff] %v708
      %715 = vst [vmem:[%s320 + $0x8] sm:$0xff] %v709
      %716 = vst [vmem:[%s320 + $0x10] sm:$0xff] %v710
      %717 = vst [vmem:[%s320 + $0x18] sm:$0xff] %v711
      %718 = vst [vmem:[%s320 + $0x20] sm:$0xff] %v712
      %719 = vst [vmem:[%s320 + $0x28] sm:$0xff] %v713
      %v720 = vadd.f32 %v708, %v709
      %v721 = vadd.f32 %v720, %v710
      %722 = vadd.xlane.f32.xlu0 %v721
      %v723 = vpop.xlane.xlu0 %722
      %v724 = vadd.f32 %v711, %v712
      %v725 = vadd.f32 %v724, %v713
      %726 = vadd.xlane.f32.xlu0 %v725
      %v727 = vpop.xlane.xlu0 %726
      %728 = vst.msk [vmem:[%s325] sm:$0xff] %vm401, %v723
      %729 = vst.msk [vmem:[%s325 + $0x8] sm:$0xff] %vm401, %v727
      %v730 = vmul.f32 %v708, %v708
      %v731 = vmul.f32 %v709, %v709
      %v732 = vmul.f32 %v710, %v710
      %v733 = vmul.f32 %v711, %v711
      %v734 = vmul.f32 %v712, %v712
      %v735 = vmul.f32 %v713, %v713
      %v736 = vadd.f32 %v730, %v731
      %v737 = vadd.f32 %v736, %v732
      %738 = vadd.xlane.f32.xlu0 %v737
      %v739 = vpop.xlane.xlu0 %738
      %v740 = vadd.f32 %v733, %v734
      %v741 = vadd.f32 %v740, %v735
      %742 = vadd.xlane.f32.xlu0 %v741
      %v743 = vpop.xlane.xlu0 %742
      %744 = vst.msk [vmem:[%s330] sm:$0xff] %vm401, %v739
      %745 = vst.msk [vmem:[%s330 + $0x8] sm:$0xff] %vm401, %v743
      %p746 = scmp.lt.s32.totalorder %s20, 1
      %s747 = scalar_select %p746, %s20, 1
      %s748 = smul.addr %s747, 6
      %s749 = smul.addr %s748, 8
      %s750 = scalar_lea.vmem %s6, %s749
      %p751 = scmp.lt.s32.totalorder %s20, 1
      %s752 = scalar_select %p751, %s20, 1
      %s753 = smul.addr %s752, 2
      %s754 = smul.addr %s753, 8
      %s755 = scalar_lea.vmem %s7, %s754
      %p756 = scmp.lt.s32.totalorder %s20, 1
      %s757 = scalar_select %p756, %s20, 1
      %s758 = smul.addr %s757, 2
      %s759 = smul.addr %s758, 8
      %s760 = scalar_lea.vmem %s8, %s759
      // Predicated region
      $region45: #{simple_conv_ae_forward.3} parent=43 // pred_check
        %p761 = pneg %p169
      $region46: #{simple_conv_ae_forward.3} parent=43 // pred_check_branch
        %763 = sbr.rel (%p761) target = $region48
      $region47: #{simple_conv_ae_forward.3} parent=43 // pred_region
        _
      $region48: #{simple_conv_ae_forward.3} parent=43 // pred_fallthru
        _
      // Predicated region
      $region49: #{simple_conv_ae_forward.3} parent=43 // pred_check
        %p764 = pneg %p195
      $region50: #{simple_conv_ae_forward.3} parent=43 // pred_check_branch
        %766 = sbr.rel (%p764) target = $region52
      $region51: #{simple_conv_ae_forward.3} parent=43 // pred_region
        _
      $region52: #{simple_conv_ae_forward.3} parent=43 // pred_fallthru
        _
      // Predicated region
      $region53: #{simple_conv_ae_forward.3} parent=43 // pred_check
        %p767 = pneg %p221
      $region54: #{simple_conv_ae_forward.3} parent=43 // pred_check_branch
        %769 = sbr.rel (%p767) target = $region56
      $region55: #{simple_conv_ae_forward.3} parent=43 // pred_region
        _
      $region56: #{simple_conv_ae_forward.3} parent=43 // pred_fallthru
        _
    $region44: #{simple_conv_ae_forward.3} parent=5 // pred_fallthru
      _
    %p770 = scmp.le.s32.totalorder 2, %s15
    // Predicated region
    $region57: #{simple_conv_ae_forward.3} parent=5 // pred_check
      %p771 = pneg %p770
    $region58: #{simple_conv_ae_forward.3} parent=5 // pred_check_branch
      %773 = sbr.rel (%p771) target = $region60
    $region59: #{simple_conv_ae_forward.3} parent=5 // pred_region
      %s774 = ssub.s32 %s15, 2
      // Predicated region
      $region61: #{simple_conv_ae_forward.3} parent=59 // pred_check
        %p775 = pneg %p175
      $region62: #{simple_conv_ae_forward.3} parent=59 // pred_check_branch
        %777 = sbr.rel (%p775) target = $region64
      $region63: #{simple_conv_ae_forward.3} parent=59 // pred_region
        %p778 = scmp.lt.s32.totalorder %s21, 1
        %s779 = scalar_select %p778, %s21, 1
        %s780 = smul.addr %s779, 6
        %s781 = smul.addr %s780, 8
        %s782 = scalar_lea.vmem %s6, %s781
      $region64: #{simple_conv_ae_forward.3} parent=59 // pred_fallthru
        _
      // Predicated region
      $region65: #{simple_conv_ae_forward.3} parent=59 // pred_check
        %p783 = pneg %p201
      $region66: #{simple_conv_ae_forward.3} parent=59 // pred_check_branch
        %785 = sbr.rel (%p783) target = $region68
      $region67: #{simple_conv_ae_forward.3} parent=59 // pred_region
        %p786 = scmp.lt.s32.totalorder %s21, 1
        %s787 = scalar_select %p786, %s21, 1
        %s788 = smul.addr %s787, 2
        %s789 = smul.addr %s788, 8
        %s790 = scalar_lea.vmem %s7, %s789
      $region68: #{simple_conv_ae_forward.3} parent=59 // pred_fallthru
        _
      // Predicated region
      $region69: #{simple_conv_ae_forward.3} parent=59 // pred_check
        %p791 = pneg %p227
      $region70: #{simple_conv_ae_forward.3} parent=59 // pred_check_branch
        %793 = sbr.rel (%p791) target = $region72
      $region71: #{simple_conv_ae_forward.3} parent=59 // pred_region
        %p794 = scmp.lt.s32.totalorder %s21, 1
        %s795 = scalar_select %p794, %s21, 1
        %s796 = smul.addr %s795, 2
        %s797 = smul.addr %s796, 8
        %s798 = scalar_lea.vmem %s8, %s797
      $region72: #{simple_conv_ae_forward.3} parent=59 // pred_fallthru
        _
    $region60: #{simple_conv_ae_forward.3} parent=5 // pred_fallthru
      _
  $region6: #{simple_conv_ae_forward.3} parent=0 // loop_footer
    %s19 = sadd.s32 1, %s15
  $region7: #{simple_conv_ae_forward.3} parent=0 // loop_footer_branch
    %14 = sbr.rel target = $region3
  $region8: #{simple_conv_ae_forward.3} parent=0 // loop_exit
    _

// kernel: simple_conv_ae_forward.4
$region0: #{simple_conv_ae_forward.4}
  #allocation0 [shape = 'u32[]', space=smem, size = 0x4, offset = 0x4, fixed_abs, tag = 'smem constant byte address 0x4 - core index']
  #allocation1 [shape = 'u32[144,128]{1,0:T(1,128)}', space=vmem, size = 0x12000, scoped, tag = 'internal scratch']
  #allocation2 [shape = 'f32[144,384]{1,0:T(8,128)}', space=vmem, size = 0x36000, scoped, tag = 'scratch operand']
  %s0 = inlined_call_operand.vmem [shape: f32[2,16,384], index: 0, kind: input, shape index: {}]
  %s1 = inlined_call_operand.vmem [shape: f32[16,1], index: 1, kind: input, shape index: {}]
  %s2 = inlined_call_operand.vmem [shape: f32[16,1], index: 2, kind: input, shape index: {}]
  %s3 = inlined_call_operand.vmem [shape: f32[16,144], index: 3, kind: input, shape index: {}]
  %s4 = inlined_call_operand.vmem [shape: f32[16,1], index: 4, kind: input, shape index: {}]
  %s5 = inlined_call_operand.vmem [shape: f32[1,384], index: 5, kind: input, shape index: {}]
  %s6 = inlined_call_operand.vmem [shape: f32[2,16,384], index: 6, kind: output, shape index: {0}]
  %s7 = inlined_call_operand.vmem [shape: f32[2,16,1], index: 7, kind: output, shape index: {1}]
  %s8 = inlined_call_operand.vmem [shape: f32[2,16,1], index: 8, kind: output, shape index: {2}]
  %9 = xla_tuple %s6, %s7, %s8
  %s10 = sld [smem:[#allocation0]]
  $region73: #{simple_conv_ae_forward.4} parent=0
    _
  %s12 = ssub.s32 1, %s10
  %s13 = scalar_select 0, %s12, %s10
  loop: start=0, step=1, limit=4
  $region2: #{simple_conv_ae_forward.4} parent=0 // loop_pre_header
    _
  $region3: #{simple_conv_ae_forward.4} parent=0 // loop_header
    %s15 = sphi 0, %s19
    %p16 = scmp.ge.s32.totalorder %s15, 4
    %s25 = sphi 0, %s27
    %s28 = sphi 0, %s25
    %s29 = sphi 0, %s28
    %s45 = sphi 0, %s29
    %s49 = sphi 0, %s49
    %s51 = sphi 0, %s49
    %s52 = sphi 0, %s51
    %s66 = sphi 0, %s52
    %s70 = sphi 0, %s70
    %s72 = sphi 0, %s70
    %s73 = sphi 0, %s72
    %s87 = sphi 0, %s73
    %s91 = sphi 0, %s91
    %s93 = sphi 0, %s91
    %s94 = sphi 0, %s93
    %s108 = sphi 0, %s94
    %s112 = sphi 0, %s112
    %s114 = sphi 0, %s112
    %s115 = sphi 0, %s114
    %s129 = sphi 0, %s115
    %s133 = sphi 0, %s133
    %s135 = sphi 0, %s133
    %s136 = sphi 0, %s135
    %s150 = sphi 0, %s136
    %s156 = sphi 0, %s158
    %s159 = sphi 0, %s156
    %s160 = sphi 0, %s159
    %s176 = sphi 0, %s160
    %s182 = sphi 0, %s184
    %s185 = sphi 0, %s182
    %s186 = sphi 0, %s185
    %s202 = sphi 0, %s186
    %s208 = sphi 0, %s210
    %s211 = sphi 0, %s208
    %s212 = sphi 0, %s211
    %s228 = sphi 0, %s212
  $region4: #{simple_conv_ae_forward.4} parent=0 // loop_header_branch
    %18 = sbr.rel (%p16) target = $region8
  $region5: #{simple_conv_ae_forward.4} parent=0 // loop_body
    %s20 = ssub.s32 %s15, 1
    %s21 = ssub.s32 %s15, 2
    %s22 = sadd.s32 %s15, 1
    %s23 = ssub.s32 %s15, %s22
    %p24 = scmp.eq.s32.totalorder %s23, 0
    %s26 = sadd.s32 %s25, 1
    %s27 = scalar_select %p24, %s25, %s26
    %p30 = pneg %p24
    %p31 = scmp.eq.s32.totalorder %s15, 1
    %p32 = por %p30, %p31
    %p33 = scmp.ne.s32.totalorder %s25, %s28
    %p34 = scmp.eq.s32.totalorder %s15, 0
    %p35 = por %p33, %p34
    %p36 = scmp.ne.s32.totalorder %s25, %s28
    %p37 = scmp.eq.s32.totalorder %s20, 1
    %p38 = por %p36, %p37
    %p39 = scmp.ne.s32.totalorder %s28, %s29
    %p40 = scmp.eq.s32.totalorder %s20, 0
    %p41 = por %p39, %p40
    %p42 = scmp.ne.s32.totalorder %s28, %s29
    %p43 = scmp.eq.s32.totalorder %s21, 1
    %p44 = por %p42, %p43
    %p46 = scmp.ne.s32.totalorder %s29, %s45
    %p47 = scmp.eq.s32.totalorder %s21, 0
    %p48 = por %p46, %p47
    %s50 = sadd.s32 %s49, 1
    %p53 = scmp.eq.s32.totalorder %s15, 1
    %p54 = scmp.ne.s32.totalorder %s49, %s51
    %p55 = scmp.eq.s32.totalorder %s15, 0
    %p56 = por %p54, %p55
    %p57 = scmp.ne.s32.totalorder %s49, %s51
    %p58 = scmp.eq.s32.totalorder %s20, 1
    %p59 = por %p57, %p58
    %p60 = scmp.ne.s32.totalorder %s51, %s52
    %p61 = scmp.eq.s32.totalorder %s20, 0
    %p62 = por %p60, %p61
    %p63 = scmp.ne.s32.totalorder %s51, %s52
    %p64 = scmp.eq.s32.totalorder %s21, 1
    %p65 = por %p63, %p64
    %p67 = scmp.ne.s32.totalorder %s52, %s66
    %p68 = scmp.eq.s32.totalorder %s21, 0
    %p69 = por %p67, %p68
    %s71 = sadd.s32 %s70, 1
    %p74 = scmp.eq.s32.totalorder %s15, 1
    %p75 = scmp.ne.s32.totalorder %s70, %s72
    %p76 = scmp.eq.s32.totalorder %s15, 0
    %p77 = por %p75, %p76
    %p78 = scmp.ne.s32.totalorder %s70, %s72
    %p79 = scmp.eq.s32.totalorder %s20, 1
    %p80 = por %p78, %p79
    %p81 = scmp.ne.s32.totalorder %s72, %s73
    %p82 = scmp.eq.s32.totalorder %s20, 0
    %p83 = por %p81, %p82
    %p84 = scmp.ne.s32.totalorder %s72, %s73
    %p85 = scmp.eq.s32.totalorder %s21, 1
    %p86 = por %p84, %p85
    %p88 = scmp.ne.s32.totalorder %s73, %s87
    %p89 = scmp.eq.s32.totalorder %s21, 0
    %p90 = por %p88, %p89
    %s92 = sadd.s32 %s91, 1
    %p95 = scmp.eq.s32.totalorder %s15, 1
    %p96 = scmp.ne.s32.totalorder %s91, %s93
    %p97 = scmp.eq.s32.totalorder %s15, 0
    %p98 = por %p96, %p97
    %p99 = scmp.ne.s32.totalorder %s91, %s93
    %p100 = scmp.eq.s32.totalorder %s20, 1
    %p101 = por %p99, %p100
    %p102 = scmp.ne.s32.totalorder %s93, %s94
    %p103 = scmp.eq.s32.totalorder %s20, 0
    %p104 = por %p102, %p103
    %p105 = scmp.ne.s32.totalorder %s93, %s94
    %p106 = scmp.eq.s32.totalorder %s21, 1
    %p107 = por %p105, %p106
    %p109 = scmp.ne.s32.totalorder %s94, %s108
    %p110 = scmp.eq.s32.totalorder %s21, 0
    %p111 = por %p109, %p110
    %s113 = sadd.s32 %s112, 1
    %p116 = scmp.eq.s32.totalorder %s15, 1
    %p117 = scmp.ne.s32.totalorder %s112, %s114
    %p118 = scmp.eq.s32.totalorder %s15, 0
    %p119 = por %p117, %p118
    %p120 = scmp.ne.s32.totalorder %s112, %s114
    %p121 = scmp.eq.s32.totalorder %s20, 1
    %p122 = por %p120, %p121
    %p123 = scmp.ne.s32.totalorder %s114, %s115
    %p124 = scmp.eq.s32.totalorder %s20, 0
    %p125 = por %p123, %p124
    %p126 = scmp.ne.s32.totalorder %s114, %s115
    %p127 = scmp.eq.s32.totalorder %s21, 1
    %p128 = por %p126, %p127
    %p130 = scmp.ne.s32.totalorder %s115, %s129
    %p131 = scmp.eq.s32.totalorder %s21, 0
    %p132 = por %p130, %p131
    %s134 = sadd.s32 %s133, 1
    %p137 = scmp.eq.s32.totalorder %s15, 1
    %p138 = scmp.ne.s32.totalorder %s133, %s135
    %p139 = scmp.eq.s32.totalorder %s15, 0
    %p140 = por %p138, %p139
    %p141 = scmp.ne.s32.totalorder %s133, %s135
    %p142 = scmp.eq.s32.totalorder %s20, 1
    %p143 = por %p141, %p142
    %p144 = scmp.ne.s32.totalorder %s135, %s136
    %p145 = scmp.eq.s32.totalorder %s20, 0
    %p146 = por %p144, %p145
    %p147 = scmp.ne.s32.totalorder %s135, %s136
    %p148 = scmp.eq.s32.totalorder %s21, 1
    %p149 = por %p147, %p148
    %p151 = scmp.ne.s32.totalorder %s136, %s150
    %p152 = scmp.eq.s32.totalorder %s21, 0
    %p153 = por %p151, %p152
    %s154 = ssub.s32 %s15, %s22
    %p155 = scmp.eq.s32.totalorder %s154, 0
    %s157 = sadd.s32 %s156, 1
    %s158 = scalar_select %p155, %s156, %s157
    %p161 = pneg %p155
    %p162 = scmp.eq.s32.totalorder %s15, 1
    %p163 = por %p161, %p162
    %p164 = scmp.ne.s32.totalorder %s156, %s159
    %p165 = scmp.eq.s32.totalorder %s15, 0
    %p166 = por %p164, %p165
    %p167 = scmp.ne.s32.totalorder %s156, %s159
    %p168 = scmp.eq.s32.totalorder %s20, 1
    %p169 = por %p167, %p168
    %p170 = scmp.ne.s32.totalorder %s159, %s160
    %p171 = scmp.eq.s32.totalorder %s20, 0
    %p172 = por %p170, %p171
    %p173 = scmp.ne.s32.totalorder %s159, %s160
    %p174 = scmp.eq.s32.totalorder %s21, 1
    %p175 = por %p173, %p174
    %p177 = scmp.ne.s32.totalorder %s160, %s176
    %p178 = scmp.eq.s32.totalorder %s21, 0
    %p179 = por %p177, %p178
    %s180 = ssub.s32 %s15, %s22
    %p181 = scmp.eq.s32.totalorder %s180, 0
    %s183 = sadd.s32 %s182, 1
    %s184 = scalar_select %p181, %s182, %s183
    %p187 = pneg %p181
    %p188 = scmp.eq.s32.totalorder %s15, 1
    %p189 = por %p187, %p188
    %p190 = scmp.ne.s32.totalorder %s182, %s185
    %p191 = scmp.eq.s32.totalorder %s15, 0
    %p192 = por %p190, %p191
    %p193 = scmp.ne.s32.totalorder %s182, %s185
    %p194 = scmp.eq.s32.totalorder %s20, 1
    %p195 = por %p193, %p194
    %p196 = scmp.ne.s32.totalorder %s185, %s186
    %p197 = scmp.eq.s32.totalorder %s20, 0
    %p198 = por %p196, %p197
    %p199 = scmp.ne.s32.totalorder %s185, %s186
    %p200 = scmp.eq.s32.totalorder %s21, 1
    %p201 = por %p199, %p200
    %p203 = scmp.ne.s32.totalorder %s186, %s202
    %p204 = scmp.eq.s32.totalorder %s21, 0
    %p205 = por %p203, %p204
    %s206 = ssub.s32 %s15, %s22
    %p207 = scmp.eq.s32.totalorder %s206, 0
    %s209 = sadd.s32 %s208, 1
    %s210 = scalar_select %p207, %s208, %s209
    %p213 = pneg %p207
    %p214 = scmp.eq.s32.totalorder %s15, 1
    %p215 = por %p213, %p214
    %p216 = scmp.ne.s32.totalorder %s208, %s211
    %p217 = scmp.eq.s32.totalorder %s15, 0
    %p218 = por %p216, %p217
    %p219 = scmp.ne.s32.totalorder %s208, %s211
    %p220 = scmp.eq.s32.totalorder %s20, 1
    %p221 = por %p219, %p220
    %p222 = scmp.ne.s32.totalorder %s211, %s212
    %p223 = scmp.eq.s32.totalorder %s20, 0
    %p224 = por %p222, %p223
    %p225 = scmp.ne.s32.totalorder %s211, %s212
    %p226 = scmp.eq.s32.totalorder %s21, 1
    %p227 = por %p225, %p226
    %p229 = scmp.ne.s32.totalorder %s212, %s228
    %p230 = scmp.eq.s32.totalorder %s21, 0
    %p231 = por %p229, %p230
    %p232 = scmp.le.s32.totalorder 1, %s15
    %p233 = scmp.lt.s32.totalorder %s15, 3
    %p234 = pnand %p232, %p233
    %p235 = pneg %p234
    // Predicated region
    $region9: #{simple_conv_ae_forward.4} parent=5 // pred_check
      _
    $region10: #{simple_conv_ae_forward.4} parent=5 // pred_check_branch
      %237 = sbr.rel (%p234) target = $region12
    $region11: #{simple_conv_ae_forward.4} parent=5 // pred_region
      %s238 = ssub.s32 %s15, 1
      // Predicated region
      $region13: #{simple_conv_ae_forward.4} parent=11 // pred_check
        %p239 = pneg %p62
      $region14: #{simple_conv_ae_forward.4} parent=11 // pred_check_branch
        %241 = sbr.rel (%p239) target = $region16
      $region15: #{simple_conv_ae_forward.4} parent=11 // pred_region
        _
      $region16: #{simple_conv_ae_forward.4} parent=11 // pred_fallthru
        _
      // Predicated region
      $region17: #{simple_conv_ae_forward.4} parent=11 // pred_check
        %p242 = pneg %p83
      $region18: #{simple_conv_ae_forward.4} parent=11 // pred_check_branch
        %244 = sbr.rel (%p242) target = $region20
      $region19: #{simple_conv_ae_forward.4} parent=11 // pred_region
        _
      $region20: #{simple_conv_ae_forward.4} parent=11 // pred_fallthru
        _
      // Predicated region
      $region21: #{simple_conv_ae_forward.4} parent=11 // pred_check
        %p245 = pneg %p104
      $region22: #{simple_conv_ae_forward.4} parent=11 // pred_check_branch
        %247 = sbr.rel (%p245) target = $region24
      $region23: #{simple_conv_ae_forward.4} parent=11 // pred_region
        _
      $region24: #{simple_conv_ae_forward.4} parent=11 // pred_fallthru
        _
      // Predicated region
      $region25: #{simple_conv_ae_forward.4} parent=11 // pred_check
        %p248 = pneg %p125
      $region26: #{simple_conv_ae_forward.4} parent=11 // pred_check_branch
        %250 = sbr.rel (%p248) target = $region28
      $region27: #{simple_conv_ae_forward.4} parent=11 // pred_region
        _
      $region28: #{simple_conv_ae_forward.4} parent=11 // pred_fallthru
        _
      // Predicated region
      $region29: #{simple_conv_ae_forward.4} parent=11 // pred_check
        %p251 = pneg %p146
      $region30: #{simple_conv_ae_forward.4} parent=11 // pred_check_branch
        %253 = sbr.rel (%p251) target = $region32
      $region31: #{simple_conv_ae_forward.4} parent=11 // pred_region
        _
      $region32: #{simple_conv_ae_forward.4} parent=11 // pred_fallthru
        _
    $region12: #{simple_conv_ae_forward.4} parent=5 // pred_fallthru
      _
    %p254 = scmp.lt.s32.totalorder %s15, 2
    // Predicated region
    $region33: #{simple_conv_ae_forward.4} parent=5 // pred_check
      %p255 = pneg %p254
    $region34: #{simple_conv_ae_forward.4} parent=5 // pred_check_branch
      %257 = sbr.rel (%p255) target = $region36
    $region35: #{simple_conv_ae_forward.4} parent=5 // pred_region
      // Predicated region
      $region37: #{simple_conv_ae_forward.4} parent=35 // pred_check
        %p258 = pneg %p35
      $region38: #{simple_conv_ae_forward.4} parent=35 // pred_check_branch
        %260 = sbr.rel (%p258) target = $region40
      $region39: #{simple_conv_ae_forward.4} parent=35 // pred_region
        %p261 = scmp.lt.s32.totalorder %s15, 1
        %s262 = scalar_select %p261, %s15, 1
        %s263 = smul.addr %s262, 6
        %s264 = smul.addr %s263, 8
        %s265 = scalar_lea.vmem %s0, %s264
      $region40: #{simple_conv_ae_forward.4} parent=35 // pred_fallthru
        _
    $region36: #{simple_conv_ae_forward.4} parent=5 // pred_fallthru
      _
    %p266 = scmp.le.s32.totalorder 1, %s15
    %p267 = scmp.lt.s32.totalorder %s15, 3
    %p268 = pnand %p266, %p267
    %p269 = pneg %p268
    // Predicated region
    $region41: #{simple_conv_ae_forward.4} parent=5 // pred_check
      _
    $region42: #{simple_conv_ae_forward.4} parent=5 // pred_check_branch
      %271 = sbr.rel (%p268) target = $region44
    $region43: #{simple_conv_ae_forward.4} parent=5 // pred_region
      %s272 = ssub.s32 %s15, 1
      %p273 = scmp.lt.s32.totalorder %s20, 1
      %s274 = scalar_select %p273, %s20, 1
      %s275 = smul.addr %s274, 6
      %s276 = smul.addr %s275, 8
      %s277 = scalar_lea.vmem %s0, %s276
      %p278 = pneg %p41
      %p279 = pneg %p38
      %p280 = pneg %p62
      %p281 = pneg %p59
      %p282 = pneg %p83
      %p283 = pneg %p80
      %p284 = pneg %p104
      %p285 = pneg %p101
      %p286 = pneg %p125
      %p287 = pneg %p122
      %p288 = pneg %p146
      %p289 = pneg %p143
      %p290 = pneg %p172
      %p291 = pneg %p169
      %p292 = scmp.lt.s32.totalorder %s20, 1
      %s293 = scalar_select %p292, %s20, 1
      %s294 = smul.addr %s293, 6
      %s295 = smul.addr %s294, 8
      %s296 = scalar_lea.vmem %s6, %s295
      %p297 = pneg %p198
      %p298 = pneg %p195
      %p299 = scmp.lt.s32.totalorder %s20, 1
      %s300 = scalar_select %p299, %s20, 1
      %s301 = smul.addr %s300, 2
      %s302 = smul.addr %s301, 8
      %s303 = scalar_lea.vmem %s7, %s302
      %p304 = pneg %p224
      %p305 = pneg %p221
      %p306 = scmp.lt.s32.totalorder %s20, 1
      %s307 = scalar_select %p306, %s20, 1
      %s308 = smul.addr %s307, 2
      %s309 = smul.addr %s308, 8
      %s310 = scalar_lea.vmem %s8, %s309
      %p311 = scmp.lt.s32.totalorder %s20, 1
      %s312 = scalar_select %p311, %s20, 1
      %s313 = smul.addr %s312, 6
      %s314 = smul.addr %s313, 8
      %s315 = scalar_lea.vmem %s0, %s314
      %p316 = scmp.lt.s32.totalorder %s20, 1
      %s317 = scalar_select %p316, %s20, 1
      %s318 = smul.addr %s317, 6
      %s319 = smul.addr %s318, 8
      %s320 = scalar_lea.vmem %s6, %s319
      %p321 = scmp.lt.s32.totalorder %s20, 1
      %s322 = scalar_select %p321, %s20, 1
      %s323 = smul.addr %s322, 2
      %s324 = smul.addr %s323, 8
      %s325 = scalar_lea.vmem %s7, %s324
      %p326 = scmp.lt.s32.totalorder %s20, 1
      %s327 = scalar_select %p326, %s20, 1
      %s328 = smul.addr %s327, 2
      %s329 = smul.addr %s328, 8
      %s330 = scalar_lea.vmem %s8, %s329
      %v331 = vld [vmem:[%s5] sm:$0x7]
      %v332 = vld [vmem:[%s315] sm:$0xff]
      %v333 = vld [vmem:[%s315 + $0x8] sm:$0xff]
      %v334 = vld [vmem:[%s315 + $0x10] sm:$0xff]
      %v335 = vld [vmem:[%s315 + $0x18] sm:$0xff]
      %v336 = vld [vmem:[%s315 + $0x20] sm:$0xff]
      %v337 = vld [vmem:[%s315 + $0x28] sm:$0xff]
      %v338 = vld [vmem:[%s1] sm:$0xff]
      %v339 = vld [vmem:[%s1 + $0x8] sm:$0xff]
      %341 = vset.pattern.permute.xlu0 0
      %342 = vperm.xlu0 %341, %v338
      %v343 = vpop.permute.xlu0 %342
      %346 = vset.pattern.permute.xlu0 0
      %347 = vperm.xlu0 %346, %v339
      %v348 = vpop.permute.xlu0 %347
      %v350 = vmul.f32 %v332, %v343
      %v351 = vmul.f32 %v333, %v343
      %v352 = vmul.f32 %v334, %v343
      %v353 = vmul.f32 %v335, %v348
      %v354 = vmul.f32 %v336, %v348
      %v355 = vmul.f32 %v337, %v348
      %v356 = vld [vmem:[%s2] sm:$0xff]
      %v357 = vld [vmem:[%s2 + $0x8] sm:$0xff]
      %359 = vset.pattern.permute.xlu0 0
      %360 = vperm.xlu0 %359, %v356
      %v361 = vpop.permute.xlu0 %360
      %364 = vset.pattern.permute.xlu0 0
      %365 = vperm.xlu0 %364, %v357
      %v366 = vpop.permute.xlu0 %365
      %v368 = vadd.f32 %v350, %v361
      %v369 = vadd.f32 %v351, %v361
      %v370 = vadd.f32 %v352, %v361
      %v371 = vadd.f32 %v353, %v366
      %v372 = vadd.f32 %v354, %v366
      %v373 = vadd.f32 %v355, %v366
      %v375 = vlaneseq
      %v376 = vshrl.u32 %v375, 7
      %v377 = vsub.s32 0, %v376
      %v378 = vrot.slane %v331, %v377
      %v379 = vlaneseq
      %v380 = vshrl.u32 %v379, 7
      %v381 = vsub.s32 1, %v380
      %v382 = vrot.slane %v331, %v381
      %v383 = vlaneseq
      %v384 = vshrl.u32 %v383, 7
      %v385 = vsub.s32 2, %v384
      %v386 = vrot.slane %v331, %v385
      %v390 = vmul.f32 %v368, %v378
      %v391 = vmul.f32 %v369, %v382
      %v392 = vmul.f32 %v370, %v386
      %v393 = vmul.f32 %v371, %v378
      %v394 = vmul.f32 %v372, %v382
      %v395 = vmul.f32 %v373, %v386
      %403 = vrot.lane.b32.xlu0 0.0, 19
      %v404 = vpop.permute.xlu0 %403
      %405 = vrot.lane.b32.xlu0 %v390, 19
      %v406 = vpop.permute.xlu0 %405
      %407 = vrot.lane.b32.xlu0 %v391, 19
      %v408 = vpop.permute.xlu0 %407
      %409 = vrot.lane.b32.xlu0 %v392, 19
      %v410 = vpop.permute.xlu0 %409
      %411 = vrot.lane.b32.xlu0 %v393, 19
      %v412 = vpop.permute.xlu0 %411
      %413 = vrot.lane.b32.xlu0 %v394, 19
      %v414 = vpop.permute.xlu0 %413
      %415 = vrot.lane.b32.xlu0 %v395, 19
      %v416 = vpop.permute.xlu0 %415
      %vm417 = vcmask 154624
      %v418 = vsel %vm417, %v404, %v406
      %v419 = vsel %vm417, %v406, %v408
      %v420 = vsel %vm417, %v408, %v410
      %v421 = vsel %vm417, %v404, %v412
      %v422 = vsel %vm417, %v412, %v414
      %v423 = vsel %vm417, %v414, %v416
      %430 = vst [vmem:[#allocation2] sm:$0xff] %v418
      %431 = vst [vmem:[#allocation2 + $0x8] sm:$0xff] %v419
      %432 = vst [vmem:[#allocation2 + $0x10] sm:$0xff] %v420
      %433 = vst [vmem:[#allocation2 + $0x18] sm:$0xff] %v421
      %434 = vst [vmem:[#allocation2 + $0x20] sm:$0xff] %v422
      %435 = vst [vmem:[#allocation2 + $0x28] sm:$0xff] %v423
      %436 = vrot.lane.b32.xlu0 0.0, 18
      %v437 = vpop.permute.xlu0 %436
      %438 = vrot.lane.b32.xlu0 %v390, 18
      %v439 = vpop.permute.xlu0 %438
      %440 = vrot.lane.b32.xlu0 %v391, 18
      %v441 = vpop.permute.xlu0 %440
      %442 = vrot.lane.b32.xlu0 %v392, 18
      %v443 = vpop.permute.xlu0 %442
      %444 = vrot.lane.b32.xlu0 %v393, 18
      %v445 = vpop.permute.xlu0 %444
      %446 = vrot.lane.b32.xlu0 %v394, 18
      %v447 = vpop.permute.xlu0 %446
      %448 = vrot.lane.b32.xlu0 %v395, 18
      %v449 = vpop.permute.xlu0 %448
      %vm450 = vcmask 146432
      %v451 = vsel %vm450, %v437, %v439
      %v452 = vsel %vm450, %v439, %v441
      %v453 = vsel %vm450, %v441, %v443
      %v454 = vsel %vm450, %v437, %v445
      %v455 = vsel %vm450, %v445, %v447
      %v456 = vsel %vm450, %v447, %v449
      %463 = vst [vmem:[#allocation2 + $0x30] sm:$0xff] %v451
      %464 = vst [vmem:[#allocation2 + $0x38] sm:$0xff] %v452
      %465 = vst [vmem:[#allocation2 + $0x40] sm:$0xff] %v453
      %466 = vst [vmem:[#allocation2 + $0x48] sm:$0xff] %v454
      %467 = vst [vmem:[#allocation2 + $0x50] sm:$0xff] %v455
      %468 = vst [vmem:[#allocation2 + $0x58] sm:$0xff] %v456
      %469 = vrot.lane.b32.xlu0 0.0, 17
      %v470 = vpop.permute.xlu0 %469
      %471 = vrot.lane.b32.xlu0 %v390, 17
      %v472 = vpop.permute.xlu0 %471
      %473 = vrot.lane.b32.xlu0 %v391, 17
      %v474 = vpop.permute.xlu0 %473
      %475 = vrot.lane.b32.xlu0 %v392, 17
      %v476 = vpop.permute.xlu0 %475
      %477 = vrot.lane.b32.xlu0 %v393, 17
      %v478 = vpop.permute.xlu0 %477
      %479 = vrot.lane.b32.xlu0 %v394, 17
      %v480 = vpop.permute.xlu0 %479
      %481 = vrot.lane.b32.xlu0 %v395, 17
      %v482 = vpop.permute.xlu0 %481
      %vm483 = vcmask 138240
      %v484 = vsel %vm483, %v470, %v472
      %v485 = vsel %vm483, %v472, %v474
      %v486 = vsel %vm483, %v474, %v476
      %v487 = vsel %vm483, %v470, %v478
      %v488 = vsel %vm483, %v478, %v480
      %v489 = vsel %vm483, %v480, %v482
      %496 = vst [vmem:[#allocation2 + $0x60] sm:$0xff] %v484
      %497 = vst [vmem:[#allocation2 + $0x68] sm:$0xff] %v485
      %498 = vst [vmem:[#allocation2 + $0x70] sm:$0xff] %v486
      %499 = vst [vmem:[#allocation2 + $0x78] sm:$0xff] %v487
      %500 = vst [vmem:[#allocation2 + $0x80] sm:$0xff] %v488
      %501 = vst [vmem:[#allocation2 + $0x88] sm:$0xff] %v489
      %502 = vrot.lane.b32.xlu0 0.0, 1
      %v503 = vpop.permute.xlu0 %502
      %504 = vrot.lane.b32.xlu0 %v390, 1
      %v505 = vpop.permute.xlu0 %504
      %506 = vrot.lane.b32.xlu0 %v391, 1
      %v507 = vpop.permute.xlu0 %506
      %508 = vrot.lane.b32.xlu0 %v392, 1
      %v509 = vpop.permute.xlu0 %508
      %510 = vrot.lane.b32.xlu0 %v393, 1
      %v511 = vpop.permute.xlu0 %510
      %512 = vrot.lane.b32.xlu0 %v394, 1
      %v513 = vpop.permute.xlu0 %512
      %514 = vrot.lane.b32.xlu0 %v395, 1
      %v515 = vpop.permute.xlu0 %514
      %vm516 = vcmask 7168
      %v517 = vsel %vm516, %v503, %v505
      %v518 = vsel %vm516, %v505, %v507
      %v519 = vsel %vm516, %v507, %v509
      %v520 = vsel %vm516, %v503, %v511
      %v521 = vsel %vm516, %v511, %v513
      %v522 = vsel %vm516, %v513, %v515
      %529 = vst [vmem:[#allocation2 + $0x90] sm:$0xff] %v517
      %530 = vst [vmem:[#allocation2 + $0x98] sm:$0xff] %v518
      %531 = vst [vmem:[#allocation2 + $0xa0] sm:$0xff] %v519
      %532 = vst [vmem:[#allocation2 + $0xa8] sm:$0xff] %v520
      %533 = vst [vmem:[#allocation2 + $0xb0] sm:$0xff] %v521
      %534 = vst [vmem:[#allocation2 + $0xb8] sm:$0xff] %v522
      %535 = vst [vmem:[#allocation2 + $0xc0] sm:$0xff] %v390
      %536 = vst [vmem:[#allocation2 + $0xc8] sm:$0xff] %v391
      %537 = vst [vmem:[#allocation2 + $0xd0] sm:$0xff] %v392
      %538 = vst [vmem:[#allocation2 + $0xd8] sm:$0xff] %v393
      %539 = vst [vmem:[#allocation2 + $0xe0] sm:$0xff] %v394
      %540 = vst [vmem:[#allocation2 + $0xe8] sm:$0xff] %v395
      %541 = vrot.lane.b32.xlu0 %v390, 127
      %v542 = vpop.permute.xlu0 %541
      %543 = vrot.lane.b32.xlu0 %v391, 127
      %v544 = vpop.permute.xlu0 %543
      %545 = vrot.lane.b32.xlu0 %v392, 127
      %v546 = vpop.permute.xlu0 %545
      %547 = vrot.lane.b32.xlu0 0.0, 127
      %v548 = vpop.permute.xlu0 %547
      %549 = vrot.lane.b32.xlu0 %v393, 127
      %v550 = vpop.permute.xlu0 %549
      %551 = vrot.lane.b32.xlu0 %v394, 127
      %v552 = vpop.permute.xlu0 %551
      %553 = vrot.lane.b32.xlu0 %v395, 127
      %v554 = vpop.permute.xlu0 %553
      %vm555 = vcmask 1039360
      %v556 = vsel %vm555, %v542, %v544
      %v557 = vsel %vm555, %v544, %v546
      %v558 = vsel %vm555, %v546, %v548
      %v559 = vsel %vm555, %v550, %v552
      %v560 = vsel %vm555, %v552, %v554
      %v561 = vsel %vm555, %v554, %v548
      %568 = vst [vmem:[#allocation2 + $0xf0] sm:$0xff] %v556
      %569 = vst [vmem:[#allocation2 + $0xf8] sm:$0xff] %v557
      %570 = vst [vmem:[#allocation2 + $0x100] sm:$0xff] %v558
      %571 = vst [vmem:[#allocation2 + $0x108] sm:$0xff] %v559
      %572 = vst [vmem:[#allocation2 + $0x110] sm:$0xff] %v560
      %573 = vst [vmem:[#allocation2 + $0x118] sm:$0xff] %v561
      %574 = vrot.lane.b32.xlu0 %v390, 111
      %v575 = vpop.permute.xlu0 %574
      %576 = vrot.lane.b32.xlu0 %v391, 111
      %v577 = vpop.permute.xlu0 %576
      %578 = vrot.lane.b32.xlu0 %v392, 111
      %v579 = vpop.permute.xlu0 %578
      %580 = vrot.lane.b32.xlu0 0.0, 111
      %v581 = vpop.permute.xlu0 %580
      %582 = vrot.lane.b32.xlu0 %v393, 111
      %v583 = vpop.permute.xlu0 %582
      %584 = vrot.lane.b32.xlu0 %v394, 111
      %v585 = vpop.permute.xlu0 %584
      %586 = vrot.lane.b32.xlu0 %v395, 111
      %v587 = vpop.permute.xlu0 %586
      %vm588 = vcmask 908288
      %v589 = vsel %vm588, %v575, %v577
      %v590 = vsel %vm588, %v577, %v579
      %v591 = vsel %vm588, %v579, %v581
      %v592 = vsel %vm588, %v583, %v585
      %v593 = vsel %vm588, %v585, %v587
      %v594 = vsel %vm588, %v587, %v581
      %601 = vst [vmem:[#allocation2 + $0x120] sm:$0xff] %v589
      %602 = vst [vmem:[#allocation2 + $0x128] sm:$0xff] %v590
      %603 = vst [vmem:[#allocation2 + $0x130] sm:$0xff] %v591
      %604 = vst [vmem:[#allocation2 + $0x138] sm:$0xff] %v592
      %605 = vst [vmem:[#allocation2 + $0x140] sm:$0xff] %v593
      %606 = vst [vmem:[#allocation2 + $0x148] sm:$0xff] %v594
      %607 = vrot.lane.b32.xlu0 %v390, 110
      %v608 = vpop.permute.xlu0 %607
      %609 = vrot.lane.b32.xlu0 %v391, 110
      %v610 = vpop.permute.xlu0 %609
      %611 = vrot.lane.b32.xlu0 %v392, 110
      %v612 = vpop.permute.xlu0 %611
      %613 = vrot.lane.b32.xlu0 0.0, 110
      %v614 = vpop.permute.xlu0 %613
      %615 = vrot.lane.b32.xlu0 %v393, 110
      %v616 = vpop.permute.xlu0 %615
      %617 = vrot.lane.b32.xlu0 %v394, 110
      %v618 = vpop.permute.xlu0 %617
      %619 = vrot.lane.b32.xlu0 %v395, 110
      %v620 = vpop.permute.xlu0 %619
      %vm621 = vcmask 900096
      %v622 = vsel %vm621, %v608, %v610
      %v623 = vsel %vm621, %v610, %v612
      %v624 = vsel %vm621, %v612, %v614
      %v625 = vsel %vm621, %v616, %v618
      %v626 = vsel %vm621, %v618, %v620
      %v627 = vsel %vm621, %v620, %v614
      %634 = vst [vmem:[#allocation2 + $0x150] sm:$0xff] %v622
      %635 = vst [vmem:[#allocation2 + $0x158] sm:$0xff] %v623
      %636 = vst [vmem:[#allocation2 + $0x160] sm:$0xff] %v624
      %637 = vst [vmem:[#allocation2 + $0x168] sm:$0xff] %v625
      %638 = vst [vmem:[#allocation2 + $0x170] sm:$0xff] %v626
      %639 = vst [vmem:[#allocation2 + $0x178] sm:$0xff] %v627
      %640 = vrot.lane.b32.xlu0 %v390, 109
      %v641 = vpop.permute.xlu0 %640
      %642 = vrot.lane.b32.xlu0 %v391, 109
      %v643 = vpop.permute.xlu0 %642
      %644 = vrot.lane.b32.xlu0 %v392, 109
      %v645 = vpop.permute.xlu0 %644
      %646 = vrot.lane.b32.xlu0 0.0, 109
      %v647 = vpop.permute.xlu0 %646
      %648 = vrot.lane.b32.xlu0 %v393, 109
      %v649 = vpop.permute.xlu0 %648
      %650 = vrot.lane.b32.xlu0 %v394, 109
      %v651 = vpop.permute.xlu0 %650
      %652 = vrot.lane.b32.xlu0 %v395, 109
      %v653 = vpop.permute.xlu0 %652
      %vm654 = vcmask 891904
      %v655 = vsel %vm654, %v641, %v643
      %v656 = vsel %vm654, %v643, %v645
      %v657 = vsel %vm654, %v645, %v647
      %v658 = vsel %vm654, %v649, %v651
      %v659 = vsel %vm654, %v651, %v653
      %v660 = vsel %vm654, %v653, %v647
      %667 = vst [vmem:[#allocation2 + $0x180] sm:$0xff] %v655
      %668 = vst [vmem:[#allocation2 + $0x188] sm:$0xff] %v656
      %669 = vst [vmem:[#allocation2 + $0x190] sm:$0xff] %v657
      %670 = vst [vmem:[#allocation2 + $0x198] sm:$0xff] %v658
      %671 = vst [vmem:[#allocation2 + $0x1a0] sm:$0xff] %v659
      %672 = vst [vmem:[#allocation2 + $0x1a8] sm:$0xff] %v660
      %v673 = vld [vmem:[%s3] sm:$0xff]
      %v674 = vld [vmem:[%s3 + $0x8] sm:$0xff]
      %v675 = vld [vmem:[%s3 + $0x10] sm:$0xff]
      %v676 = vld [vmem:[%s3 + $0x18] sm:$0xff]
      %v677 = vld [vmem:[#allocation2] sm:$0xff]
      %v678 = vld [vmem:[#allocation2 + $0x8] sm:$0xff]
      %v679 = vld [vmem:[#allocation2 + $0x10] sm:$0xff]
      %v680 = vld [vmem:[#allocation2 + $0x18] sm:$0xff]
      %v681 = vld [vmem:[#allocation2 + $0x20] sm:$0xff]
      %v682 = vld [vmem:[#allocation2 + $0x28] sm:$0xff]
      %v683 = vld [vmem:[#allocation2 + $0x30] sm:$0xff]
      %v684 = vld [vmem:[#allocation2 + $0x38] sm:$0xff]
      %v685 = vld [vmem:[#allocation2 + $0x40] sm:$0xff]
      %v686 = vld [vmem:[#allocation2 + $0x48] sm:$0xff]
      %v687 = vld [vmem:[#allocation2 + $0x50] sm:$0xff]
      %v688 = vld [vmem:[#allocation2 + $0x58] sm:$0xff]
      %v689 = vld [vmem:[#allocation2 + $0x60] sm:$0xff]
      %v690 = vld [vmem:[#allocation2 + $0x68] sm:$0xff]
      %v691 = vld [vmem:[#allocation2 + $0x70] sm:$0xff]
      %v692 = vld [vmem:[#allocation2 + $0x78] sm:$0xff]
      %v693 = vld [vmem:[#allocation2 + $0x80] sm:$0xff]
      %v694 = vld [vmem:[#allocation2 + $0x88] sm:$0xff]
      %v695 = vld [vmem:[#allocation2 + $0x90] sm:$0xff]
      %v696 = vld [vmem:[#allocation2 + $0x98] sm:$0xff]
      %v697 = vld [vmem:[#allocation2 + $0xa0] sm:$0xff]
      %v698 = vld [vmem:[#allocation2 + $0xa8] sm:$0xff]
      %v699 = vld [vmem:[#allocation2 + $0xb0] sm:$0xff]
      %v700 = vld [vmem:[#allocation2 + $0xb8] sm:$0xff]
      %v701 = vld [vmem:[#allocation2 + $0xc0] sm:$0xff]
      %v702 = vld [vmem:[#allocation2 + $0xc8] sm:$0xff]
      %v703 = vld [vmem:[#allocation2 + $0xd0] sm:$0xff]
      %v704 = vld [vmem:[#allocation2 + $0xd8] sm:$0xff]
      %v705 = vld [vmem:[#allocation2 + $0xe0] sm:$0xff]
      %v706 = vld [vmem:[#allocation2 + $0xe8] sm:$0xff]
      %v707 = vld [vmem:[#allocation2 + $0xf0] sm:$0xff]
      %v708 = vld [vmem:[#allocation2 + $0xf8] sm:$0xff]
      %v709 = vld [vmem:[#allocation2 + $0x100] sm:$0xff]
      %v710 = vld [vmem:[#allocation2 + $0x108] sm:$0xff]
      %v711 = vld [vmem:[#allocation2 + $0x110] sm:$0xff]
      %v712 = vld [vmem:[#allocation2 + $0x118] sm:$0xff]
      %v713 = vld [vmem:[#allocation2 + $0x120] sm:$0xff]
      %v714 = vld [vmem:[#allocation2 + $0x128] sm:$0xff]
      %v715 = vld [vmem:[#allocation2 + $0x130] sm:$0xff]
      %v716 = vld [vmem:[#allocation2 + $0x138] sm:$0xff]
      %v717 = vld [vmem:[#allocation2 + $0x140] sm:$0xff]
      %v718 = vld [vmem:[#allocation2 + $0x148] sm:$0xff]
      %v719 = vld [vmem:[#allocation2 + $0x150] sm:$0xff]
      %v720 = vld [vmem:[#allocation2 + $0x158] sm:$0xff]
      %v721 = vld [vmem:[#allocation2 + $0x160] sm:$0xff]
      %v722 = vld [vmem:[#allocation2 + $0x168] sm:$0xff]
      %v723 = vld [vmem:[#allocation2 + $0x170] sm:$0xff]
      %v724 = vld [vmem:[#allocation2 + $0x178] sm:$0xff]
      %v725 = vld [vmem:[#allocation2 + $0x180] sm:$0xff]
      %v726 = vld [vmem:[#allocation2 + $0x188] sm:$0xff]
      %v727 = vld [vmem:[#allocation2 + $0x190] sm:$0xff]
      %v728 = vld [vmem:[#allocation2 + $0x198] sm:$0xff]
      %v729 = vld [vmem:[#allocation2 + $0x1a0] sm:$0xff]
      %v730 = vld [vmem:[#allocation2 + $0x1a8] sm:$0xff]
      %v731 = vld [vmem:[%s4] sm:$0xff]
      %v732 = vld [vmem:[%s4 + $0x8] sm:$0xff]
      %734 = vset.pattern.permute.xlu0 0
      %735 = vperm.xlu0 %734, %v731
      %v736 = vpop.permute.xlu0 %735
      %739 = vset.pattern.permute.xlu0 0
      %740 = vperm.xlu0 %739, %v732
      %v741 = vpop.permute.xlu0 %740
      %vm743 = vcmask 130048
      %v745 = vsel %vm743, %v674, 0
      %v748 = vsel %vm743, %v676, 0
      %750 = vmatprep.subr.mxu0 %v678
      %751 = vmatpush1.msra.mxu0 %v677
      %752 = vmatprep.subr.mxu0 %v681
      %753 = vmatpush1.msra.mxu0 %v680
      %754 = vmatprep.subr.mxu0 %v684
      %755 = vmatpush1.msra.mxu0 %v683
      %756 = vmatprep.subr.mxu0 %v687
      %757 = vmatpush1.msra.mxu0 %v686
      %758 = vmatprep.subr.mxu0 %v690
      %759 = vmatpush1.msra.mxu0 %v689
      %760 = vmatprep.subr.mxu0 %v693
      %761 = vmatpush1.msra.mxu0 %v692
      %762 = vmatprep.subr.mxu0 %v696
      %763 = vmatpush1.msra.mxu0 %v695
      %764 = vmatprep.subr.mxu0 %v699
      %765 = vmatpush1.msra.mxu0 %v698
      %766 = vmatprep.subr.mxu0 %v702
      %767 = vmatpush1.msra.mxu0 %v701
      %768 = vmatprep.subr.mxu0 %v705
      %769 = vmatpush1.msra.mxu0 %v704
      %770 = vmatprep.subr.mxu0 %v708
      %771 = vmatpush1.msra.mxu0 %v707
      %772 = vmatprep.subr.mxu0 %v711
      %773 = vmatpush1.msra.mxu0 %v710
      %774 = vmatprep.subr.mxu0 %v714
      %775 = vmatpush1.msra.mxu0 %v713
      %776 = vmatprep.subr.mxu0 %v717
      %777 = vmatpush1.msra.mxu0 %v716
      %778 = vmatprep.subr.mxu0 %v720
      %779 = vmatpush1.msra.mxu0 %v719
      %780 = vmatprep.subr.mxu0 %v723
      %781 = vmatpush1.msra.mxu0 %v722
      %782 = vmatprep.subr.mxu0 %v726
      %783 = vmatpush1.msra.mxu0 %v725
      %784 = vmatprep.subr.mxu0 %v729
      %785 = vmatpush1.msra.mxu0 %v728
      %786 = vmatprep.subr.mxu0 0.0
      %787 = vmatpush1.msra.mxu0 0.0
      %788 = vmatprep.subr.mxu0 0.0
      %789 = vmatpush1.msra.mxu0 0.0
      %790 = vmatprep.subr.mxu0 0.0
      %791 = vmatpush1.msra.mxu0 0.0
      %792 = vmatprep.subr.mxu0 0.0
      %793 = vmatpush1.msra.mxu0 0.0
      %794 = vmatprep.subr.mxu0 0.0
      %795 = vmatpush1.msra.mxu0 0.0
      %796 = vmatprep.subr.mxu0 0.0
      %797 = vmatpush1.msra.mxu0 0.0
      %798 = vmatprep.subr.mxu0 0.0
      %799 = vmatpush1.msra.mxu0 0.0
      %800 = vmatprep.subr.mxu0 0.0
      %801 = vmatpush1.msra.mxu0 0.0
      %802 = vmatprep.subr.mxu0 0.0
      %803 = vmatpush1.msra.mxu0 0.0
      %804 = vmatprep.subr.mxu0 0.0
      %805 = vmatpush1.msra.mxu0 0.0
      %806 = vmatprep.subr.mxu0 0.0
      %807 = vmatpush1.msra.mxu0 0.0
      %808 = vmatprep.subr.mxu0 0.0
      %809 = vmatpush1.msra.mxu0 0.0
      %810 = vmatprep.subr.mxu0 0.0
      %811 = vmatpush1.msra.mxu0 0.0
      %812 = vmatprep.subr.mxu0 0.0
      %813 = vmatpush1.msra.mxu0 0.0
      %814 = vmatprep.mubr.f32.mxu0 %v745
      %815 = vmatmul.mubr.f32.gmra.mrb[0].mxu0 %v673
      %v816 = vpop.f32.mrb[0].mxu0
      %v817 = vadd.f32 %v736, %v816
      %v818 = vpop.f32.mrb[0].mxu0
      %v819 = vadd.f32 %v736, %v818
      %820 = vmatprep.mubr.f32.mxu0 %v748
      %821 = vmatmul.mubr.f32.gmra.mrb[0].mxu0 %v675
      %v822 = vpop.f32.mrb[0].mxu0
      %v823 = vadd.f32 %v741, %v822
      %v824 = vpop.f32.mrb[0].mxu0
      %v825 = vadd.f32 %v741, %v824
      %826 = vdwg.mxu0
      %827 = vmatprep.subr.mxu0 0.0
      %828 = vmatpush1.msra.mxu0 %v679
      %829 = vmatprep.subr.mxu0 0.0
      %830 = vmatpush1.msra.mxu0 %v682
      %831 = vmatprep.subr.mxu0 0.0
      %832 = vmatpush1.msra.mxu0 %v685
      %833 = vmatprep.subr.mxu0 0.0
      %834 = vmatpush1.msra.mxu0 %v688
      %835 = vmatprep.subr.mxu0 0.0
      %836 = vmatpush1.msra.mxu0 %v691
      %837 = vmatprep.subr.mxu0 0.0
      %838 = vmatpush1.msra.mxu0 %v694
      %839 = vmatprep.subr.mxu0 0.0
      %840 = vmatpush1.msra.mxu0 %v697
      %841 = vmatprep.subr.mxu0 0.0
      %842 = vmatpush1.msra.mxu0 %v700
      %843 = vmatprep.subr.mxu0 0.0
      %844 = vmatpush1.msra.mxu0 %v703
      %845 = vmatprep.subr.mxu0 0.0
      %846 = vmatpush1.msra.mxu0 %v706
      %847 = vmatprep.subr.mxu0 0.0
      %848 = vmatpush1.msra.mxu0 %v709
      %849 = vmatprep.subr.mxu0 0.0
      %850 = vmatpush1.msra.mxu0 %v712
      %851 = vmatprep.subr.mxu0 0.0
      %852 = vmatpush1.msra.mxu0 %v715
      %853 = vmatprep.subr.mxu0 0.0
      %854 = vmatpush1.msra.mxu0 %v718
      %855 = vmatprep.subr.mxu0 0.0
      %856 = vmatpush1.msra.mxu0 %v721
      %857 = vmatprep.subr.mxu0 0.0
      %858 = vmatpush1.msra.mxu0 %v724
      %859 = vmatprep.subr.mxu0 0.0
      %860 = vmatpush1.msra.mxu0 %v727
      %861 = vmatprep.subr.mxu0 0.0
      %862 = vmatpush1.msra.mxu0 %v730
      %863 = vmatprep.subr.mxu0 0.0
      %864 = vmatpush1.msra.mxu0 0.0
      %865 = vmatprep.subr.mxu0 0.0
      %866 = vmatpush1.msra.mxu0 0.0
      %867 = vmatprep.subr.mxu0 0.0
      %868 = vmatpush1.msra.mxu0 0.0
      %869 = vmatprep.subr.mxu0 0.0
      %870 = vmatpush1.msra.mxu0 0.0
      %871 = vmatprep.subr.mxu0 0.0
      %872 = vmatpush1.msra.mxu0 0.0
      %873 = vmatprep.subr.mxu0 0.0
      %874 = vmatpush1.msra.mxu0 0.0
      %875 = vmatprep.subr.mxu0 0.0
      %876 = vmatpush1.msra.mxu0 0.0
      %877 = vmatprep.subr.mxu0 0.0
      %878 = vmatpush1.msra.mxu0 0.0
      %879 = vmatprep.subr.mxu0 0.0
      %880 = vmatpush1.msra.mxu0 0.0
      %881 = vmatprep.subr.mxu0 0.0
      %882 = vmatpush1.msra.mxu0 0.0
      %883 = vmatprep.subr.mxu0 0.0
      %884 = vmatpush1.msra.mxu0 0.0
      %885 = vmatprep.subr.mxu0 0.0
      %886 = vmatpush1.msra.mxu0 0.0
      %887 = vmatprep.subr.mxu0 0.0
      %888 = vmatpush1.msra.mxu0 0.0
      %889 = vmatprep.subr.mxu0 0.0
      %890 = vmatpush1.msra.mxu0 0.0
      %891 = vmatprep.mubr.f32.mxu0 %v745
      %892 = vmatmul.mubr.f32.gmra.mrb[0].mxu0 %v673
      %v893 = vpop.f32.mrb[0].mxu0
      %v894 = vadd.f32 %v736, %v893
      %v895 = vpop.f32.mrb[0].mxu0
      %896 = vmatprep.mubr.f32.mxu0 %v748
      %897 = vmatmul.mubr.f32.gmra.mrb[0].mxu0 %v675
      %v898 = vpop.f32.mrb[0].mxu0
      %v899 = vadd.f32 %v741, %v898
      %v900 = vpop.f32.mrb[0].mxu0
      %901 = vdwg.mxu0
      %v902 = vmax.f32 %v817, 0.0
      %v903 = vmax.f32 %v819, 0.0
      %v904 = vmax.f32 %v894, 0.0
      %v905 = vmax.f32 %v823, 0.0
      %v906 = vmax.f32 %v825, 0.0
      %v907 = vmax.f32 %v899, 0.0
      %v908 = vmul.f32 %v902, %v378
      %v909 = vmul.f32 %v903, %v382
      %v910 = vmul.f32 %v904, %v386
      %v911 = vmul.f32 %v905, %v378
      %v912 = vmul.f32 %v906, %v382
      %v913 = vmul.f32 %v907, %v386
      %914 = vst [vmem:[%s320] sm:$0xff] %v908
      %915 = vst [vmem:[%s320 + $0x8] sm:$0xff] %v909
      %916 = vst [vmem:[%s320 + $0x10] sm:$0xff] %v910
      %917 = vst [vmem:[%s320 + $0x18] sm:$0xff] %v911
      %918 = vst [vmem:[%s320 + $0x20] sm:$0xff] %v912
      %919 = vst [vmem:[%s320 + $0x28] sm:$0xff] %v913
      %v920 = vadd.f32 %v908, %v909
      %v921 = vadd.f32 %v920, %v910
      %922 = vadd.xlane.f32.xlu0 %v921
      %v923 = vpop.xlane.xlu0 %922
      %v924 = vadd.f32 %v911, %v912
      %v925 = vadd.f32 %v924, %v913
      %926 = vadd.xlane.f32.xlu0 %v925
      %v927 = vpop.xlane.xlu0 %926
      %928 = vst.msk [vmem:[%s325] sm:$0xff] %vm516, %v923
      %929 = vst.msk [vmem:[%s325 + $0x8] sm:$0xff] %vm516, %v927
      %v930 = vmul.f32 %v908, %v908
      %v931 = vmul.f32 %v909, %v909
      %v932 = vmul.f32 %v910, %v910
      %v933 = vmul.f32 %v911, %v911
      %v934 = vmul.f32 %v912, %v912
      %v935 = vmul.f32 %v913, %v913
      %v936 = vadd.f32 %v930, %v931
      %v937 = vadd.f32 %v936, %v932
      %938 = vadd.xlane.f32.xlu0 %v937
      %v939 = vpop.xlane.xlu0 %938
      %v940 = vadd.f32 %v933, %v934
      %v941 = vadd.f32 %v940, %v935
      %942 = vadd.xlane.f32.xlu0 %v941
      %v943 = vpop.xlane.xlu0 %942
      %944 = vst.msk [vmem:[%s330] sm:$0xff] %vm516, %v939
      %945 = vst.msk [vmem:[%s330 + $0x8] sm:$0xff] %vm516, %v943
      %p946 = scmp.lt.s32.totalorder %s20, 1
      %s947 = scalar_select %p946, %s20, 1
      %s948 = smul.addr %s947, 6
      %s949 = smul.addr %s948, 8
      %s950 = scalar_lea.vmem %s6, %s949
      %p951 = scmp.lt.s32.totalorder %s20, 1
      %s952 = scalar_select %p951, %s20, 1
      %s953 = smul.addr %s952, 2
      %s954 = smul.addr %s953, 8
      %s955 = scalar_lea.vmem %s7, %s954
      %p956 = scmp.lt.s32.totalorder %s20, 1
      %s957 = scalar_select %p956, %s20, 1
      %s958 = smul.addr %s957, 2
      %s959 = smul.addr %s958, 8
      %s960 = scalar_lea.vmem %s8, %s959
      // Predicated region
      $region45: #{simple_conv_ae_forward.4} parent=43 // pred_check
        %p961 = pneg %p169
      $region46: #{simple_conv_ae_forward.4} parent=43 // pred_check_branch
        %963 = sbr.rel (%p961) target = $region48
      $region47: #{simple_conv_ae_forward.4} parent=43 // pred_region
        _
      $region48: #{simple_conv_ae_forward.4} parent=43 // pred_fallthru
        _
      // Predicated region
      $region49: #{simple_conv_ae_forward.4} parent=43 // pred_check
        %p964 = pneg %p195
      $region50: #{simple_conv_ae_forward.4} parent=43 // pred_check_branch
        %966 = sbr.rel (%p964) target = $region52
      $region51: #{simple_conv_ae_forward.4} parent=43 // pred_region
        _
      $region52: #{simple_conv_ae_forward.4} parent=43 // pred_fallthru
        _
      // Predicated region
      $region53: #{simple_conv_ae_forward.4} parent=43 // pred_check
        %p967 = pneg %p221
      $region54: #{simple_conv_ae_forward.4} parent=43 // pred_check_branch
        %969 = sbr.rel (%p967) target = $region56
      $region55: #{simple_conv_ae_forward.4} parent=43 // pred_region
        _
      $region56: #{simple_conv_ae_forward.4} parent=43 // pred_fallthru
        _
    $region44: #{simple_conv_ae_forward.4} parent=5 // pred_fallthru
      _
    %p970 = scmp.le.s32.totalorder 2, %s15
    // Predicated region
    $region57: #{simple_conv_ae_forward.4} parent=5 // pred_check
      %p971 = pneg %p970
    $region58: #{simple_conv_ae_forward.4} parent=5 // pred_check_branch
      %973 = sbr.rel (%p971) target = $region60
    $region59: #{simple_conv_ae_forward.4} parent=5 // pred_region
      %s974 = ssub.s32 %s15, 2
      // Predicated region
      $region61: #{simple_conv_ae_forward.4} parent=59 // pred_check
        %p975 = pneg %p175
      $region62: #{simple_conv_ae_forward.4} parent=59 // pred_check_branch
        %977 = sbr.rel (%p975) target = $region64
      $region63: #{simple_conv_ae_forward.4} parent=59 // pred_region
        %p978 = scmp.lt.s32.totalorder %s21, 1
        %s979 = scalar_select %p978, %s21, 1
        %s980 = smul.addr %s979, 6
        %s981 = smul.addr %s980, 8
        %s982 = scalar_lea.vmem %s6, %s981
      $region64: #{simple_conv_ae_forward.4} parent=59 // pred_fallthru
        _
      // Predicated region
      $region65: #{simple_conv_ae_forward.4} parent=59 // pred_check
        %p983 = pneg %p201
      $region66: #{simple_conv_ae_forward.4} parent=59 // pred_check_branch
        %985 = sbr.rel (%p983) target = $region68
      $region67: #{simple_conv_ae_forward.4} parent=59 // pred_region
        %p986 = scmp.lt.s32.totalorder %s21, 1
        %s987 = scalar_select %p986, %s21, 1
        %s988 = smul.addr %s987, 2
        %s989 = smul.addr %s988, 8
        %s990 = scalar_lea.vmem %s7, %s989
      $region68: #{simple_conv_ae_forward.4} parent=59 // pred_fallthru
        _
      // Predicated region
      $region69: #{simple_conv_ae_forward.4} parent=59 // pred_check
        %p991 = pneg %p227
      $region70: #{simple_conv_ae_forward.4} parent=59 // pred_check_branch
        %993 = sbr.rel (%p991) target = $region72
      $region71: #{simple_conv_ae_forward.4} parent=59 // pred_region
        %p994 = scmp.lt.s32.totalorder %s21, 1
        %s995 = scalar_select %p994, %s21, 1
        %s996 = smul.addr %s995, 2
        %s997 = smul.addr %s996, 8
        %s998 = scalar_lea.vmem %s8, %s997
      $region72: #{simple_conv_ae_forward.4} parent=59 // pred_fallthru
        _
    $region60: #{simple_conv_ae_forward.4} parent=5 // pred_fallthru
      _
  $region6: #{simple_conv_ae_forward.4} parent=0 // loop_footer
    %s19 = sadd.s32 1, %s15
  $region7: #{simple_conv_ae_forward.4} parent=0 // loop_footer_branch
    %14 = sbr.rel target = $region3
  $region8: #{simple_conv_ae_forward.4} parent=0 // loop_exit
    _

// kernel: simple_conv_ae_forward.5
$region0: #{simple_conv_ae_forward.5}
  #allocation0 [shape = 'u32[]', space=smem, size = 0x4, offset = 0x4, fixed_abs, tag = 'smem constant byte address 0x4 - core index']
  #allocation1 [shape = 'u32[144,128]{1,0:T(1,128)}', space=vmem, size = 0x12000, scoped, tag = 'internal scratch']
  #allocation2 [shape = 'f32[144,384]{1,0:T(8,128)}', space=vmem, size = 0x36000, scoped, tag = 'scratch operand']
  %s0 = inlined_call_operand.vmem [shape: f32[2,16,384], index: 0, kind: input, shape index: {}]
  %s1 = inlined_call_operand.vmem [shape: f32[16,1], index: 1, kind: input, shape index: {}]
  %s2 = inlined_call_operand.vmem [shape: f32[16,1], index: 2, kind: input, shape index: {}]
  %s3 = inlined_call_operand.vmem [shape: f32[16,144], index: 3, kind: input, shape index: {}]
  %s4 = inlined_call_operand.vmem [shape: f32[16,1], index: 4, kind: input, shape index: {}]
  %s5 = inlined_call_operand.vmem [shape: f32[8,144], index: 5, kind: input, shape index: {}]
  %s6 = inlined_call_operand.vmem [shape: f32[8,1], index: 6, kind: input, shape index: {}]
  %s7 = inlined_call_operand.vmem [shape: f32[1,384], index: 7, kind: input, shape index: {}]
  %s8 = inlined_call_operand.vmem [shape: f32[1,384], index: 8, kind: input, shape index: {}]
  %s9 = inlined_call_operand.vmem [shape: f32[1,384], index: 9, kind: input, shape index: {}]
  %s10 = inlined_call_operand.vmem [shape: f32[2,8,384], index: 10, kind: output, shape index: {0}]
  %s11 = inlined_call_operand.vmem [shape: f32[2,16,384], index: 11, kind: output, shape index: {1}]
  %12 = xla_tuple %s10, %s11
  %s13 = sld [smem:[#allocation0]]
  $region81: #{simple_conv_ae_forward.5} parent=0
    _
  %s15 = ssub.s32 1, %s13
  %s16 = scalar_select 0, %s15, %s13
  loop: start=0, step=1, limit=4
  $region2: #{simple_conv_ae_forward.5} parent=0 // loop_pre_header
    _
  $region3: #{simple_conv_ae_forward.5} parent=0 // loop_header
    %s18 = sphi 0, %s22
    %p19 = scmp.ge.s32.totalorder %s18, 4
    %s28 = sphi 0, %s30
    %s31 = sphi 0, %s28
    %s32 = sphi 0, %s31
    %s48 = sphi 0, %s32
    %s52 = sphi 0, %s52
    %s54 = sphi 0, %s52
    %s55 = sphi 0, %s54
    %s69 = sphi 0, %s55
    %s73 = sphi 0, %s73
    %s75 = sphi 0, %s73
    %s76 = sphi 0, %s75
    %s90 = sphi 0, %s76
    %s94 = sphi 0, %s94
    %s96 = sphi 0, %s94
    %s97 = sphi 0, %s96
    %s111 = sphi 0, %s97
    %s115 = sphi 0, %s115
    %s117 = sphi 0, %s115
    %s118 = sphi 0, %s117
    %s132 = sphi 0, %s118
    %s136 = sphi 0, %s136
    %s138 = sphi 0, %s136
    %s139 = sphi 0, %s138
    %s153 = sphi 0, %s139
    %s157 = sphi 0, %s157
    %s159 = sphi 0, %s157
    %s160 = sphi 0, %s159
    %s174 = sphi 0, %s160
    %s178 = sphi 0, %s178
    %s180 = sphi 0, %s178
    %s181 = sphi 0, %s180
    %s195 = sphi 0, %s181
    %s199 = sphi 0, %s199
    %s201 = sphi 0, %s199
    %s202 = sphi 0, %s201
    %s216 = sphi 0, %s202
    %s220 = sphi 0, %s220
    %s222 = sphi 0, %s220
    %s223 = sphi 0, %s222
    %s237 = sphi 0, %s223
    %s243 = sphi 0, %s245
    %s246 = sphi 0, %s243
    %s247 = sphi 0, %s246
    %s263 = sphi 0, %s247
    %s269 = sphi 0, %s271
    %s272 = sphi 0, %s269
    %s273 = sphi 0, %s272
    %s289 = sphi 0, %s273
  $region4: #{simple_conv_ae_forward.5} parent=0 // loop_header_branch
    %21 = sbr.rel (%p19) target = $region8
  $region5: #{simple_conv_ae_forward.5} parent=0 // loop_body
    %s23 = ssub.s32 %s18, 1
    %s24 = ssub.s32 %s18, 2
    %s25 = sadd.s32 %s18, 1
    %s26 = ssub.s32 %s18, %s25
    %p27 = scmp.eq.s32.totalorder %s26, 0
    %s29 = sadd.s32 %s28, 1
    %s30 = scalar_select %p27, %s28, %s29
    %p33 = pneg %p27
    %p34 = scmp.eq.s32.totalorder %s18, 1
    %p35 = por %p33, %p34
    %p36 = scmp.ne.s32.totalorder %s28, %s31
    %p37 = scmp.eq.s32.totalorder %s18, 0
    %p38 = por %p36, %p37
    %p39 = scmp.ne.s32.totalorder %s28, %s31
    %p40 = scmp.eq.s32.totalorder %s23, 1
    %p41 = por %p39, %p40
    %p42 = scmp.ne.s32.totalorder %s31, %s32
    %p43 = scmp.eq.s32.totalorder %s23, 0
    %p44 = por %p42, %p43
    %p45 = scmp.ne.s32.totalorder %s31, %s32
    %p46 = scmp.eq.s32.totalorder %s24, 1
    %p47 = por %p45, %p46
    %p49 = scmp.ne.s32.totalorder %s32, %s48
    %p50 = scmp.eq.s32.totalorder %s24, 0
    %p51 = por %p49, %p50
    %s53 = sadd.s32 %s52, 1
    %p56 = scmp.eq.s32.totalorder %s18, 1
    %p57 = scmp.ne.s32.totalorder %s52, %s54
    %p58 = scmp.eq.s32.totalorder %s18, 0
    %p59 = por %p57, %p58
    %p60 = scmp.ne.s32.totalorder %s52, %s54
    %p61 = scmp.eq.s32.totalorder %s23, 1
    %p62 = por %p60, %p61
    %p63 = scmp.ne.s32.totalorder %s54, %s55
    %p64 = scmp.eq.s32.totalorder %s23, 0
    %p65 = por %p63, %p64
    %p66 = scmp.ne.s32.totalorder %s54, %s55
    %p67 = scmp.eq.s32.totalorder %s24, 1
    %p68 = por %p66, %p67
    %p70 = scmp.ne.s32.totalorder %s55, %s69
    %p71 = scmp.eq.s32.totalorder %s24, 0
    %p72 = por %p70, %p71
    %s74 = sadd.s32 %s73, 1
    %p77 = scmp.eq.s32.totalorder %s18, 1
    %p78 = scmp.ne.s32.totalorder %s73, %s75
    %p79 = scmp.eq.s32.totalorder %s18, 0
    %p80 = por %p78, %p79
    %p81 = scmp.ne.s32.totalorder %s73, %s75
    %p82 = scmp.eq.s32.totalorder %s23, 1
    %p83 = por %p81, %p82
    %p84 = scmp.ne.s32.totalorder %s75, %s76
    %p85 = scmp.eq.s32.totalorder %s23, 0
    %p86 = por %p84, %p85
    %p87 = scmp.ne.s32.totalorder %s75, %s76
    %p88 = scmp.eq.s32.totalorder %s24, 1
    %p89 = por %p87, %p88
    %p91 = scmp.ne.s32.totalorder %s76, %s90
    %p92 = scmp.eq.s32.totalorder %s24, 0
    %p93 = por %p91, %p92
    %s95 = sadd.s32 %s94, 1
    %p98 = scmp.eq.s32.totalorder %s18, 1
    %p99 = scmp.ne.s32.totalorder %s94, %s96
    %p100 = scmp.eq.s32.totalorder %s18, 0
    %p101 = por %p99, %p100
    %p102 = scmp.ne.s32.totalorder %s94, %s96
    %p103 = scmp.eq.s32.totalorder %s23, 1
    %p104 = por %p102, %p103
    %p105 = scmp.ne.s32.totalorder %s96, %s97
    %p106 = scmp.eq.s32.totalorder %s23, 0
    %p107 = por %p105, %p106
    %p108 = scmp.ne.s32.totalorder %s96, %s97
    %p109 = scmp.eq.s32.totalorder %s24, 1
    %p110 = por %p108, %p109
    %p112 = scmp.ne.s32.totalorder %s97, %s111
    %p113 = scmp.eq.s32.totalorder %s24, 0
    %p114 = por %p112, %p113
    %s116 = sadd.s32 %s115, 1
    %p119 = scmp.eq.s32.totalorder %s18, 1
    %p120 = scmp.ne.s32.totalorder %s115, %s117
    %p121 = scmp.eq.s32.totalorder %s18, 0
    %p122 = por %p120, %p121
    %p123 = scmp.ne.s32.totalorder %s115, %s117
    %p124 = scmp.eq.s32.totalorder %s23, 1
    %p125 = por %p123, %p124
    %p126 = scmp.ne.s32.totalorder %s117, %s118
    %p127 = scmp.eq.s32.totalorder %s23, 0
    %p128 = por %p126, %p127
    %p129 = scmp.ne.s32.totalorder %s117, %s118
    %p130 = scmp.eq.s32.totalorder %s24, 1
    %p131 = por %p129, %p130
    %p133 = scmp.ne.s32.totalorder %s118, %s132
    %p134 = scmp.eq.s32.totalorder %s24, 0
    %p135 = por %p133, %p134
    %s137 = sadd.s32 %s136, 1
    %p140 = scmp.eq.s32.totalorder %s18, 1
    %p141 = scmp.ne.s32.totalorder %s136, %s138
    %p142 = scmp.eq.s32.totalorder %s18, 0
    %p143 = por %p141, %p142
    %p144 = scmp.ne.s32.totalorder %s136, %s138
    %p145 = scmp.eq.s32.totalorder %s23, 1
    %p146 = por %p144, %p145
    %p147 = scmp.ne.s32.totalorder %s138, %s139
    %p148 = scmp.eq.s32.totalorder %s23, 0
    %p149 = por %p147, %p148
    %p150 = scmp.ne.s32.totalorder %s138, %s139
    %p151 = scmp.eq.s32.totalorder %s24, 1
    %p152 = por %p150, %p151
    %p154 = scmp.ne.s32.totalorder %s139, %s153
    %p155 = scmp.eq.s32.totalorder %s24, 0
    %p156 = por %p154, %p155
    %s158 = sadd.s32 %s157, 1
    %p161 = scmp.eq.s32.totalorder %s18, 1
    %p162 = scmp.ne.s32.totalorder %s157, %s159
    %p163 = scmp.eq.s32.totalorder %s18, 0
    %p164 = por %p162, %p163
    %p165 = scmp.ne.s32.totalorder %s157, %s159
    %p166 = scmp.eq.s32.totalorder %s23, 1
    %p167 = por %p165, %p166
    %p168 = scmp.ne.s32.totalorder %s159, %s160
    %p169 = scmp.eq.s32.totalorder %s23, 0
    %p170 = por %p168, %p169
    %p171 = scmp.ne.s32.totalorder %s159, %s160
    %p172 = scmp.eq.s32.totalorder %s24, 1
    %p173 = por %p171, %p172
    %p175 = scmp.ne.s32.totalorder %s160, %s174
    %p176 = scmp.eq.s32.totalorder %s24, 0
    %p177 = por %p175, %p176
    %s179 = sadd.s32 %s178, 1
    %p182 = scmp.eq.s32.totalorder %s18, 1
    %p183 = scmp.ne.s32.totalorder %s178, %s180
    %p184 = scmp.eq.s32.totalorder %s18, 0
    %p185 = por %p183, %p184
    %p186 = scmp.ne.s32.totalorder %s178, %s180
    %p187 = scmp.eq.s32.totalorder %s23, 1
    %p188 = por %p186, %p187
    %p189 = scmp.ne.s32.totalorder %s180, %s181
    %p190 = scmp.eq.s32.totalorder %s23, 0
    %p191 = por %p189, %p190
    %p192 = scmp.ne.s32.totalorder %s180, %s181
    %p193 = scmp.eq.s32.totalorder %s24, 1
    %p194 = por %p192, %p193
    %p196 = scmp.ne.s32.totalorder %s181, %s195
    %p197 = scmp.eq.s32.totalorder %s24, 0
    %p198 = por %p196, %p197
    %s200 = sadd.s32 %s199, 1
    %p203 = scmp.eq.s32.totalorder %s18, 1
    %p204 = scmp.ne.s32.totalorder %s199, %s201
    %p205 = scmp.eq.s32.totalorder %s18, 0
    %p206 = por %p204, %p205
    %p207 = scmp.ne.s32.totalorder %s199, %s201
    %p208 = scmp.eq.s32.totalorder %s23, 1
    %p209 = por %p207, %p208
    %p210 = scmp.ne.s32.totalorder %s201, %s202
    %p211 = scmp.eq.s32.totalorder %s23, 0
    %p212 = por %p210, %p211
    %p213 = scmp.ne.s32.totalorder %s201, %s202
    %p214 = scmp.eq.s32.totalorder %s24, 1
    %p215 = por %p213, %p214
    %p217 = scmp.ne.s32.totalorder %s202, %s216
    %p218 = scmp.eq.s32.totalorder %s24, 0
    %p219 = por %p217, %p218
    %s221 = sadd.s32 %s220, 1
    %p224 = scmp.eq.s32.totalorder %s18, 1
    %p225 = scmp.ne.s32.totalorder %s220, %s222
    %p226 = scmp.eq.s32.totalorder %s18, 0
    %p227 = por %p225, %p226
    %p228 = scmp.ne.s32.totalorder %s220, %s222
    %p229 = scmp.eq.s32.totalorder %s23, 1
    %p230 = por %p228, %p229
    %p231 = scmp.ne.s32.totalorder %s222, %s223
    %p232 = scmp.eq.s32.totalorder %s23, 0
    %p233 = por %p231, %p232
    %p234 = scmp.ne.s32.totalorder %s222, %s223
    %p235 = scmp.eq.s32.totalorder %s24, 1
    %p236 = por %p234, %p235
    %p238 = scmp.ne.s32.totalorder %s223, %s237
    %p239 = scmp.eq.s32.totalorder %s24, 0
    %p240 = por %p238, %p239
    %s241 = ssub.s32 %s18, %s25
    %p242 = scmp.eq.s32.totalorder %s241, 0
    %s244 = sadd.s32 %s243, 1
    %s245 = scalar_select %p242, %s243, %s244
    %p248 = pneg %p242
    %p249 = scmp.eq.s32.totalorder %s18, 1
    %p250 = por %p248, %p249
    %p251 = scmp.ne.s32.totalorder %s243, %s246
    %p252 = scmp.eq.s32.totalorder %s18, 0
    %p253 = por %p251, %p252
    %p254 = scmp.ne.s32.totalorder %s243, %s246
    %p255 = scmp.eq.s32.totalorder %s23, 1
    %p256 = por %p254, %p255
    %p257 = scmp.ne.s32.totalorder %s246, %s247
    %p258 = scmp.eq.s32.totalorder %s23, 0
    %p259 = por %p257, %p258
    %p260 = scmp.ne.s32.totalorder %s246, %s247
    %p261 = scmp.eq.s32.totalorder %s24, 1
    %p262 = por %p260, %p261
    %p264 = scmp.ne.s32.totalorder %s247, %s263
    %p265 = scmp.eq.s32.totalorder %s24, 0
    %p266 = por %p264, %p265
    %s267 = ssub.s32 %s18, %s25
    %p268 = scmp.eq.s32.totalorder %s267, 0
    %s270 = sadd.s32 %s269, 1
    %s271 = scalar_select %p268, %s269, %s270
    %p274 = pneg %p268
    %p275 = scmp.eq.s32.totalorder %s18, 1
    %p276 = por %p274, %p275
    %p277 = scmp.ne.s32.totalorder %s269, %s272
    %p278 = scmp.eq.s32.totalorder %s18, 0
    %p279 = por %p277, %p278
    %p280 = scmp.ne.s32.totalorder %s269, %s272
    %p281 = scmp.eq.s32.totalorder %s23, 1
    %p282 = por %p280, %p281
    %p283 = scmp.ne.s32.totalorder %s272, %s273
    %p284 = scmp.eq.s32.totalorder %s23, 0
    %p285 = por %p283, %p284
    %p286 = scmp.ne.s32.totalorder %s272, %s273
    %p287 = scmp.eq.s32.totalorder %s24, 1
    %p288 = por %p286, %p287
    %p290 = scmp.ne.s32.totalorder %s273, %s289
    %p291 = scmp.eq.s32.totalorder %s24, 0
    %p292 = por %p290, %p291
    %p293 = scmp.le.s32.totalorder 1, %s18
    %p294 = scmp.lt.s32.totalorder %s18, 3
    %p295 = pnand %p293, %p294
    %p296 = pneg %p295
    // Predicated region
    $region9: #{simple_conv_ae_forward.5} parent=5 // pred_check
      _
    $region10: #{simple_conv_ae_forward.5} parent=5 // pred_check_branch
      %298 = sbr.rel (%p295) target = $region12
    $region11: #{simple_conv_ae_forward.5} parent=5 // pred_region
      %s299 = ssub.s32 %s18, 1
      // Predicated region
      $region13: #{simple_conv_ae_forward.5} parent=11 // pred_check
        %p300 = pneg %p65
      $region14: #{simple_conv_ae_forward.5} parent=11 // pred_check_branch
        %302 = sbr.rel (%p300) target = $region16
      $region15: #{simple_conv_ae_forward.5} parent=11 // pred_region
        _
      $region16: #{simple_conv_ae_forward.5} parent=11 // pred_fallthru
        _
      // Predicated region
      $region17: #{simple_conv_ae_forward.5} parent=11 // pred_check
        %p303 = pneg %p86
      $region18: #{simple_conv_ae_forward.5} parent=11 // pred_check_branch
        %305 = sbr.rel (%p303) target = $region20
      $region19: #{simple_conv_ae_forward.5} parent=11 // pred_region
        _
      $region20: #{simple_conv_ae_forward.5} parent=11 // pred_fallthru
        _
      // Predicated region
      $region21: #{simple_conv_ae_forward.5} parent=11 // pred_check
        %p306 = pneg %p107
      $region22: #{simple_conv_ae_forward.5} parent=11 // pred_check_branch
        %308 = sbr.rel (%p306) target = $region24
      $region23: #{simple_conv_ae_forward.5} parent=11 // pred_region
        _
      $region24: #{simple_conv_ae_forward.5} parent=11 // pred_fallthru
        _
      // Predicated region
      $region25: #{simple_conv_ae_forward.5} parent=11 // pred_check
        %p309 = pneg %p128
      $region26: #{simple_conv_ae_forward.5} parent=11 // pred_check_branch
        %311 = sbr.rel (%p309) target = $region28
      $region27: #{simple_conv_ae_forward.5} parent=11 // pred_region
        _
      $region28: #{simple_conv_ae_forward.5} parent=11 // pred_fallthru
        _
      // Predicated region
      $region29: #{simple_conv_ae_forward.5} parent=11 // pred_check
        %p312 = pneg %p149
      $region30: #{simple_conv_ae_forward.5} parent=11 // pred_check_branch
        %314 = sbr.rel (%p312) target = $region32
      $region31: #{simple_conv_ae_forward.5} parent=11 // pred_region
        _
      $region32: #{simple_conv_ae_forward.5} parent=11 // pred_fallthru
        _
      // Predicated region
      $region33: #{simple_conv_ae_forward.5} parent=11 // pred_check
        %p315 = pneg %p170
      $region34: #{simple_conv_ae_forward.5} parent=11 // pred_check_branch
        %317 = sbr.rel (%p315) target = $region36
      $region35: #{simple_conv_ae_forward.5} parent=11 // pred_region
        _
      $region36: #{simple_conv_ae_forward.5} parent=11 // pred_fallthru
        _
      // Predicated region
      $region37: #{simple_conv_ae_forward.5} parent=11 // pred_check
        %p318 = pneg %p191
      $region38: #{simple_conv_ae_forward.5} parent=11 // pred_check_branch
        %320 = sbr.rel (%p318) target = $region40
      $region39: #{simple_conv_ae_forward.5} parent=11 // pred_region
        _
      $region40: #{simple_conv_ae_forward.5} parent=11 // pred_fallthru
        _
      // Predicated region
      $region41: #{simple_conv_ae_forward.5} parent=11 // pred_check
        %p321 = pneg %p212
      $region42: #{simple_conv_ae_forward.5} parent=11 // pred_check_branch
        %323 = sbr.rel (%p321) target = $region44
      $region43: #{simple_conv_ae_forward.5} parent=11 // pred_region
        _
      $region44: #{simple_conv_ae_forward.5} parent=11 // pred_fallthru
        _
      // Predicated region
      $region45: #{simple_conv_ae_forward.5} parent=11 // pred_check
        %p324 = pneg %p233
      $region46: #{simple_conv_ae_forward.5} parent=11 // pred_check_branch
        %326 = sbr.rel (%p324) target = $region48
      $region47: #{simple_conv_ae_forward.5} parent=11 // pred_region
        _
      $region48: #{simple_conv_ae_forward.5} parent=11 // pred_fallthru
        _
    $region12: #{simple_conv_ae_forward.5} parent=5 // pred_fallthru
      _
    %p327 = scmp.lt.s32.totalorder %s18, 2
    // Predicated region
    $region49: #{simple_conv_ae_forward.5} parent=5 // pred_check
      %p328 = pneg %p327
    $region50: #{simple_conv_ae_forward.5} parent=5 // pred_check_branch
      %330 = sbr.rel (%p328) target = $region52
    $region51: #{simple_conv_ae_forward.5} parent=5 // pred_region
      // Predicated region
      $region53: #{simple_conv_ae_forward.5} parent=51 // pred_check
        %p331 = pneg %p38
      $region54: #{simple_conv_ae_forward.5} parent=51 // pred_check_branch
        %333 = sbr.rel (%p331) target = $region56
      $region55: #{simple_conv_ae_forward.5} parent=51 // pred_region
        %p334 = scmp.lt.s32.totalorder %s18, 1
        %s335 = scalar_select %p334, %s18, 1
        %s336 = smul.addr %s335, 6
        %s337 = smul.addr %s336, 8
        %s338 = scalar_lea.vmem %s0, %s337
      $region56: #{simple_conv_ae_forward.5} parent=51 // pred_fallthru
        _
    $region52: #{simple_conv_ae_forward.5} parent=5 // pred_fallthru
      _
    %p339 = scmp.le.s32.totalorder 1, %s18
    %p340 = scmp.lt.s32.totalorder %s18, 3
    %p341 = pnand %p339, %p340
    %p342 = pneg %p341
    // Predicated region
    $region57: #{simple_conv_ae_forward.5} parent=5 // pred_check
      _
    $region58: #{simple_conv_ae_forward.5} parent=5 // pred_check_branch
      %344 = sbr.rel (%p341) target = $region60
    $region59: #{simple_conv_ae_forward.5} parent=5 // pred_region
      %s345 = ssub.s32 %s18, 1
      %p346 = scmp.lt.s32.totalorder %s23, 1
      %s347 = scalar_select %p346, %s23, 1
      %s348 = smul.addr %s347, 6
      %s349 = smul.addr %s348, 8
      %s350 = scalar_lea.vmem %s0, %s349
      %p351 = pneg %p44
      %p352 = pneg %p41
      %p353 = pneg %p65
      %p354 = pneg %p62
      %p355 = pneg %p86
      %p356 = pneg %p83
      %p357 = pneg %p107
      %p358 = pneg %p104
      %p359 = pneg %p128
      %p360 = pneg %p125
      %p361 = pneg %p149
      %p362 = pneg %p146
      %p363 = pneg %p170
      %p364 = pneg %p167
      %p365 = pneg %p191
      %p366 = pneg %p188
      %p367 = pneg %p212
      %p368 = pneg %p209
      %p369 = pneg %p233
      %p370 = pneg %p230
      %p371 = pneg %p259
      %p372 = pneg %p256
      %p373 = scmp.lt.s32.totalorder %s23, 1
      %s374 = scalar_select %p373, %s23, 1
      %s375 = smul.addr %s374, 3
      %s376 = smul.addr %s375, 8
      %s377 = scalar_lea.vmem %s10, %s376
      %p378 = pneg %p285
      %p379 = pneg %p282
      %p380 = scmp.lt.s32.totalorder %s23, 1
      %s381 = scalar_select %p380, %s23, 1
      %s382 = smul.addr %s381, 6
      %s383 = smul.addr %s382, 8
      %s384 = scalar_lea.vmem %s11, %s383
      %p385 = scmp.lt.s32.totalorder %s23, 1
      %s386 = scalar_select %p385, %s23, 1
      %s387 = smul.addr %s386, 6
      %s388 = smul.addr %s387, 8
      %s389 = scalar_lea.vmem %s0, %s388
      %p390 = scmp.lt.s32.totalorder %s23, 1
      %s391 = scalar_select %p390, %s23, 1
      %s392 = smul.addr %s391, 3
      %s393 = smul.addr %s392, 8
      %s394 = scalar_lea.vmem %s10, %s393
      %p395 = scmp.lt.s32.totalorder %s23, 1
      %s396 = scalar_select %p395, %s23, 1
      %s397 = smul.addr %s396, 6
      %s398 = smul.addr %s397, 8
      %s399 = scalar_lea.vmem %s11, %s398
      %v400 = vld [vmem:[%s7] sm:$0x7]
      %v401 = vld [vmem:[%s8] sm:$0x7]
      %v402 = vld [vmem:[%s9] sm:$0x7]
      %v403 = vsub.f32 1.0, %v401
      %v404 = vsub.f32 1.0, %v402
      %v405 = vld [vmem:[%s389] sm:$0xff]
      %v406 = vld [vmem:[%s389 + $0x8] sm:$0xff]
      %v407 = vld [vmem:[%s389 + $0x10] sm:$0xff]
      %v408 = vld [vmem:[%s389 + $0x18] sm:$0xff]
      %v409 = vld [vmem:[%s389 + $0x20] sm:$0xff]
      %v410 = vld [vmem:[%s389 + $0x28] sm:$0xff]
      %v411 = vld [vmem:[%s1] sm:$0xff]
      %v412 = vld [vmem:[%s1 + $0x8] sm:$0xff]
      %414 = vset.pattern.permute.xlu0 0
      %415 = vperm.xlu0 %414, %v411
      %v416 = vpop.permute.xlu0 %415
      %419 = vset.pattern.permute.xlu0 0
      %420 = vperm.xlu0 %419, %v412
      %v421 = vpop.permute.xlu0 %420
      %v423 = vmul.f32 %v405, %v416
      %v424 = vmul.f32 %v406, %v416
      %v425 = vmul.f32 %v407, %v416
      %v426 = vmul.f32 %v408, %v421
      %v427 = vmul.f32 %v409, %v421
      %v428 = vmul.f32 %v410, %v421
      %v429 = vld [vmem:[%s2] sm:$0xff]
      %v430 = vld [vmem:[%s2 + $0x8] sm:$0xff]
      %432 = vset.pattern.permute.xlu0 0
      %433 = vperm.xlu0 %432, %v429
      %v434 = vpop.permute.xlu0 %433
      %437 = vset.pattern.permute.xlu0 0
      %438 = vperm.xlu0 %437, %v430
      %v439 = vpop.permute.xlu0 %438
      %v441 = vadd.f32 %v423, %v434
      %v442 = vadd.f32 %v424, %v434
      %v443 = vadd.f32 %v425, %v434
      %v444 = vadd.f32 %v426, %v439
      %v445 = vadd.f32 %v427, %v439
      %v446 = vadd.f32 %v428, %v439
      %v448 = vlaneseq
      %v449 = vshrl.u32 %v448, 7
      %v450 = vsub.s32 0, %v449
      %v451 = vrot.slane %v400, %v450
      %v452 = vlaneseq
      %v453 = vshrl.u32 %v452, 7
      %v454 = vsub.s32 1, %v453
      %v455 = vrot.slane %v400, %v454
      %v456 = vlaneseq
      %v457 = vshrl.u32 %v456, 7
      %v458 = vsub.s32 2, %v457
      %v459 = vrot.slane %v400, %v458
      %v463 = vmul.f32 %v441, %v451
      %v464 = vmul.f32 %v442, %v455
      %v465 = vmul.f32 %v443, %v459
      %v466 = vmul.f32 %v444, %v451
      %v467 = vmul.f32 %v445, %v455
      %v468 = vmul.f32 %v446, %v459
      %v470 = vlaneseq
      %v471 = vshrl.u32 %v470, 7
      %v472 = vsub.s32 0, %v471
      %v473 = vrot.slane %v401, %v472
      %v474 = vlaneseq
      %v475 = vshrl.u32 %v474, 7
      %v476 = vsub.s32 1, %v475
      %v477 = vrot.slane %v401, %v476
      %v478 = vlaneseq
      %v479 = vshrl.u32 %v478, 7
      %v480 = vsub.s32 2, %v479
      %v481 = vrot.slane %v401, %v480
      %492 = vrot.lane.b32.xlu0 %v463, 127
      %v493 = vpop.permute.xlu0 %492
      %494 = vrot.lane.b32.xlu0 %v464, 127
      %v495 = vpop.permute.xlu0 %494
      %496 = vrot.lane.b32.xlu0 %v465, 127
      %v497 = vpop.permute.xlu0 %496
      %498 = vrot.lane.b32.xlu0 0.0, 127
      %v499 = vpop.permute.xlu0 %498
      %500 = vrot.lane.b32.xlu0 %v466, 127
      %v501 = vpop.permute.xlu0 %500
      %502 = vrot.lane.b32.xlu0 %v467, 127
      %v503 = vpop.permute.xlu0 %502
      %504 = vrot.lane.b32.xlu0 %v468, 127
      %v505 = vpop.permute.xlu0 %504
      %vm506 = vcmask 1039360
      %v507 = vsel %vm506, %v493, %v495
      %v508 = vsel %vm506, %v495, %v497
      %v509 = vsel %vm506, %v497, %v499
      %v510 = vsel %vm506, %v501, %v503
      %v511 = vsel %vm506, %v503, %v505
      %v512 = vsel %vm506, %v505, %v499
      %v519 = vmul.f32 %v473, %v507
      %v520 = vmul.f32 %v477, %v508
      %v521 = vmul.f32 %v481, %v509
      %v522 = vmul.f32 %v473, %v510
      %v523 = vmul.f32 %v477, %v511
      %v524 = vmul.f32 %v481, %v512
      %v526 = vlaneseq
      %v527 = vshrl.u32 %v526, 7
      %v528 = vsub.s32 0, %v527
      %v529 = vrot.slane %v403, %v528
      %v530 = vlaneseq
      %v531 = vshrl.u32 %v530, 7
      %v532 = vsub.s32 1, %v531
      %v533 = vrot.slane %v403, %v532
      %v534 = vlaneseq
      %v535 = vshrl.u32 %v534, 7
      %v536 = vsub.s32 2, %v535
      %v537 = vrot.slane %v403, %v536
      %541 = vrot.lane.b32.xlu0 0.0, 1
      %v542 = vpop.permute.xlu0 %541
      %543 = vrot.lane.b32.xlu0 %v463, 1
      %v544 = vpop.permute.xlu0 %543
      %545 = vrot.lane.b32.xlu0 %v464, 1
      %v546 = vpop.permute.xlu0 %545
      %547 = vrot.lane.b32.xlu0 %v465, 1
      %v548 = vpop.permute.xlu0 %547
      %549 = vrot.lane.b32.xlu0 %v466, 1
      %v550 = vpop.permute.xlu0 %549
      %551 = vrot.lane.b32.xlu0 %v467, 1
      %v552 = vpop.permute.xlu0 %551
      %553 = vrot.lane.b32.xlu0 %v468, 1
      %v554 = vpop.permute.xlu0 %553
      %vm555 = vcmask 7168
      %v556 = vsel %vm555, %v542, %v544
      %v557 = vsel %vm555, %v544, %v546
      %v558 = vsel %vm555, %v546, %v548
      %v559 = vsel %vm555, %v542, %v550
      %v560 = vsel %vm555, %v550, %v552
      %v561 = vsel %vm555, %v552, %v554
      %v568 = vmul.f32 %v529, %v556
      %v569 = vmul.f32 %v533, %v557
      %v570 = vmul.f32 %v537, %v558
      %v571 = vmul.f32 %v529, %v559
      %v572 = vmul.f32 %v533, %v560
      %v573 = vmul.f32 %v537, %v561
      %v574 = vadd.f32 %v519, %v568
      %v575 = vadd.f32 %v520, %v569
      %v576 = vadd.f32 %v521, %v570
      %v577 = vadd.f32 %v522, %v571
      %v578 = vadd.f32 %v523, %v572
      %v579 = vadd.f32 %v524, %v573
      %v581 = vlaneseq
      %v582 = vshrl.u32 %v581, 7
      %v583 = vsub.s32 0, %v582
      %v584 = vrot.slane %v402, %v583
      %v585 = vlaneseq
      %v586 = vshrl.u32 %v585, 7
      %v587 = vsub.s32 1, %v586
      %v588 = vrot.slane %v402, %v587
      %v589 = vlaneseq
      %v590 = vshrl.u32 %v589, 7
      %v591 = vsub.s32 2, %v590
      %v592 = vrot.slane %v402, %v591
      %596 = vrot.lane.b32.xlu0 %v463, 110
      %v597 = vpop.permute.xlu0 %596
      %598 = vrot.lane.b32.xlu0 %v464, 110
      %v599 = vpop.permute.xlu0 %598
      %600 = vrot.lane.b32.xlu0 %v465, 110
      %v601 = vpop.permute.xlu0 %600
      %602 = vrot.lane.b32.xlu0 0.0, 110
      %v603 = vpop.permute.xlu0 %602
      %604 = vrot.lane.b32.xlu0 %v466, 110
      %v605 = vpop.permute.xlu0 %604
      %606 = vrot.lane.b32.xlu0 %v467, 110
      %v607 = vpop.permute.xlu0 %606
      %608 = vrot.lane.b32.xlu0 %v468, 110
      %v609 = vpop.permute.xlu0 %608
      %vm610 = vcmask 900096
      %v611 = vsel %vm610, %v597, %v599
      %v612 = vsel %vm610, %v599, %v601
      %v613 = vsel %vm610, %v601, %v603
      %v614 = vsel %vm610, %v605, %v607
      %v615 = vsel %vm610, %v607, %v609
      %v616 = vsel %vm610, %v609, %v603
      %v623 = vmul.f32 %v584, %v611
      %v624 = vmul.f32 %v588, %v612
      %v625 = vmul.f32 %v592, %v613
      %v626 = vmul.f32 %v584, %v614
      %v627 = vmul.f32 %v588, %v615
      %v628 = vmul.f32 %v592, %v616
      %v630 = vlaneseq
      %v631 = vshrl.u32 %v630, 7
      %v632 = vsub.s32 0, %v631
      %v633 = vrot.slane %v404, %v632
      %v634 = vlaneseq
      %v635 = vshrl.u32 %v634, 7
      %v636 = vsub.s32 1, %v635
      %v637 = vrot.slane %v404, %v636
      %v638 = vlaneseq
      %v639 = vshrl.u32 %v638, 7
      %v640 = vsub.s32 2, %v639
      %v641 = vrot.slane %v404, %v640
      %645 = vrot.lane.b32.xlu0 0.0, 18
      %v646 = vpop.permute.xlu0 %645
      %647 = vrot.lane.b32.xlu0 %v463, 18
      %v648 = vpop.permute.xlu0 %647
      %649 = vrot.lane.b32.xlu0 %v464, 18
      %v650 = vpop.permute.xlu0 %649
      %651 = vrot.lane.b32.xlu0 %v465, 18
      %v652 = vpop.permute.xlu0 %651
      %653 = vrot.lane.b32.xlu0 %v466, 18
      %v654 = vpop.permute.xlu0 %653
      %655 = vrot.lane.b32.xlu0 %v467, 18
      %v656 = vpop.permute.xlu0 %655
      %657 = vrot.lane.b32.xlu0 %v468, 18
      %v658 = vpop.permute.xlu0 %657
      %vm659 = vcmask 146432
      %v660 = vsel %vm659, %v646, %v648
      %v661 = vsel %vm659, %v648, %v650
      %v662 = vsel %vm659, %v650, %v652
      %v663 = vsel %vm659, %v646, %v654
      %v664 = vsel %vm659, %v654, %v656
      %v665 = vsel %vm659, %v656, %v658
      %v672 = vmul.f32 %v633, %v660
      %v673 = vmul.f32 %v637, %v661
      %v674 = vmul.f32 %v641, %v662
      %v675 = vmul.f32 %v633, %v663
      %v676 = vmul.f32 %v637, %v664
      %v677 = vmul.f32 %v641, %v665
      %v678 = vadd.f32 %v623, %v672
      %v679 = vadd.f32 %v624, %v673
      %v680 = vadd.f32 %v625, %v674
      %v681 = vadd.f32 %v626, %v675
      %v682 = vadd.f32 %v627, %v676
      %v683 = vadd.f32 %v628, %v677
      %684 = vrot.lane.b32.xlu0 %v463, 109
      %v685 = vpop.permute.xlu0 %684
      %686 = vrot.lane.b32.xlu0 %v464, 109
      %v687 = vpop.permute.xlu0 %686
      %688 = vrot.lane.b32.xlu0 %v465, 109
      %v689 = vpop.permute.xlu0 %688
      %690 = vrot.lane.b32.xlu0 0.0, 109
      %v691 = vpop.permute.xlu0 %690
      %692 = vrot.lane.b32.xlu0 %v466, 109
      %v693 = vpop.permute.xlu0 %692
      %694 = vrot.lane.b32.xlu0 %v467, 109
      %v695 = vpop.permute.xlu0 %694
      %696 = vrot.lane.b32.xlu0 %v468, 109
      %v697 = vpop.permute.xlu0 %696
      %vm698 = vcmask 891904
      %v699 = vsel %vm698, %v685, %v687
      %v700 = vsel %vm698, %v687, %v689
      %v701 = vsel %vm698, %v689, %v691
      %v702 = vsel %vm698, %v693, %v695
      %v703 = vsel %vm698, %v695, %v697
      %v704 = vsel %vm698, %v697, %v691
      %v711 = vmul.f32 %v473, %v699
      %v712 = vmul.f32 %v477, %v700
      %v713 = vmul.f32 %v481, %v701
      %v714 = vmul.f32 %v473, %v702
      %v715 = vmul.f32 %v477, %v703
      %v716 = vmul.f32 %v481, %v704
      %717 = vrot.lane.b32.xlu0 %v463, 111
      %v718 = vpop.permute.xlu0 %717
      %719 = vrot.lane.b32.xlu0 %v464, 111
      %v720 = vpop.permute.xlu0 %719
      %721 = vrot.lane.b32.xlu0 %v465, 111
      %v722 = vpop.permute.xlu0 %721
      %723 = vrot.lane.b32.xlu0 0.0, 111
      %v724 = vpop.permute.xlu0 %723
      %725 = vrot.lane.b32.xlu0 %v466, 111
      %v726 = vpop.permute.xlu0 %725
      %727 = vrot.lane.b32.xlu0 %v467, 111
      %v728 = vpop.permute.xlu0 %727
      %729 = vrot.lane.b32.xlu0 %v468, 111
      %v730 = vpop.permute.xlu0 %729
      %vm731 = vcmask 908288
      %v732 = vsel %vm731, %v718, %v720
      %v733 = vsel %vm731, %v720, %v722
      %v734 = vsel %vm731, %v722, %v724
      %v735 = vsel %vm731, %v726, %v728
      %v736 = vsel %vm731, %v728, %v730
      %v737 = vsel %vm731, %v730, %v724
      %v744 = vmul.f32 %v529, %v732
      %v745 = vmul.f32 %v533, %v733
      %v746 = vmul.f32 %v537, %v734
      %v747 = vmul.f32 %v529, %v735
      %v748 = vmul.f32 %v533, %v736
      %v749 = vmul.f32 %v537, %v737
      %v750 = vadd.f32 %v711, %v744
      %v751 = vadd.f32 %v712, %v745
      %v752 = vadd.f32 %v713, %v746
      %v753 = vadd.f32 %v714, %v747
      %v754 = vadd.f32 %v715, %v748
      %v755 = vadd.f32 %v716, %v749
      %v756 = vmul.f32 %v584, %v750
      %v757 = vmul.f32 %v588, %v751
      %v758 = vmul.f32 %v592, %v752
      %v759 = vmul.f32 %v584, %v753
      %v760 = vmul.f32 %v588, %v754
      %v761 = vmul.f32 %v592, %v755
      %762 = vrot.lane.b32.xlu0 0.0, 17
      %v763 = vpop.permute.xlu0 %762
      %764 = vrot.lane.b32.xlu0 %v463, 17
      %v765 = vpop.permute.xlu0 %764
      %766 = vrot.lane.b32.xlu0 %v464, 17
      %v767 = vpop.permute.xlu0 %766
      %768 = vrot.lane.b32.xlu0 %v465, 17
      %v769 = vpop.permute.xlu0 %768
      %770 = vrot.lane.b32.xlu0 %v466, 17
      %v771 = vpop.permute.xlu0 %770
      %772 = vrot.lane.b32.xlu0 %v467, 17
      %v773 = vpop.permute.xlu0 %772
      %774 = vrot.lane.b32.xlu0 %v468, 17
      %v775 = vpop.permute.xlu0 %774
      %vm776 = vcmask 138240
      %v777 = vsel %vm776, %v763, %v765
      %v778 = vsel %vm776, %v765, %v767
      %v779 = vsel %vm776, %v767, %v769
      %v780 = vsel %vm776, %v763, %v771
      %v781 = vsel %vm776, %v771, %v773
      %v782 = vsel %vm776, %v773, %v775
      %v789 = vmul.f32 %v473, %v777
      %v790 = vmul.f32 %v477, %v778
      %v791 = vmul.f32 %v481, %v779
      %v792 = vmul.f32 %v473, %v780
      %v793 = vmul.f32 %v477, %v781
      %v794 = vmul.f32 %v481, %v782
      %795 = vrot.lane.b32.xlu0 0.0, 19
      %v796 = vpop.permute.xlu0 %795
      %797 = vrot.lane.b32.xlu0 %v463, 19
      %v798 = vpop.permute.xlu0 %797
      %799 = vrot.lane.b32.xlu0 %v464, 19
      %v800 = vpop.permute.xlu0 %799
      %801 = vrot.lane.b32.xlu0 %v465, 19
      %v802 = vpop.permute.xlu0 %801
      %803 = vrot.lane.b32.xlu0 %v466, 19
      %v804 = vpop.permute.xlu0 %803
      %805 = vrot.lane.b32.xlu0 %v467, 19
      %v806 = vpop.permute.xlu0 %805
      %807 = vrot.lane.b32.xlu0 %v468, 19
      %v808 = vpop.permute.xlu0 %807
      %vm809 = vcmask 154624
      %v810 = vsel %vm809, %v796, %v798
      %v811 = vsel %vm809, %v798, %v800
      %v812 = vsel %vm809, %v800, %v802
      %v813 = vsel %vm809, %v796, %v804
      %v814 = vsel %vm809, %v804, %v806
      %v815 = vsel %vm809, %v806, %v808
      %v822 = vmul.f32 %v529, %v810
      %v823 = vmul.f32 %v533, %v811
      %v824 = vmul.f32 %v537, %v812
      %v825 = vmul.f32 %v529, %v813
      %v826 = vmul.f32 %v533, %v814
      %v827 = vmul.f32 %v537, %v815
      %v828 = vadd.f32 %v789, %v822
      %v829 = vadd.f32 %v790, %v823
      %v830 = vadd.f32 %v791, %v824
      %v831 = vadd.f32 %v792, %v825
      %v832 = vadd.f32 %v793, %v826
      %v833 = vadd.f32 %v794, %v827
      %v834 = vmul.f32 %v633, %v828
      %v835 = vmul.f32 %v637, %v829
      %v836 = vmul.f32 %v641, %v830
      %v837 = vmul.f32 %v633, %v831
      %v838 = vmul.f32 %v637, %v832
      %v839 = vmul.f32 %v641, %v833
      %v840 = vadd.f32 %v756, %v834
      %v841 = vadd.f32 %v757, %v835
      %v842 = vadd.f32 %v758, %v836
      %v843 = vadd.f32 %v759, %v837
      %v844 = vadd.f32 %v760, %v838
      %v845 = vadd.f32 %v761, %v839
      %v846 = vmax.f32 %v463, %v574
      %v847 = vmax.f32 %v464, %v575
      %v848 = vmax.f32 %v465, %v576
      %v849 = vmax.f32 %v466, %v577
      %v850 = vmax.f32 %v467, %v578
      %v851 = vmax.f32 %v468, %v579
      %v852 = vmax.f32 %v678, %v840
      %v853 = vmax.f32 %v679, %v841
      %v854 = vmax.f32 %v680, %v842
      %v855 = vmax.f32 %v681, %v843
      %v856 = vmax.f32 %v682, %v844
      %v857 = vmax.f32 %v683, %v845
      %v858 = vmax.f32 %v846, %v852
      %v859 = vmax.f32 %v847, %v853
      %v860 = vmax.f32 %v848, %v854
      %v861 = vmax.f32 %v849, %v855
      %v862 = vmax.f32 %v850, %v856
      %v863 = vmax.f32 %v851, %v857
      %v864 = vmul.f32 %v402, %v403
      %871 = vrot.lane.b32.xlu0 %v858, 127
      %v872 = vpop.permute.xlu0 %871
      %873 = vrot.lane.b32.xlu0 %v859, 127
      %v874 = vpop.permute.xlu0 %873
      %875 = vrot.lane.b32.xlu0 %v860, 127
      %v876 = vpop.permute.xlu0 %875
      %877 = vrot.lane.b32.xlu0 %v861, 127
      %v878 = vpop.permute.xlu0 %877
      %879 = vrot.lane.b32.xlu0 %v862, 127
      %v880 = vpop.permute.xlu0 %879
      %881 = vrot.lane.b32.xlu0 %v863, 127
      %v882 = vpop.permute.xlu0 %881
      %v883 = vsel %vm506, %v872, %v874
      %v884 = vsel %vm506, %v874, %v876
      %v885 = vsel %vm506, %v878, %v880
      %v886 = vsel %vm506, %v880, %v882
      %vm895 = vcmp.eq.f32.partialorder 0.0, %v872
      %vm896 = vcmp.eq.f32.partialorder %v463, %v883
      %vm897 = vcmp.eq.f32.partialorder %v464, %v884
      %vm898 = vcmp.eq.f32.partialorder %v465, %v876
      %vm899 = vcmp.eq.f32.partialorder 0.0, %v878
      %vm900 = vcmp.eq.f32.partialorder %v466, %v885
      %vm901 = vcmp.eq.f32.partialorder %v467, %v886
      %vm902 = vcmp.eq.f32.partialorder %v468, %v882
      %v903 = vsel %vm895, 1.0, 0.0
      %v904 = vsel %vm896, 1.0, 0.0
      %v905 = vsel %vm897, 1.0, 0.0
      %v906 = vsel %vm898, 1.0, 0.0
      %v907 = vsel %vm899, 1.0, 0.0
      %v908 = vsel %vm900, 1.0, 0.0
      %v909 = vsel %vm901, 1.0, 0.0
      %v910 = vsel %vm902, 1.0, 0.0
      %v912 = vlaneseq
      %v913 = vshrl.u32 %v912, 7
      %v914 = vsub.s32 0, %v913
      %v915 = vrot.slane %v864, %v914
      %v916 = vlaneseq
      %v917 = vshrl.u32 %v916, 7
      %v918 = vsub.s32 1, %v917
      %v919 = vrot.slane %v864, %v918
      %v920 = vlaneseq
      %v921 = vshrl.u32 %v920, 7
      %v922 = vsub.s32 2, %v921
      %v923 = vrot.slane %v864, %v922
      %935 = vrot.lane.b32.xlu0 %v903, 1
      %v936 = vpop.permute.xlu0 %935
      %937 = vrot.lane.b32.xlu0 %v904, 1
      %v938 = vpop.permute.xlu0 %937
      %939 = vrot.lane.b32.xlu0 %v905, 1
      %v940 = vpop.permute.xlu0 %939
      %941 = vrot.lane.b32.xlu0 %v906, 1
      %v942 = vpop.permute.xlu0 %941
      %943 = vrot.lane.b32.xlu0 %v907, 1
      %v944 = vpop.permute.xlu0 %943
      %945 = vrot.lane.b32.xlu0 %v908, 1
      %v946 = vpop.permute.xlu0 %945
      %947 = vrot.lane.b32.xlu0 %v909, 1
      %v948 = vpop.permute.xlu0 %947
      %949 = vrot.lane.b32.xlu0 %v910, 1
      %v950 = vpop.permute.xlu0 %949
      %v951 = vsel %vm555, %v936, %v938
      %v952 = vsel %vm555, %v938, %v940
      %v953 = vsel %vm555, %v940, %v942
      %v954 = vsel %vm555, %v944, %v946
      %v955 = vsel %vm555, %v946, %v948
      %v956 = vsel %vm555, %v948, %v950
      %v963 = vmul.f32 %v915, %v951
      %v964 = vmul.f32 %v919, %v952
      %v965 = vmul.f32 %v923, %v953
      %v966 = vmul.f32 %v915, %v954
      %v967 = vmul.f32 %v919, %v955
      %v968 = vmul.f32 %v923, %v956
      %v969 = vmul.f32 %v404, %v401
      %970 = vrot.lane.b32.xlu0 %v858, 110
      %v971 = vpop.permute.xlu0 %970
      %972 = vrot.lane.b32.xlu0 %v859, 110
      %v973 = vpop.permute.xlu0 %972
      %974 = vrot.lane.b32.xlu0 %v860, 110
      %v975 = vpop.permute.xlu0 %974
      %976 = vrot.lane.b32.xlu0 %v861, 110
      %v977 = vpop.permute.xlu0 %976
      %978 = vrot.lane.b32.xlu0 %v862, 110
      %v979 = vpop.permute.xlu0 %978
      %980 = vrot.lane.b32.xlu0 %v863, 110
      %v981 = vpop.permute.xlu0 %980
      %v982 = vsel %vm610, %v971, %v973
      %v983 = vsel %vm610, %v973, %v975
      %v984 = vsel %vm610, %v977, %v979
      %v985 = vsel %vm610, %v979, %v981
      %vm994 = vcmp.eq.f32.partialorder 0.0, %v971
      %vm995 = vcmp.eq.f32.partialorder %v463, %v982
      %vm996 = vcmp.eq.f32.partialorder %v464, %v983
      %vm997 = vcmp.eq.f32.partialorder %v465, %v975
      %vm998 = vcmp.eq.f32.partialorder 0.0, %v977
      %vm999 = vcmp.eq.f32.partialorder %v466, %v984
      %vm1000 = vcmp.eq.f32.partialorder %v467, %v985
      %vm1001 = vcmp.eq.f32.partialorder %v468, %v981
      %v1002 = vsel %vm994, 1.0, 0.0
      %v1003 = vsel %vm995, 1.0, 0.0
      %v1004 = vsel %vm996, 1.0, 0.0
      %v1005 = vsel %vm997, 1.0, 0.0
      %v1006 = vsel %vm998, 1.0, 0.0
      %v1007 = vsel %vm999, 1.0, 0.0
      %v1008 = vsel %vm1000, 1.0, 0.0
      %v1009 = vsel %vm1001, 1.0, 0.0
      %1010 = vrot.lane.b32.xlu0 %v858, 111
      %v1011 = vpop.permute.xlu0 %1010
      %1012 = vrot.lane.b32.xlu0 %v859, 111
      %v1013 = vpop.permute.xlu0 %1012
      %1014 = vrot.lane.b32.xlu0 %v860, 111
      %v1015 = vpop.permute.xlu0 %1014
      %1016 = vrot.lane.b32.xlu0 %v861, 111
      %v1017 = vpop.permute.xlu0 %1016
      %1018 = vrot.lane.b32.xlu0 %v862, 111
      %v1019 = vpop.permute.xlu0 %1018
      %1020 = vrot.lane.b32.xlu0 %v863, 111
      %v1021 = vpop.permute.xlu0 %1020
      %v1022 = vsel %vm731, %v1011, %v1013
      %v1023 = vsel %vm731, %v1013, %v1015
      %v1024 = vsel %vm731, %v1017, %v1019
      %v1025 = vsel %vm731, %v1019, %v1021
      %vm1034 = vcmp.eq.f32.partialorder 0.0, %v1011
      %vm1035 = vcmp.eq.f32.partialorder %v463, %v1022
      %vm1036 = vcmp.eq.f32.partialorder %v464, %v1023
      %vm1037 = vcmp.eq.f32.partialorder %v465, %v1015
      %vm1038 = vcmp.eq.f32.partialorder 0.0, %v1017
      %vm1039 = vcmp.eq.f32.partialorder %v466, %v1024
      %vm1040 = vcmp.eq.f32.partialorder %v467, %v1025
      %vm1041 = vcmp.eq.f32.partialorder %v468, %v1021
      %v1042 = vsel %vm1034, 1.0, 0.0
      %v1043 = vsel %vm1035, 1.0, 0.0
      %v1044 = vsel %vm1036, 1.0, 0.0
      %v1045 = vsel %vm1037, 1.0, 0.0
      %v1046 = vsel %vm1038, 1.0, 0.0
      %v1047 = vsel %vm1039, 1.0, 0.0
      %v1048 = vsel %vm1040, 1.0, 0.0
      %v1049 = vsel %vm1041, 1.0, 0.0
      %1058 = vrot.lane.b32.xlu0 %v1042, 127
      %v1059 = vpop.permute.xlu0 %1058
      %1060 = vrot.lane.b32.xlu0 %v1043, 127
      %v1061 = vpop.permute.xlu0 %1060
      %1062 = vrot.lane.b32.xlu0 %v1044, 127
      %v1063 = vpop.permute.xlu0 %1062
      %1064 = vrot.lane.b32.xlu0 %v1045, 127
      %v1065 = vpop.permute.xlu0 %1064
      %1066 = vrot.lane.b32.xlu0 %v1046, 127
      %v1067 = vpop.permute.xlu0 %1066
      %1068 = vrot.lane.b32.xlu0 %v1047, 127
      %v1069 = vpop.permute.xlu0 %1068
      %1070 = vrot.lane.b32.xlu0 %v1048, 127
      %v1071 = vpop.permute.xlu0 %1070
      %1072 = vrot.lane.b32.xlu0 %v1049, 127
      %v1073 = vpop.permute.xlu0 %1072
      %v1074 = vsel %vm506, %v1059, %v1061
      %v1075 = vsel %vm506, %v1061, %v1063
      %v1076 = vsel %vm506, %v1063, %v1065
      %v1077 = vsel %vm506, %v1067, %v1069
      %v1078 = vsel %vm506, %v1069, %v1071
      %v1079 = vsel %vm506, %v1071, %v1073
      %v1088 = vadd.f32 %v1002, %v1074
      %v1089 = vadd.f32 %v1003, %v1075
      %v1090 = vadd.f32 %v1004, %v1076
      %v1091 = vadd.f32 %v1005, %v1065
      %v1092 = vadd.f32 %v1006, %v1077
      %v1093 = vadd.f32 %v1007, %v1078
      %v1094 = vadd.f32 %v1008, %v1079
      %v1095 = vadd.f32 %v1009, %v1073
      %v1097 = vlaneseq
      %v1098 = vshrl.u32 %v1097, 7
      %v1099 = vsub.s32 0, %v1098
      %v1100 = vrot.slane %v969, %v1099
      %v1101 = vlaneseq
      %v1102 = vshrl.u32 %v1101, 7
      %v1103 = vsub.s32 1, %v1102
      %v1104 = vrot.slane %v969, %v1103
      %v1105 = vlaneseq
      %v1106 = vshrl.u32 %v1105, 7
      %v1107 = vsub.s32 2, %v1106
      %v1108 = vrot.slane %v969, %v1107
      %1120 = vrot.lane.b32.xlu0 %v1088, 18
      %v1121 = vpop.permute.xlu0 %1120
      %1122 = vrot.lane.b32.xlu0 %v1089, 18
      %v1123 = vpop.permute.xlu0 %1122
      %1124 = vrot.lane.b32.xlu0 %v1090, 18
      %v1125 = vpop.permute.xlu0 %1124
      %1126 = vrot.lane.b32.xlu0 %v1091, 18
      %v1127 = vpop.permute.xlu0 %1126
      %1128 = vrot.lane.b32.xlu0 %v1092, 18
      %v1129 = vpop.permute.xlu0 %1128
      %1130 = vrot.lane.b32.xlu0 %v1093, 18
      %v1131 = vpop.permute.xlu0 %1130
      %1132 = vrot.lane.b32.xlu0 %v1094, 18
      %v1133 = vpop.permute.xlu0 %1132
      %1134 = vrot.lane.b32.xlu0 %v1095, 18
      %v1135 = vpop.permute.xlu0 %1134
      %v1136 = vsel %vm659, %v1121, %v1123
      %v1137 = vsel %vm659, %v1123, %v1125
      %v1138 = vsel %vm659, %v1125, %v1127
      %v1139 = vsel %vm659, %v1129, %v1131
      %v1140 = vsel %vm659, %v1131, %v1133
      %v1141 = vsel %vm659, %v1133, %v1135
      %v1148 = vmul.f32 %v1100, %v1136
      %v1149 = vmul.f32 %v1104, %v1137
      %v1150 = vmul.f32 %v1108, %v1138
      %v1151 = vmul.f32 %v1100, %v1139
      %v1152 = vmul.f32 %v1104, %v1140
      %v1153 = vmul.f32 %v1108, %v1141
      %v1154 = vadd.f32 %v963, %v1148
      %v1155 = vadd.f32 %v964, %v1149
      %v1156 = vadd.f32 %v965, %v1150
      %v1157 = vadd.f32 %v966, %v1151
      %v1158 = vadd.f32 %v967, %v1152
      %v1159 = vadd.f32 %v968, %v1153
      %v1160 = vmul.f32 %v404, %v403
      %1161 = vrot.lane.b32.xlu0 %v858, 109
      %v1162 = vpop.permute.xlu0 %1161
      %1163 = vrot.lane.b32.xlu0 %v859, 109
      %v1164 = vpop.permute.xlu0 %1163
      %1165 = vrot.lane.b32.xlu0 %v860, 109
      %v1166 = vpop.permute.xlu0 %1165
      %1167 = vrot.lane.b32.xlu0 %v861, 109
      %v1168 = vpop.permute.xlu0 %1167
      %1169 = vrot.lane.b32.xlu0 %v862, 109
      %v1170 = vpop.permute.xlu0 %1169
      %1171 = vrot.lane.b32.xlu0 %v863, 109
      %v1172 = vpop.permute.xlu0 %1171
      %v1173 = vsel %vm698, %v1162, %v1164
      %v1174 = vsel %vm698, %v1164, %v1166
      %v1175 = vsel %vm698, %v1168, %v1170
      %v1176 = vsel %vm698, %v1170, %v1172
      %vm1185 = vcmp.eq.f32.partialorder 0.0, %v1162
      %vm1186 = vcmp.eq.f32.partialorder %v463, %v1173
      %vm1187 = vcmp.eq.f32.partialorder %v464, %v1174
      %vm1188 = vcmp.eq.f32.partialorder %v465, %v1166
      %vm1189 = vcmp.eq.f32.partialorder 0.0, %v1168
      %vm1190 = vcmp.eq.f32.partialorder %v466, %v1175
      %vm1191 = vcmp.eq.f32.partialorder %v467, %v1176
      %vm1192 = vcmp.eq.f32.partialorder %v468, %v1172
      %v1193 = vsel %vm1185, 1.0, 0.0
      %v1194 = vsel %vm1186, 1.0, 0.0
      %v1195 = vsel %vm1187, 1.0, 0.0
      %v1196 = vsel %vm1188, 1.0, 0.0
      %v1197 = vsel %vm1189, 1.0, 0.0
      %v1198 = vsel %vm1190, 1.0, 0.0
      %v1199 = vsel %vm1191, 1.0, 0.0
      %v1200 = vsel %vm1192, 1.0, 0.0
      %1209 = vrot.lane.b32.xlu0 %v1002, 127
      %v1210 = vpop.permute.xlu0 %1209
      %1211 = vrot.lane.b32.xlu0 %v1003, 127
      %v1212 = vpop.permute.xlu0 %1211
      %1213 = vrot.lane.b32.xlu0 %v1004, 127
      %v1214 = vpop.permute.xlu0 %1213
      %1215 = vrot.lane.b32.xlu0 %v1005, 127
      %v1216 = vpop.permute.xlu0 %1215
      %1217 = vrot.lane.b32.xlu0 %v1006, 127
      %v1218 = vpop.permute.xlu0 %1217
      %1219 = vrot.lane.b32.xlu0 %v1007, 127
      %v1220 = vpop.permute.xlu0 %1219
      %1221 = vrot.lane.b32.xlu0 %v1008, 127
      %v1222 = vpop.permute.xlu0 %1221
      %1223 = vrot.lane.b32.xlu0 %v1009, 127
      %v1224 = vpop.permute.xlu0 %1223
      %v1225 = vsel %vm506, %v1210, %v1212
      %v1226 = vsel %vm506, %v1212, %v1214
      %v1227 = vsel %vm506, %v1214, %v1216
      %v1228 = vsel %vm506, %v1218, %v1220
      %v1229 = vsel %vm506, %v1220, %v1222
      %v1230 = vsel %vm506, %v1222, %v1224
      %v1239 = vadd.f32 %v1193, %v1225
      %v1240 = vadd.f32 %v1194, %v1226
      %v1241 = vadd.f32 %v1195, %v1227
      %v1242 = vadd.f32 %v1196, %v1216
      %v1243 = vadd.f32 %v1197, %v1228
      %v1244 = vadd.f32 %v1198, %v1229
      %v1245 = vadd.f32 %v1199, %v1230
      %v1246 = vadd.f32 %v1200, %v1224
      %1247 = vrot.lane.b32.xlu0 %v903, 110
      %v1248 = vpop.permute.xlu0 %1247
      %1249 = vrot.lane.b32.xlu0 %v904, 110
      %v1250 = vpop.permute.xlu0 %1249
      %1251 = vrot.lane.b32.xlu0 %v905, 110
      %v1252 = vpop.permute.xlu0 %1251
      %1253 = vrot.lane.b32.xlu0 %v906, 110
      %v1254 = vpop.permute.xlu0 %1253
      %1255 = vrot.lane.b32.xlu0 %v907, 110
      %v1256 = vpop.permute.xlu0 %1255
      %1257 = vrot.lane.b32.xlu0 %v908, 110
      %v1258 = vpop.permute.xlu0 %1257
      %1259 = vrot.lane.b32.xlu0 %v909, 110
      %v1260 = vpop.permute.xlu0 %1259
      %1261 = vrot.lane.b32.xlu0 %v910, 110
      %v1262 = vpop.permute.xlu0 %1261
      %v1263 = vsel %vm610, %v1248, %v1250
      %v1264 = vsel %vm610, %v1250, %v1252
      %v1265 = vsel %vm610, %v1252, %v1254
      %v1266 = vsel %vm610, %v1256, %v1258
      %v1267 = vsel %vm610, %v1258, %v1260
      %v1268 = vsel %vm610, %v1260, %v1262
      %v1277 = vadd.f32 %v1239, %v1263
      %v1278 = vadd.f32 %v1240, %v1264
      %v1279 = vadd.f32 %v1241, %v1265
      %v1280 = vadd.f32 %v1242, %v1254
      %v1281 = vadd.f32 %v1243, %v1266
      %v1282 = vadd.f32 %v1244, %v1267
      %v1283 = vadd.f32 %v1245, %v1268
      %v1284 = vadd.f32 %v1246, %v1262
      %v1286 = vlaneseq
      %v1287 = vshrl.u32 %v1286, 7
      %v1288 = vsub.s32 0, %v1287
      %v1289 = vrot.slane %v1160, %v1288
      %v1290 = vlaneseq
      %v1291 = vshrl.u32 %v1290, 7
      %v1292 = vsub.s32 1, %v1291
      %v1293 = vrot.slane %v1160, %v1292
      %v1294 = vlaneseq
      %v1295 = vshrl.u32 %v1294, 7
      %v1296 = vsub.s32 2, %v1295
      %v1297 = vrot.slane %v1160, %v1296
      %1309 = vrot.lane.b32.xlu0 %v1277, 19
      %v1310 = vpop.permute.xlu0 %1309
      %1311 = vrot.lane.b32.xlu0 %v1278, 19
      %v1312 = vpop.permute.xlu0 %1311
      %1313 = vrot.lane.b32.xlu0 %v1279, 19
      %v1314 = vpop.permute.xlu0 %1313
      %1315 = vrot.lane.b32.xlu0 %v1280, 19
      %v1316 = vpop.permute.xlu0 %1315
      %1317 = vrot.lane.b32.xlu0 %v1281, 19
      %v1318 = vpop.permute.xlu0 %1317
      %1319 = vrot.lane.b32.xlu0 %v1282, 19
      %v1320 = vpop.permute.xlu0 %1319
      %1321 = vrot.lane.b32.xlu0 %v1283, 19
      %v1322 = vpop.permute.xlu0 %1321
      %1323 = vrot.lane.b32.xlu0 %v1284, 19
      %v1324 = vpop.permute.xlu0 %1323
      %v1325 = vsel %vm809, %v1310, %v1312
      %v1326 = vsel %vm809, %v1312, %v1314
      %v1327 = vsel %vm809, %v1314, %v1316
      %v1328 = vsel %vm809, %v1318, %v1320
      %v1329 = vsel %vm809, %v1320, %v1322
      %v1330 = vsel %vm809, %v1322, %v1324
      %v1337 = vmul.f32 %v1289, %v1325
      %v1338 = vmul.f32 %v1293, %v1326
      %v1339 = vmul.f32 %v1297, %v1327
      %v1340 = vmul.f32 %v1289, %v1328
      %v1341 = vmul.f32 %v1293, %v1329
      %v1342 = vmul.f32 %v1297, %v1330
      %v1343 = vadd.f32 %v1154, %v1337
      %v1344 = vadd.f32 %v1155, %v1338
      %v1345 = vadd.f32 %v1156, %v1339
      %v1346 = vadd.f32 %v1157, %v1340
      %v1347 = vadd.f32 %v1158, %v1341
      %v1348 = vadd.f32 %v1159, %v1342
      %vm1349 = vcmp.eq.f32.partialorder %v463, %v858
      %vm1350 = vcmp.eq.f32.partialorder %v464, %v859
      %vm1351 = vcmp.eq.f32.partialorder %v465, %v860
      %vm1352 = vcmp.eq.f32.partialorder %v466, %v861
      %vm1353 = vcmp.eq.f32.partialorder %v467, %v862
      %vm1354 = vcmp.eq.f32.partialorder %v468, %v863
      %vm1355 = vcmp.lt.f32.partialorder %v1343, 0.5
      %vm1356 = vcmp.lt.f32.partialorder %v1344, 0.5
      %vm1357 = vcmp.lt.f32.partialorder %v1345, 0.5
      %vm1358 = vcmp.lt.f32.partialorder %v1346, 0.5
      %vm1359 = vcmp.lt.f32.partialorder %v1347, 0.5
      %vm1360 = vcmp.lt.f32.partialorder %v1348, 0.5
      %vm1361 = vmand %vm1349, %vm1355
      %vm1362 = vmand %vm1350, %vm1356
      %vm1363 = vmand %vm1351, %vm1357
      %vm1364 = vmand %vm1352, %vm1358
      %vm1365 = vmand %vm1353, %vm1359
      %vm1366 = vmand %vm1354, %vm1360
      %v1367 = vsel %vm1361, %v463, 0.0
      %v1368 = vsel %vm1362, %v464, 0.0
      %v1369 = vsel %vm1363, %v465, 0.0
      %v1370 = vsel %vm1364, %v466, 0.0
      %v1371 = vsel %vm1365, %v467, 0.0
      %v1372 = vsel %vm1366, %v468, 0.0
      %v1373 = vmul.f32 %v858, %v451
      %v1374 = vmul.f32 %v859, %v455
      %v1375 = vmul.f32 %v860, %v459
      %v1376 = vmul.f32 %v861, %v451
      %v1377 = vmul.f32 %v862, %v455
      %v1378 = vmul.f32 %v863, %v459
      %1379 = vst [vmem:[%s399] sm:$0xff] %v1373
      %1380 = vst [vmem:[%s399 + $0x8] sm:$0xff] %v1374
      %1381 = vst [vmem:[%s399 + $0x10] sm:$0xff] %v1375
      %1382 = vst [vmem:[%s399 + $0x18] sm:$0xff] %v1376
      %1383 = vst [vmem:[%s399 + $0x20] sm:$0xff] %v1377
      %1384 = vst [vmem:[%s399 + $0x28] sm:$0xff] %v1378
      %1391 = vrot.lane.b32.xlu0 %v1367, 19
      %v1392 = vpop.permute.xlu0 %1391
      %1393 = vrot.lane.b32.xlu0 %v1368, 19
      %v1394 = vpop.permute.xlu0 %1393
      %1395 = vrot.lane.b32.xlu0 %v1369, 19
      %v1396 = vpop.permute.xlu0 %1395
      %1397 = vrot.lane.b32.xlu0 %v1370, 19
      %v1398 = vpop.permute.xlu0 %1397
      %1399 = vrot.lane.b32.xlu0 %v1371, 19
      %v1400 = vpop.permute.xlu0 %1399
      %1401 = vrot.lane.b32.xlu0 %v1372, 19
      %v1402 = vpop.permute.xlu0 %1401
      %v1403 = vsel %vm809, %v796, %v1392
      %v1404 = vsel %vm809, %v1392, %v1394
      %v1405 = vsel %vm809, %v1394, %v1396
      %v1406 = vsel %vm809, %v796, %v1398
      %v1407 = vsel %vm809, %v1398, %v1400
      %v1408 = vsel %vm809, %v1400, %v1402
      %1415 = vst [vmem:[#allocation2] sm:$0xff] %v1403
      %1416 = vst [vmem:[#allocation2 + $0x8] sm:$0xff] %v1404
      %1417 = vst [vmem:[#allocation2 + $0x10] sm:$0xff] %v1405
      %1418 = vst [vmem:[#allocation2 + $0x18] sm:$0xff] %v1406
      %1419 = vst [vmem:[#allocation2 + $0x20] sm:$0xff] %v1407
      %1420 = vst [vmem:[#allocation2 + $0x28] sm:$0xff] %v1408
      %1421 = vrot.lane.b32.xlu0 %v1367, 18
      %v1422 = vpop.permute.xlu0 %1421
      %1423 = vrot.lane.b32.xlu0 %v1368, 18
      %v1424 = vpop.permute.xlu0 %1423
      %1425 = vrot.lane.b32.xlu0 %v1369, 18
      %v1426 = vpop.permute.xlu0 %1425
      %1427 = vrot.lane.b32.xlu0 %v1370, 18
      %v1428 = vpop.permute.xlu0 %1427
      %1429 = vrot.lane.b32.xlu0 %v1371, 18
      %v1430 = vpop.permute.xlu0 %1429
      %1431 = vrot.lane.b32.xlu0 %v1372, 18
      %v1432 = vpop.permute.xlu0 %1431
      %v1433 = vsel %vm659, %v646, %v1422
      %v1434 = vsel %vm659, %v1422, %v1424
      %v1435 = vsel %vm659, %v1424, %v1426
      %v1436 = vsel %vm659, %v646, %v1428
      %v1437 = vsel %vm659, %v1428, %v1430
      %v1438 = vsel %vm659, %v1430, %v1432
      %1445 = vst [vmem:[#allocation2 + $0x30] sm:$0xff] %v1433
      %1446 = vst [vmem:[#allocation2 + $0x38] sm:$0xff] %v1434
      %1447 = vst [vmem:[#allocation2 + $0x40] sm:$0xff] %v1435
      %1448 = vst [vmem:[#allocation2 + $0x48] sm:$0xff] %v1436
      %1449 = vst [vmem:[#allocation2 + $0x50] sm:$0xff] %v1437
      %1450 = vst [vmem:[#allocation2 + $0x58] sm:$0xff] %v1438
      %1451 = vrot.lane.b32.xlu0 %v1367, 17
      %v1452 = vpop.permute.xlu0 %1451
      %1453 = vrot.lane.b32.xlu0 %v1368, 17
      %v1454 = vpop.permute.xlu0 %1453
      %1455 = vrot.lane.b32.xlu0 %v1369, 17
      %v1456 = vpop.permute.xlu0 %1455
      %1457 = vrot.lane.b32.xlu0 %v1370, 17
      %v1458 = vpop.permute.xlu0 %1457
      %1459 = vrot.lane.b32.xlu0 %v1371, 17
      %v1460 = vpop.permute.xlu0 %1459
      %1461 = vrot.lane.b32.xlu0 %v1372, 17
      %v1462 = vpop.permute.xlu0 %1461
      %v1463 = vsel %vm776, %v763, %v1452
      %v1464 = vsel %vm776, %v1452, %v1454
      %v1465 = vsel %vm776, %v1454, %v1456
      %v1466 = vsel %vm776, %v763, %v1458
      %v1467 = vsel %vm776, %v1458, %v1460
      %v1468 = vsel %vm776, %v1460, %v1462
      %1475 = vst [vmem:[#allocation2 + $0x60] sm:$0xff] %v1463
      %1476 = vst [vmem:[#allocation2 + $0x68] sm:$0xff] %v1464
      %1477 = vst [vmem:[#allocation2 + $0x70] sm:$0xff] %v1465
      %1478 = vst [vmem:[#allocation2 + $0x78] sm:$0xff] %v1466
      %1479 = vst [vmem:[#allocation2 + $0x80] sm:$0xff] %v1467
      %1480 = vst [vmem:[#allocation2 + $0x88] sm:$0xff] %v1468
      %1481 = vrot.lane.b32.xlu0 %v1367, 1
      %v1482 = vpop.permute.xlu0 %1481
      %1483 = vrot.lane.b32.xlu0 %v1368, 1
      %v1484 = vpop.permute.xlu0 %1483
      %1485 = vrot.lane.b32.xlu0 %v1369, 1
      %v1486 = vpop.permute.xlu0 %1485
      %1487 = vrot.lane.b32.xlu0 %v1370, 1
      %v1488 = vpop.permute.xlu0 %1487
      %1489 = vrot.lane.b32.xlu0 %v1371, 1
      %v1490 = vpop.permute.xlu0 %1489
      %1491 = vrot.lane.b32.xlu0 %v1372, 1
      %v1492 = vpop.permute.xlu0 %1491
      %v1493 = vsel %vm555, %v542, %v1482
      %v1494 = vsel %vm555, %v1482, %v1484
      %v1495 = vsel %vm555, %v1484, %v1486
      %v1496 = vsel %vm555, %v542, %v1488
      %v1497 = vsel %vm555, %v1488, %v1490
      %v1498 = vsel %vm555, %v1490, %v1492
      %1505 = vst [vmem:[#allocation2 + $0x90] sm:$0xff] %v1493
      %1506 = vst [vmem:[#allocation2 + $0x98] sm:$0xff] %v1494
      %1507 = vst [vmem:[#allocation2 + $0xa0] sm:$0xff] %v1495
      %1508 = vst [vmem:[#allocation2 + $0xa8] sm:$0xff] %v1496
      %1509 = vst [vmem:[#allocation2 + $0xb0] sm:$0xff] %v1497
      %1510 = vst [vmem:[#allocation2 + $0xb8] sm:$0xff] %v1498
      %1511 = vst [vmem:[#allocation2 + $0xc0] sm:$0xff] %v1367
      %1512 = vst [vmem:[#allocation2 + $0xc8] sm:$0xff] %v1368
      %1513 = vst [vmem:[#allocation2 + $0xd0] sm:$0xff] %v1369
      %1514 = vst [vmem:[#allocation2 + $0xd8] sm:$0xff] %v1370
      %1515 = vst [vmem:[#allocation2 + $0xe0] sm:$0xff] %v1371
      %1516 = vst [vmem:[#allocation2 + $0xe8] sm:$0xff] %v1372
      %1517 = vrot.lane.b32.xlu0 %v1367, 127
      %v1518 = vpop.permute.xlu0 %1517
      %1519 = vrot.lane.b32.xlu0 %v1368, 127
      %v1520 = vpop.permute.xlu0 %1519
      %1521 = vrot.lane.b32.xlu0 %v1369, 127
      %v1522 = vpop.permute.xlu0 %1521
      %1523 = vrot.lane.b32.xlu0 %v1370, 127
      %v1524 = vpop.permute.xlu0 %1523
      %1525 = vrot.lane.b32.xlu0 %v1371, 127
      %v1526 = vpop.permute.xlu0 %1525
      %1527 = vrot.lane.b32.xlu0 %v1372, 127
      %v1528 = vpop.permute.xlu0 %1527
      %v1529 = vsel %vm506, %v1518, %v1520
      %v1530 = vsel %vm506, %v1520, %v1522
      %v1531 = vsel %vm506, %v1522, %v499
      %v1532 = vsel %vm506, %v1524, %v1526
      %v1533 = vsel %vm506, %v1526, %v1528
      %v1534 = vsel %vm506, %v1528, %v499
      %1541 = vst [vmem:[#allocation2 + $0xf0] sm:$0xff] %v1529
      %1542 = vst [vmem:[#allocation2 + $0xf8] sm:$0xff] %v1530
      %1543 = vst [vmem:[#allocation2 + $0x100] sm:$0xff] %v1531
      %1544 = vst [vmem:[#allocation2 + $0x108] sm:$0xff] %v1532
      %1545 = vst [vmem:[#allocation2 + $0x110] sm:$0xff] %v1533
      %1546 = vst [vmem:[#allocation2 + $0x118] sm:$0xff] %v1534
      %1547 = vrot.lane.b32.xlu0 %v1367, 111
      %v1548 = vpop.permute.xlu0 %1547
      %1549 = vrot.lane.b32.xlu0 %v1368, 111
      %v1550 = vpop.permute.xlu0 %1549
      %1551 = vrot.lane.b32.xlu0 %v1369, 111
      %v1552 = vpop.permute.xlu0 %1551
      %1553 = vrot.lane.b32.xlu0 %v1370, 111
      %v1554 = vpop.permute.xlu0 %1553
      %1555 = vrot.lane.b32.xlu0 %v1371, 111
      %v1556 = vpop.permute.xlu0 %1555
      %1557 = vrot.lane.b32.xlu0 %v1372, 111
      %v1558 = vpop.permute.xlu0 %1557
      %v1559 = vsel %vm731, %v1548, %v1550
      %v1560 = vsel %vm731, %v1550, %v1552
      %v1561 = vsel %vm731, %v1552, %v724
      %v1562 = vsel %vm731, %v1554, %v1556
      %v1563 = vsel %vm731, %v1556, %v1558
      %v1564 = vsel %vm731, %v1558, %v724
      %1571 = vst [vmem:[#allocation2 + $0x120] sm:$0xff] %v1559
      %1572 = vst [vmem:[#allocation2 + $0x128] sm:$0xff] %v1560
      %1573 = vst [vmem:[#allocation2 + $0x130] sm:$0xff] %v1561
      %1574 = vst [vmem:[#allocation2 + $0x138] sm:$0xff] %v1562
      %1575 = vst [vmem:[#allocation2 + $0x140] sm:$0xff] %v1563
      %1576 = vst [vmem:[#allocation2 + $0x148] sm:$0xff] %v1564
      %1577 = vrot.lane.b32.xlu0 %v1367, 110
      %v1578 = vpop.permute.xlu0 %1577
      %1579 = vrot.lane.b32.xlu0 %v1368, 110
      %v1580 = vpop.permute.xlu0 %1579
      %1581 = vrot.lane.b32.xlu0 %v1369, 110
      %v1582 = vpop.permute.xlu0 %1581
      %1583 = vrot.lane.b32.xlu0 %v1370, 110
      %v1584 = vpop.permute.xlu0 %1583
      %1585 = vrot.lane.b32.xlu0 %v1371, 110
      %v1586 = vpop.permute.xlu0 %1585
      %1587 = vrot.lane.b32.xlu0 %v1372, 110
      %v1588 = vpop.permute.xlu0 %1587
      %v1589 = vsel %vm610, %v1578, %v1580
      %v1590 = vsel %vm610, %v1580, %v1582
      %v1591 = vsel %vm610, %v1582, %v603
      %v1592 = vsel %vm610, %v1584, %v1586
      %v1593 = vsel %vm610, %v1586, %v1588
      %v1594 = vsel %vm610, %v1588, %v603
      %1601 = vst [vmem:[#allocation2 + $0x150] sm:$0xff] %v1589
      %1602 = vst [vmem:[#allocation2 + $0x158] sm:$0xff] %v1590
      %1603 = vst [vmem:[#allocation2 + $0x160] sm:$0xff] %v1591
      %1604 = vst [vmem:[#allocation2 + $0x168] sm:$0xff] %v1592
      %1605 = vst [vmem:[#allocation2 + $0x170] sm:$0xff] %v1593
      %1606 = vst [vmem:[#allocation2 + $0x178] sm:$0xff] %v1594
      %1607 = vrot.lane.b32.xlu0 %v1367, 109
      %v1608 = vpop.permute.xlu0 %1607
      %1609 = vrot.lane.b32.xlu0 %v1368, 109
      %v1610 = vpop.permute.xlu0 %1609
      %1611 = vrot.lane.b32.xlu0 %v1369, 109
      %v1612 = vpop.permute.xlu0 %1611
      %1613 = vrot.lane.b32.xlu0 %v1370, 109
      %v1614 = vpop.permute.xlu0 %1613
      %1615 = vrot.lane.b32.xlu0 %v1371, 109
      %v1616 = vpop.permute.xlu0 %1615
      %1617 = vrot.lane.b32.xlu0 %v1372, 109
      %v1618 = vpop.permute.xlu0 %1617
      %v1619 = vsel %vm698, %v1608, %v1610
      %v1620 = vsel %vm698, %v1610, %v1612
      %v1621 = vsel %vm698, %v1612, %v691
      %v1622 = vsel %vm698, %v1614, %v1616
      %v1623 = vsel %vm698, %v1616, %v1618
      %v1624 = vsel %vm698, %v1618, %v691
      %1631 = vst [vmem:[#allocation2 + $0x180] sm:$0xff] %v1619
      %1632 = vst [vmem:[#allocation2 + $0x188] sm:$0xff] %v1620
      %1633 = vst [vmem:[#allocation2 + $0x190] sm:$0xff] %v1621
      %1634 = vst [vmem:[#allocation2 + $0x198] sm:$0xff] %v1622
      %1635 = vst [vmem:[#allocation2 + $0x1a0] sm:$0xff] %v1623
      %1636 = vst [vmem:[#allocation2 + $0x1a8] sm:$0xff] %v1624
      %v1637 = vld [vmem:[%s3] sm:$0xff]
      %v1638 = vld [vmem:[%s3 + $0x8] sm:$0xff]
      %v1639 = vld [vmem:[%s3 + $0x10] sm:$0xff]
      %v1640 = vld [vmem:[%s3 + $0x18] sm:$0xff]
      %v1641 = vld [vmem:[#allocation2] sm:$0xff]
      %v1642 = vld [vmem:[#allocation2 + $0x8] sm:$0xff]
      %v1643 = vld [vmem:[#allocation2 + $0x10] sm:$0xff]
      %v1644 = vld [vmem:[#allocation2 + $0x18] sm:$0xff]
      %v1645 = vld [vmem:[#allocation2 + $0x20] sm:$0xff]
      %v1646 = vld [vmem:[#allocation2 + $0x28] sm:$0xff]
      %v1647 = vld [vmem:[#allocation2 + $0x30] sm:$0xff]
      %v1648 = vld [vmem:[#allocation2 + $0x38] sm:$0xff]
      %v1649 = vld [vmem:[#allocation2 + $0x40] sm:$0xff]
      %v1650 = vld [vmem:[#allocation2 + $0x48] sm:$0xff]
      %v1651 = vld [vmem:[#allocation2 + $0x50] sm:$0xff]
      %v1652 = vld [vmem:[#allocation2 + $0x58] sm:$0xff]
      %v1653 = vld [vmem:[#allocation2 + $0x60] sm:$0xff]
      %v1654 = vld [vmem:[#allocation2 + $0x68] sm:$0xff]
      %v1655 = vld [vmem:[#allocation2 + $0x70] sm:$0xff]
      %v1656 = vld [vmem:[#allocation2 + $0x78] sm:$0xff]
      %v1657 = vld [vmem:[#allocation2 + $0x80] sm:$0xff]
      %v1658 = vld [vmem:[#allocation2 + $0x88] sm:$0xff]
      %v1659 = vld [vmem:[#allocation2 + $0x90] sm:$0xff]
      %v1660 = vld [vmem:[#allocation2 + $0x98] sm:$0xff]
      %v1661 = vld [vmem:[#allocation2 + $0xa0] sm:$0xff]
      %v1662 = vld [vmem:[#allocation2 + $0xa8] sm:$0xff]
      %v1663 = vld [vmem:[#allocation2 + $0xb0] sm:$0xff]
      %v1664 = vld [vmem:[#allocation2 + $0xb8] sm:$0xff]
      %v1665 = vld [vmem:[#allocation2 + $0xc0] sm:$0xff]
      %v1666 = vld [vmem:[#allocation2 + $0xc8] sm:$0xff]
      %v1667 = vld [vmem:[#allocation2 + $0xd0] sm:$0xff]
      %v1668 = vld [vmem:[#allocation2 + $0xd8] sm:$0xff]
      %v1669 = vld [vmem:[#allocation2 + $0xe0] sm:$0xff]
      %v1670 = vld [vmem:[#allocation2 + $0xe8] sm:$0xff]
      %v1671 = vld [vmem:[#allocation2 + $0xf0] sm:$0xff]
      %v1672 = vld [vmem:[#allocation2 + $0xf8] sm:$0xff]
      %v1673 = vld [vmem:[#allocation2 + $0x100] sm:$0xff]
      %v1674 = vld [vmem:[#allocation2 + $0x108] sm:$0xff]
      %v1675 = vld [vmem:[#allocation2 + $0x110] sm:$0xff]
      %v1676 = vld [vmem:[#allocation2 + $0x118] sm:$0xff]
      %v1677 = vld [vmem:[#allocation2 + $0x120] sm:$0xff]
      %v1678 = vld [vmem:[#allocation2 + $0x128] sm:$0xff]
      %v1679 = vld [vmem:[#allocation2 + $0x130] sm:$0xff]
      %v1680 = vld [vmem:[#allocation2 + $0x138] sm:$0xff]
      %v1681 = vld [vmem:[#allocation2 + $0x140] sm:$0xff]
      %v1682 = vld [vmem:[#allocation2 + $0x148] sm:$0xff]
      %v1683 = vld [vmem:[#allocation2 + $0x150] sm:$0xff]
      %v1684 = vld [vmem:[#allocation2 + $0x158] sm:$0xff]
      %v1685 = vld [vmem:[#allocation2 + $0x160] sm:$0xff]
      %v1686 = vld [vmem:[#allocation2 + $0x168] sm:$0xff]
      %v1687 = vld [vmem:[#allocation2 + $0x170] sm:$0xff]
      %v1688 = vld [vmem:[#allocation2 + $0x178] sm:$0xff]
      %v1689 = vld [vmem:[#allocation2 + $0x180] sm:$0xff]
      %v1690 = vld [vmem:[#allocation2 + $0x188] sm:$0xff]
      %v1691 = vld [vmem:[#allocation2 + $0x190] sm:$0xff]
      %v1692 = vld [vmem:[#allocation2 + $0x198] sm:$0xff]
      %v1693 = vld [vmem:[#allocation2 + $0x1a0] sm:$0xff]
      %v1694 = vld [vmem:[#allocation2 + $0x1a8] sm:$0xff]
      %v1695 = vld [vmem:[%s4] sm:$0xff]
      %v1696 = vld [vmem:[%s4 + $0x8] sm:$0xff]
      %1698 = vset.pattern.permute.xlu0 0
      %1699 = vperm.xlu0 %1698, %v1695
      %v1700 = vpop.permute.xlu0 %1699
      %1703 = vset.pattern.permute.xlu0 0
      %1704 = vperm.xlu0 %1703, %v1696
      %v1705 = vpop.permute.xlu0 %1704
      %vm1707 = vcmask 130048
      %v1709 = vsel %vm1707, %v1638, 0
      %v1712 = vsel %vm1707, %v1640, 0
      %1714 = vmatprep.subr.mxu0 %v1642
      %1715 = vmatpush1.msra.mxu0 %v1641
      %1716 = vmatprep.subr.mxu0 %v1645
      %1717 = vmatpush1.msra.mxu0 %v1644
      %1718 = vmatprep.subr.mxu0 %v1648
      %1719 = vmatpush1.msra.mxu0 %v1647
      %1720 = vmatprep.subr.mxu0 %v1651
      %1721 = vmatpush1.msra.mxu0 %v1650
      %1722 = vmatprep.subr.mxu0 %v1654
      %1723 = vmatpush1.msra.mxu0 %v1653
      %1724 = vmatprep.subr.mxu0 %v1657
      %1725 = vmatpush1.msra.mxu0 %v1656
      %1726 = vmatprep.subr.mxu0 %v1660
      %1727 = vmatpush1.msra.mxu0 %v1659
      %1728 = vmatprep.subr.mxu0 %v1663
      %1729 = vmatpush1.msra.mxu0 %v1662
      %1730 = vmatprep.subr.mxu0 %v1666
      %1731 = vmatpush1.msra.mxu0 %v1665
      %1732 = vmatprep.subr.mxu0 %v1669
      %1733 = vmatpush1.msra.mxu0 %v1668
      %1734 = vmatprep.subr.mxu0 %v1672
      %1735 = vmatpush1.msra.mxu0 %v1671
      %1736 = vmatprep.subr.mxu0 %v1675
      %1737 = vmatpush1.msra.mxu0 %v1674
      %1738 = vmatprep.subr.mxu0 %v1678
      %1739 = vmatpush1.msra.mxu0 %v1677
      %1740 = vmatprep.subr.mxu0 %v1681
      %1741 = vmatpush1.msra.mxu0 %v1680
      %1742 = vmatprep.subr.mxu0 %v1684
      %1743 = vmatpush1.msra.mxu0 %v1683
      %1744 = vmatprep.subr.mxu0 %v1687
      %1745 = vmatpush1.msra.mxu0 %v1686
      %1746 = vmatprep.subr.mxu0 %v1690
      %1747 = vmatpush1.msra.mxu0 %v1689
      %1748 = vmatprep.subr.mxu0 %v1693
      %1749 = vmatpush1.msra.mxu0 %v1692
      %1750 = vmatprep.subr.mxu0 0.0
      %1751 = vmatpush1.msra.mxu0 0.0
      %1752 = vmatprep.subr.mxu0 0.0
      %1753 = vmatpush1.msra.mxu0 0.0
      %1754 = vmatprep.subr.mxu0 0.0
      %1755 = vmatpush1.msra.mxu0 0.0
      %1756 = vmatprep.subr.mxu0 0.0
      %1757 = vmatpush1.msra.mxu0 0.0
      %1758 = vmatprep.subr.mxu0 0.0
      %1759 = vmatpush1.msra.mxu0 0.0
      %1760 = vmatprep.subr.mxu0 0.0
      %1761 = vmatpush1.msra.mxu0 0.0
      %1762 = vmatprep.subr.mxu0 0.0
      %1763 = vmatpush1.msra.mxu0 0.0
      %1764 = vmatprep.subr.mxu0 0.0
      %1765 = vmatpush1.msra.mxu0 0.0
      %1766 = vmatprep.subr.mxu0 0.0
      %1767 = vmatpush1.msra.mxu0 0.0
      %1768 = vmatprep.subr.mxu0 0.0
      %1769 = vmatpush1.msra.mxu0 0.0
      %1770 = vmatprep.subr.mxu0 0.0
      %1771 = vmatpush1.msra.mxu0 0.0
      %1772 = vmatprep.subr.mxu0 0.0
      %1773 = vmatpush1.msra.mxu0 0.0
      %1774 = vmatprep.subr.mxu0 0.0
      %1775 = vmatpush1.msra.mxu0 0.0
      %1776 = vmatprep.subr.mxu0 0.0
      %1777 = vmatpush1.msra.mxu0 0.0
      %1778 = vmatprep.mubr.f32.mxu0 %v1709
      %1779 = vmatmul.mubr.f32.gmra.mrb[0].mxu0 %v1637
      %v1780 = vpop.f32.mrb[0].mxu0
      %v1781 = vadd.f32 %v1700, %v1780
      %v1782 = vpop.f32.mrb[0].mxu0
      %v1783 = vadd.f32 %v1700, %v1782
      %1784 = vmatprep.mubr.f32.mxu0 %v1712
      %1785 = vmatmul.mubr.f32.gmra.mrb[0].mxu0 %v1639
      %v1786 = vpop.f32.mrb[0].mxu0
      %v1787 = vadd.f32 %v1705, %v1786
      %v1788 = vpop.f32.mrb[0].mxu0
      %v1789 = vadd.f32 %v1705, %v1788
      %1790 = vdwg.mxu0
      %1791 = vmatprep.subr.mxu0 0.0
      %1792 = vmatpush1.msra.mxu0 %v1643
      %1793 = vmatprep.subr.mxu0 0.0
      %1794 = vmatpush1.msra.mxu0 %v1646
      %1795 = vmatprep.subr.mxu0 0.0
      %1796 = vmatpush1.msra.mxu0 %v1649
      %1797 = vmatprep.subr.mxu0 0.0
      %1798 = vmatpush1.msra.mxu0 %v1652
      %1799 = vmatprep.subr.mxu0 0.0
      %1800 = vmatpush1.msra.mxu0 %v1655
      %1801 = vmatprep.subr.mxu0 0.0
      %1802 = vmatpush1.msra.mxu0 %v1658
      %1803 = vmatprep.subr.mxu0 0.0
      %1804 = vmatpush1.msra.mxu0 %v1661
      %1805 = vmatprep.subr.mxu0 0.0
      %1806 = vmatpush1.msra.mxu0 %v1664
      %1807 = vmatprep.subr.mxu0 0.0
      %1808 = vmatpush1.msra.mxu0 %v1667
      %1809 = vmatprep.subr.mxu0 0.0
      %1810 = vmatpush1.msra.mxu0 %v1670
      %1811 = vmatprep.subr.mxu0 0.0
      %1812 = vmatpush1.msra.mxu0 %v1673
      %1813 = vmatprep.subr.mxu0 0.0
      %1814 = vmatpush1.msra.mxu0 %v1676
      %1815 = vmatprep.subr.mxu0 0.0
      %1816 = vmatpush1.msra.mxu0 %v1679
      %1817 = vmatprep.subr.mxu0 0.0
      %1818 = vmatpush1.msra.mxu0 %v1682
      %1819 = vmatprep.subr.mxu0 0.0
      %1820 = vmatpush1.msra.mxu0 %v1685
      %1821 = vmatprep.subr.mxu0 0.0
      %1822 = vmatpush1.msra.mxu0 %v1688
      %1823 = vmatprep.subr.mxu0 0.0
      %1824 = vmatpush1.msra.mxu0 %v1691
      %1825 = vmatprep.subr.mxu0 0.0
      %1826 = vmatpush1.msra.mxu0 %v1694
      %1827 = vmatprep.subr.mxu0 0.0
      %1828 = vmatpush1.msra.mxu0 0.0
      %1829 = vmatprep.subr.mxu0 0.0
      %1830 = vmatpush1.msra.mxu0 0.0
      %1831 = vmatprep.subr.mxu0 0.0
      %1832 = vmatpush1.msra.mxu0 0.0
      %1833 = vmatprep.subr.mxu0 0.0
      %1834 = vmatpush1.msra.mxu0 0.0
      %1835 = vmatprep.subr.mxu0 0.0
      %1836 = vmatpush1.msra.mxu0 0.0
      %1837 = vmatprep.subr.mxu0 0.0
      %1838 = vmatpush1.msra.mxu0 0.0
      %1839 = vmatprep.subr.mxu0 0.0
      %1840 = vmatpush1.msra.mxu0 0.0
      %1841 = vmatprep.subr.mxu0 0.0
      %1842 = vmatpush1.msra.mxu0 0.0
      %1843 = vmatprep.subr.mxu0 0.0
      %1844 = vmatpush1.msra.mxu0 0.0
      %1845 = vmatprep.subr.mxu0 0.0
      %1846 = vmatpush1.msra.mxu0 0.0
      %1847 = vmatprep.subr.mxu0 0.0
      %1848 = vmatpush1.msra.mxu0 0.0
      %1849 = vmatprep.subr.mxu0 0.0
      %1850 = vmatpush1.msra.mxu0 0.0
      %1851 = vmatprep.subr.mxu0 0.0
      %1852 = vmatpush1.msra.mxu0 0.0
      %1853 = vmatprep.subr.mxu0 0.0
      %1854 = vmatpush1.msra.mxu0 0.0
      %1855 = vmatprep.mubr.f32.mxu0 %v1709
      %1856 = vmatmul.mubr.f32.gmra.mrb[0].mxu0 %v1637
      %v1857 = vpop.f32.mrb[0].mxu0
      %v1858 = vadd.f32 %v1700, %v1857
      %v1859 = vpop.f32.mrb[0].mxu0
      %1860 = vmatprep.mubr.f32.mxu0 %v1712
      %1861 = vmatmul.mubr.f32.gmra.mrb[0].mxu0 %v1639
      %v1862 = vpop.f32.mrb[0].mxu0
      %v1863 = vadd.f32 %v1705, %v1862
      %v1864 = vpop.f32.mrb[0].mxu0
      %1865 = vdwg.mxu0
      %v1866 = vmax.f32 %v1781, 0.0
      %v1867 = vmax.f32 %v1783, 0.0
      %v1868 = vmax.f32 %v1858, 0.0
      %v1869 = vmax.f32 %v1787, 0.0
      %v1870 = vmax.f32 %v1789, 0.0
      %v1871 = vmax.f32 %v1863, 0.0
      %v1872 = vmul.f32 %v1866, %v451
      %v1873 = vmul.f32 %v1867, %v455
      %v1874 = vmul.f32 %v1868, %v459
      %v1875 = vmul.f32 %v1869, %v451
      %v1876 = vmul.f32 %v1870, %v455
      %v1877 = vmul.f32 %v1871, %v459
      %1884 = vrot.lane.b32.xlu0 %v1872, 19
      %v1885 = vpop.permute.xlu0 %1884
      %1886 = vrot.lane.b32.xlu0 %v1873, 19
      %v1887 = vpop.permute.xlu0 %1886
      %1888 = vrot.lane.b32.xlu0 %v1874, 19
      %v1889 = vpop.permute.xlu0 %1888
      %1890 = vrot.lane.b32.xlu0 %v1875, 19
      %v1891 = vpop.permute.xlu0 %1890
      %1892 = vrot.lane.b32.xlu0 %v1876, 19
      %v1893 = vpop.permute.xlu0 %1892
      %1894 = vrot.lane.b32.xlu0 %v1877, 19
      %v1895 = vpop.permute.xlu0 %1894
      %v1896 = vsel %vm809, %v796, %v1885
      %v1897 = vsel %vm809, %v1885, %v1887
      %v1898 = vsel %vm809, %v1887, %v1889
      %v1899 = vsel %vm809, %v796, %v1891
      %v1900 = vsel %vm809, %v1891, %v1893
      %v1901 = vsel %vm809, %v1893, %v1895
      %1908 = vst [vmem:[#allocation2] sm:$0xff] %v1896
      %1909 = vst [vmem:[#allocation2 + $0x8] sm:$0xff] %v1897
      %1910 = vst [vmem:[#allocation2 + $0x10] sm:$0xff] %v1898
      %1911 = vst [vmem:[#allocation2 + $0x18] sm:$0xff] %v1899
      %1912 = vst [vmem:[#allocation2 + $0x20] sm:$0xff] %v1900
      %1913 = vst [vmem:[#allocation2 + $0x28] sm:$0xff] %v1901
      %1914 = vrot.lane.b32.xlu0 %v1872, 18
      %v1915 = vpop.permute.xlu0 %1914
      %1916 = vrot.lane.b32.xlu0 %v1873, 18
      %v1917 = vpop.permute.xlu0 %1916
      %1918 = vrot.lane.b32.xlu0 %v1874, 18
      %v1919 = vpop.permute.xlu0 %1918
      %1920 = vrot.lane.b32.xlu0 %v1875, 18
      %v1921 = vpop.permute.xlu0 %1920
      %1922 = vrot.lane.b32.xlu0 %v1876, 18
      %v1923 = vpop.permute.xlu0 %1922
      %1924 = vrot.lane.b32.xlu0 %v1877, 18
      %v1925 = vpop.permute.xlu0 %1924
      %v1926 = vsel %vm659, %v646, %v1915
      %v1927 = vsel %vm659, %v1915, %v1917
      %v1928 = vsel %vm659, %v1917, %v1919
      %v1929 = vsel %vm659, %v646, %v1921
      %v1930 = vsel %vm659, %v1921, %v1923
      %v1931 = vsel %vm659, %v1923, %v1925
      %1938 = vst [vmem:[#allocation2 + $0x30] sm:$0xff] %v1926
      %1939 = vst [vmem:[#allocation2 + $0x38] sm:$0xff] %v1927
      %1940 = vst [vmem:[#allocation2 + $0x40] sm:$0xff] %v1928
      %1941 = vst [vmem:[#allocation2 + $0x48] sm:$0xff] %v1929
      %1942 = vst [vmem:[#allocation2 + $0x50] sm:$0xff] %v1930
      %1943 = vst [vmem:[#allocation2 + $0x58] sm:$0xff] %v1931
      %1944 = vrot.lane.b32.xlu0 %v1872, 17
      %v1945 = vpop.permute.xlu0 %1944
      %1946 = vrot.lane.b32.xlu0 %v1873, 17
      %v1947 = vpop.permute.xlu0 %1946
      %1948 = vrot.lane.b32.xlu0 %v1874, 17
      %v1949 = vpop.permute.xlu0 %1948
      %1950 = vrot.lane.b32.xlu0 %v1875, 17
      %v1951 = vpop.permute.xlu0 %1950
      %1952 = vrot.lane.b32.xlu0 %v1876, 17
      %v1953 = vpop.permute.xlu0 %1952
      %1954 = vrot.lane.b32.xlu0 %v1877, 17
      %v1955 = vpop.permute.xlu0 %1954
      %v1956 = vsel %vm776, %v763, %v1945
      %v1957 = vsel %vm776, %v1945, %v1947
      %v1958 = vsel %vm776, %v1947, %v1949
      %v1959 = vsel %vm776, %v763, %v1951
      %v1960 = vsel %vm776, %v1951, %v1953
      %v1961 = vsel %vm776, %v1953, %v1955
      %1968 = vst [vmem:[#allocation2 + $0x60] sm:$0xff] %v1956
      %1969 = vst [vmem:[#allocation2 + $0x68] sm:$0xff] %v1957
      %1970 = vst [vmem:[#allocation2 + $0x70] sm:$0xff] %v1958
      %1971 = vst [vmem:[#allocation2 + $0x78] sm:$0xff] %v1959
      %1972 = vst [vmem:[#allocation2 + $0x80] sm:$0xff] %v1960
      %1973 = vst [vmem:[#allocation2 + $0x88] sm:$0xff] %v1961
      %1974 = vrot.lane.b32.xlu0 %v1872, 1
      %v1975 = vpop.permute.xlu0 %1974
      %1976 = vrot.lane.b32.xlu0 %v1873, 1
      %v1977 = vpop.permute.xlu0 %1976
      %1978 = vrot.lane.b32.xlu0 %v1874, 1
      %v1979 = vpop.permute.xlu0 %1978
      %1980 = vrot.lane.b32.xlu0 %v1875, 1
      %v1981 = vpop.permute.xlu0 %1980
      %1982 = vrot.lane.b32.xlu0 %v1876, 1
      %v1983 = vpop.permute.xlu0 %1982
      %1984 = vrot.lane.b32.xlu0 %v1877, 1
      %v1985 = vpop.permute.xlu0 %1984
      %v1986 = vsel %vm555, %v542, %v1975
      %v1987 = vsel %vm555, %v1975, %v1977
      %v1988 = vsel %vm555, %v1977, %v1979
      %v1989 = vsel %vm555, %v542, %v1981
      %v1990 = vsel %vm555, %v1981, %v1983
      %v1991 = vsel %vm555, %v1983, %v1985
      %1998 = vst [vmem:[#allocation2 + $0x90] sm:$0xff] %v1986
      %1999 = vst [vmem:[#allocation2 + $0x98] sm:$0xff] %v1987
      %2000 = vst [vmem:[#allocation2 + $0xa0] sm:$0xff] %v1988
      %2001 = vst [vmem:[#allocation2 + $0xa8] sm:$0xff] %v1989
      %2002 = vst [vmem:[#allocation2 + $0xb0] sm:$0xff] %v1990
      %2003 = vst [vmem:[#allocation2 + $0xb8] sm:$0xff] %v1991
      %2004 = vst [vmem:[#allocation2 + $0xc0] sm:$0xff] %v1872
      %2005 = vst [vmem:[#allocation2 + $0xc8] sm:$0xff] %v1873
      %2006 = vst [vmem:[#allocation2 + $0xd0] sm:$0xff] %v1874
      %2007 = vst [vmem:[#allocation2 + $0xd8] sm:$0xff] %v1875
      %2008 = vst [vmem:[#allocation2 + $0xe0] sm:$0xff] %v1876
      %2009 = vst [vmem:[#allocation2 + $0xe8] sm:$0xff] %v1877
      %2010 = vrot.lane.b32.xlu0 %v1872, 127
      %v2011 = vpop.permute.xlu0 %2010
      %2012 = vrot.lane.b32.xlu0 %v1873, 127
      %v2013 = vpop.permute.xlu0 %2012
      %2014 = vrot.lane.b32.xlu0 %v1874, 127
      %v2015 = vpop.permute.xlu0 %2014
      %2016 = vrot.lane.b32.xlu0 %v1875, 127
      %v2017 = vpop.permute.xlu0 %2016
      %2018 = vrot.lane.b32.xlu0 %v1876, 127
      %v2019 = vpop.permute.xlu0 %2018
      %2020 = vrot.lane.b32.xlu0 %v1877, 127
      %v2021 = vpop.permute.xlu0 %2020
      %v2022 = vsel %vm506, %v2011, %v2013
      %v2023 = vsel %vm506, %v2013, %v2015
      %v2024 = vsel %vm506, %v2015, %v499
      %v2025 = vsel %vm506, %v2017, %v2019
      %v2026 = vsel %vm506, %v2019, %v2021
      %v2027 = vsel %vm506, %v2021, %v499
      %2034 = vst [vmem:[#allocation2 + $0xf0] sm:$0xff] %v2022
      %2035 = vst [vmem:[#allocation2 + $0xf8] sm:$0xff] %v2023
      %2036 = vst [vmem:[#allocation2 + $0x100] sm:$0xff] %v2024
      %2037 = vst [vmem:[#allocation2 + $0x108] sm:$0xff] %v2025
      %2038 = vst [vmem:[#allocation2 + $0x110] sm:$0xff] %v2026
      %2039 = vst [vmem:[#allocation2 + $0x118] sm:$0xff] %v2027
      %2040 = vrot.lane.b32.xlu0 %v1872, 111
      %v2041 = vpop.permute.xlu0 %2040
      %2042 = vrot.lane.b32.xlu0 %v1873, 111
      %v2043 = vpop.permute.xlu0 %2042
      %2044 = vrot.lane.b32.xlu0 %v1874, 111
      %v2045 = vpop.permute.xlu0 %2044
      %2046 = vrot.lane.b32.xlu0 %v1875, 111
      %v2047 = vpop.permute.xlu0 %2046
      %2048 = vrot.lane.b32.xlu0 %v1876, 111
      %v2049 = vpop.permute.xlu0 %2048
      %2050 = vrot.lane.b32.xlu0 %v1877, 111
      %v2051 = vpop.permute.xlu0 %2050
      %v2052 = vsel %vm731, %v2041, %v2043
      %v2053 = vsel %vm731, %v2043, %v2045
      %v2054 = vsel %vm731, %v2045, %v724
      %v2055 = vsel %vm731, %v2047, %v2049
      %v2056 = vsel %vm731, %v2049, %v2051
      %v2057 = vsel %vm731, %v2051, %v724
      %2064 = vst [vmem:[#allocation2 + $0x120] sm:$0xff] %v2052
      %2065 = vst [vmem:[#allocation2 + $0x128] sm:$0xff] %v2053
      %2066 = vst [vmem:[#allocation2 + $0x130] sm:$0xff] %v2054
      %2067 = vst [vmem:[#allocation2 + $0x138] sm:$0xff] %v2055
      %2068 = vst [vmem:[#allocation2 + $0x140] sm:$0xff] %v2056
      %2069 = vst [vmem:[#allocation2 + $0x148] sm:$0xff] %v2057
      %2070 = vrot.lane.b32.xlu0 %v1872, 110
      %v2071 = vpop.permute.xlu0 %2070
      %2072 = vrot.lane.b32.xlu0 %v1873, 110
      %v2073 = vpop.permute.xlu0 %2072
      %2074 = vrot.lane.b32.xlu0 %v1874, 110
      %v2075 = vpop.permute.xlu0 %2074
      %2076 = vrot.lane.b32.xlu0 %v1875, 110
      %v2077 = vpop.permute.xlu0 %2076
      %2078 = vrot.lane.b32.xlu0 %v1876, 110
      %v2079 = vpop.permute.xlu0 %2078
      %2080 = vrot.lane.b32.xlu0 %v1877, 110
      %v2081 = vpop.permute.xlu0 %2080
      %v2082 = vsel %vm610, %v2071, %v2073
      %v2083 = vsel %vm610, %v2073, %v2075
      %v2084 = vsel %vm610, %v2075, %v603
      %v2085 = vsel %vm610, %v2077, %v2079
      %v2086 = vsel %vm610, %v2079, %v2081
      %v2087 = vsel %vm610, %v2081, %v603
      %2094 = vst [vmem:[#allocation2 + $0x150] sm:$0xff] %v2082
      %2095 = vst [vmem:[#allocation2 + $0x158] sm:$0xff] %v2083
      %2096 = vst [vmem:[#allocation2 + $0x160] sm:$0xff] %v2084
      %2097 = vst [vmem:[#allocation2 + $0x168] sm:$0xff] %v2085
      %2098 = vst [vmem:[#allocation2 + $0x170] sm:$0xff] %v2086
      %2099 = vst [vmem:[#allocation2 + $0x178] sm:$0xff] %v2087
      %2100 = vrot.lane.b32.xlu0 %v1872, 109
      %v2101 = vpop.permute.xlu0 %2100
      %2102 = vrot.lane.b32.xlu0 %v1873, 109
      %v2103 = vpop.permute.xlu0 %2102
      %2104 = vrot.lane.b32.xlu0 %v1874, 109
      %v2105 = vpop.permute.xlu0 %2104
      %2106 = vrot.lane.b32.xlu0 %v1875, 109
      %v2107 = vpop.permute.xlu0 %2106
      %2108 = vrot.lane.b32.xlu0 %v1876, 109
      %v2109 = vpop.permute.xlu0 %2108
      %2110 = vrot.lane.b32.xlu0 %v1877, 109
      %v2111 = vpop.permute.xlu0 %2110
      %v2112 = vsel %vm698, %v2101, %v2103
      %v2113 = vsel %vm698, %v2103, %v2105
      %v2114 = vsel %vm698, %v2105, %v691
      %v2115 = vsel %vm698, %v2107, %v2109
      %v2116 = vsel %vm698, %v2109, %v2111
      %v2117 = vsel %vm698, %v2111, %v691
      %2124 = vst [vmem:[#allocation2 + $0x180] sm:$0xff] %v2112
      %2125 = vst [vmem:[#allocation2 + $0x188] sm:$0xff] %v2113
      %2126 = vst [vmem:[#allocation2 + $0x190] sm:$0xff] %v2114
      %2127 = vst [vmem:[#allocation2 + $0x198] sm:$0xff] %v2115
      %2128 = vst [vmem:[#allocation2 + $0x1a0] sm:$0xff] %v2116
      %2129 = vst [vmem:[#allocation2 + $0x1a8] sm:$0xff] %v2117
      %v2130 = vld [vmem:[%s5] sm:$0xff]
      %v2131 = vld [vmem:[%s5 + $0x8] sm:$0xff]
      %v2132 = vld [vmem:[#allocation2] sm:$0xff]
      %v2133 = vld [vmem:[#allocation2 + $0x8] sm:$0xff]
      %v2134 = vld [vmem:[#allocation2 + $0x10] sm:$0xff]
      %v2135 = vld [vmem:[#allocation2 + $0x18] sm:$0xff]
      %v2136 = vld [vmem:[#allocation2 + $0x20] sm:$0xff]
      %v2137 = vld [vmem:[#allocation2 + $0x28] sm:$0xff]
      %v2138 = vld [vmem:[#allocation2 + $0x30] sm:$0xff]
      %v2139 = vld [vmem:[#allocation2 + $0x38] sm:$0xff]
      %v2140 = vld [vmem:[#allocation2 + $0x40] sm:$0xff]
      %v2141 = vld [vmem:[#allocation2 + $0x48] sm:$0xff]
      %v2142 = vld [vmem:[#allocation2 + $0x50] sm:$0xff]
      %v2143 = vld [vmem:[#allocation2 + $0x58] sm:$0xff]
      %v2144 = vld [vmem:[#allocation2 + $0x60] sm:$0xff]
      %v2145 = vld [vmem:[#allocation2 + $0x68] sm:$0xff]
      %v2146 = vld [vmem:[#allocation2 + $0x70] sm:$0xff]
      %v2147 = vld [vmem:[#allocation2 + $0x78] sm:$0xff]
      %v2148 = vld [vmem:[#allocation2 + $0x80] sm:$0xff]
      %v2149 = vld [vmem:[#allocation2 + $0x88] sm:$0xff]
      %v2150 = vld [vmem:[#allocation2 + $0x90] sm:$0xff]
      %v2151 = vld [vmem:[#allocation2 + $0x98] sm:$0xff]
      %v2152 = vld [vmem:[#allocation2 + $0xa0] sm:$0xff]
      %v2153 = vld [vmem:[#allocation2 + $0xa8] sm:$0xff]
      %v2154 = vld [vmem:[#allocation2 + $0xb0] sm:$0xff]
      %v2155 = vld [vmem:[#allocation2 + $0xb8] sm:$0xff]
      %v2156 = vld [vmem:[#allocation2 + $0xc0] sm:$0xff]
      %v2157 = vld [vmem:[#allocation2 + $0xc8] sm:$0xff]
      %v2158 = vld [vmem:[#allocation2 + $0xd0] sm:$0xff]
      %v2159 = vld [vmem:[#allocation2 + $0xd8] sm:$0xff]
      %v2160 = vld [vmem:[#allocation2 + $0xe0] sm:$0xff]
      %v2161 = vld [vmem:[#allocation2 + $0xe8] sm:$0xff]
      %v2162 = vld [vmem:[#allocation2 + $0xf0] sm:$0xff]
      %v2163 = vld [vmem:[#allocation2 + $0xf8] sm:$0xff]
      %v2164 = vld [vmem:[#allocation2 + $0x100] sm:$0xff]
      %v2165 = vld [vmem:[#allocation2 + $0x108] sm:$0xff]
      %v2166 = vld [vmem:[#allocation2 + $0x110] sm:$0xff]
      %v2167 = vld [vmem:[#allocation2 + $0x118] sm:$0xff]
      %v2168 = vld [vmem:[#allocation2 + $0x120] sm:$0xff]
      %v2169 = vld [vmem:[#allocation2 + $0x128] sm:$0xff]
      %v2170 = vld [vmem:[#allocation2 + $0x130] sm:$0xff]
      %v2171 = vld [vmem:[#allocation2 + $0x138] sm:$0xff]
      %v2172 = vld [vmem:[#allocation2 + $0x140] sm:$0xff]
      %v2173 = vld [vmem:[#allocation2 + $0x148] sm:$0xff]
      %v2174 = vld [vmem:[#allocation2 + $0x150] sm:$0xff]
      %v2175 = vld [vmem:[#allocation2 + $0x158] sm:$0xff]
      %v2176 = vld [vmem:[#allocation2 + $0x160] sm:$0xff]
      %v2177 = vld [vmem:[#allocation2 + $0x168] sm:$0xff]
      %v2178 = vld [vmem:[#allocation2 + $0x170] sm:$0xff]
      %v2179 = vld [vmem:[#allocation2 + $0x178] sm:$0xff]
      %v2180 = vld [vmem:[#allocation2 + $0x180] sm:$0xff]
      %v2181 = vld [vmem:[#allocation2 + $0x188] sm:$0xff]
      %v2182 = vld [vmem:[#allocation2 + $0x190] sm:$0xff]
      %v2183 = vld [vmem:[#allocation2 + $0x198] sm:$0xff]
      %v2184 = vld [vmem:[#allocation2 + $0x1a0] sm:$0xff]
      %v2185 = vld [vmem:[#allocation2 + $0x1a8] sm:$0xff]
      %v2186 = vld [vmem:[%s6] sm:$0xff]
      %2188 = vset.pattern.permute.xlu0 0
      %2189 = vperm.xlu0 %2188, %v2186
      %v2190 = vpop.permute.xlu0 %2189
      %v2193 = vsel %vm1707, %v2131, 0
      %2195 = vmatprep.subr.mxu0 %v2133
      %2196 = vmatpush1.msra.mxu0 %v2132
      %2197 = vmatprep.subr.mxu0 %v2136
      %2198 = vmatpush1.msra.mxu0 %v2135
      %2199 = vmatprep.subr.mxu0 %v2139
      %2200 = vmatpush1.msra.mxu0 %v2138
      %2201 = vmatprep.subr.mxu0 %v2142
      %2202 = vmatpush1.msra.mxu0 %v2141
      %2203 = vmatprep.subr.mxu0 %v2145
      %2204 = vmatpush1.msra.mxu0 %v2144
      %2205 = vmatprep.subr.mxu0 %v2148
      %2206 = vmatpush1.msra.mxu0 %v2147
      %2207 = vmatprep.subr.mxu0 %v2151
      %2208 = vmatpush1.msra.mxu0 %v2150
      %2209 = vmatprep.subr.mxu0 %v2154
      %2210 = vmatpush1.msra.mxu0 %v2153
      %2211 = vmatprep.subr.mxu0 %v2157
      %2212 = vmatpush1.msra.mxu0 %v2156
      %2213 = vmatprep.subr.mxu0 %v2160
      %2214 = vmatpush1.msra.mxu0 %v2159
      %2215 = vmatprep.subr.mxu0 %v2163
      %2216 = vmatpush1.msra.mxu0 %v2162
      %2217 = vmatprep.subr.mxu0 %v2166
      %2218 = vmatpush1.msra.mxu0 %v2165
      %2219 = vmatprep.subr.mxu0 %v2169
      %2220 = vmatpush1.msra.mxu0 %v2168
      %2221 = vmatprep.subr.mxu0 %v2172
      %2222 = vmatpush1.msra.mxu0 %v2171
      %2223 = vmatprep.subr.mxu0 %v2175
      %2224 = vmatpush1.msra.mxu0 %v2174
      %2225 = vmatprep.subr.mxu0 %v2178
      %2226 = vmatpush1.msra.mxu0 %v2177
      %2227 = vmatprep.subr.mxu0 %v2181
      %2228 = vmatpush1.msra.mxu0 %v2180
      %2229 = vmatprep.subr.mxu0 %v2184
      %2230 = vmatpush1.msra.mxu0 %v2183
      %2231 = vmatprep.subr.mxu0 0.0
      %2232 = vmatpush1.msra.mxu0 0.0
      %2233 = vmatprep.subr.mxu0 0.0
      %2234 = vmatpush1.msra.mxu0 0.0
      %2235 = vmatprep.subr.mxu0 0.0
      %2236 = vmatpush1.msra.mxu0 0.0
      %2237 = vmatprep.subr.mxu0 0.0
      %2238 = vmatpush1.msra.mxu0 0.0
      %2239 = vmatprep.subr.mxu0 0.0
      %2240 = vmatpush1.msra.mxu0 0.0
      %2241 = vmatprep.subr.mxu0 0.0
      %2242 = vmatpush1.msra.mxu0 0.0
      %2243 = vmatprep.subr.mxu0 0.0
      %2244 = vmatpush1.msra.mxu0 0.0
      %2245 = vmatprep.subr.mxu0 0.0
      %2246 = vmatpush1.msra.mxu0 0.0
      %2247 = vmatprep.subr.mxu0 0.0
      %2248 = vmatpush1.msra.mxu0 0.0
      %2249 = vmatprep.subr.mxu0 0.0
      %2250 = vmatpush1.msra.mxu0 0.0
      %2251 = vmatprep.subr.mxu0 0.0
      %2252 = vmatpush1.msra.mxu0 0.0
      %2253 = vmatprep.subr.mxu0 0.0
      %2254 = vmatpush1.msra.mxu0 0.0
      %2255 = vmatprep.subr.mxu0 0.0
      %2256 = vmatpush1.msra.mxu0 0.0
      %2257 = vmatprep.subr.mxu0 0.0
      %2258 = vmatpush1.msra.mxu0 0.0
      %2259 = vmatprep.mubr.f32.mxu0 %v2193
      %2260 = vmatmul.mubr.f32.gmra.mrb[0].mxu0 %v2130
      %v2261 = vpop.f32.mrb[0].mxu0
      %v2262 = vadd.f32 %v2190, %v2261
      %v2263 = vpop.f32.mrb[0].mxu0
      %v2264 = vadd.f32 %v2190, %v2263
      %2265 = vdwg.mxu0
      %2266 = vmatprep.subr.mxu0 0.0
      %2267 = vmatpush1.msra.mxu0 %v2134
      %2268 = vmatprep.subr.mxu0 0.0
      %2269 = vmatpush1.msra.mxu0 %v2137
      %2270 = vmatprep.subr.mxu0 0.0
      %2271 = vmatpush1.msra.mxu0 %v2140
      %2272 = vmatprep.subr.mxu0 0.0
      %2273 = vmatpush1.msra.mxu0 %v2143
      %2274 = vmatprep.subr.mxu0 0.0
      %2275 = vmatpush1.msra.mxu0 %v2146
      %2276 = vmatprep.subr.mxu0 0.0
      %2277 = vmatpush1.msra.mxu0 %v2149
      %2278 = vmatprep.subr.mxu0 0.0
      %2279 = vmatpush1.msra.mxu0 %v2152
      %2280 = vmatprep.subr.mxu0 0.0
      %2281 = vmatpush1.msra.mxu0 %v2155
      %2282 = vmatprep.subr.mxu0 0.0
      %2283 = vmatpush1.msra.mxu0 %v2158
      %2284 = vmatprep.subr.mxu0 0.0
      %2285 = vmatpush1.msra.mxu0 %v2161
      %2286 = vmatprep.subr.mxu0 0.0
      %2287 = vmatpush1.msra.mxu0 %v2164
      %2288 = vmatprep.subr.mxu0 0.0
      %2289 = vmatpush1.msra.mxu0 %v2167
      %2290 = vmatprep.subr.mxu0 0.0
      %2291 = vmatpush1.msra.mxu0 %v2170
      %2292 = vmatprep.subr.mxu0 0.0
      %2293 = vmatpush1.msra.mxu0 %v2173
      %2294 = vmatprep.subr.mxu0 0.0
      %2295 = vmatpush1.msra.mxu0 %v2176
      %2296 = vmatprep.subr.mxu0 0.0
      %2297 = vmatpush1.msra.mxu0 %v2179
      %2298 = vmatprep.subr.mxu0 0.0
      %2299 = vmatpush1.msra.mxu0 %v2182
      %2300 = vmatprep.subr.mxu0 0.0
      %2301 = vmatpush1.msra.mxu0 %v2185
      %2302 = vmatprep.subr.mxu0 0.0
      %2303 = vmatpush1.msra.mxu0 0.0
      %2304 = vmatprep.subr.mxu0 0.0
      %2305 = vmatpush1.msra.mxu0 0.0
      %2306 = vmatprep.subr.mxu0 0.0
      %2307 = vmatpush1.msra.mxu0 0.0
      %2308 = vmatprep.subr.mxu0 0.0
      %2309 = vmatpush1.msra.mxu0 0.0
      %2310 = vmatprep.subr.mxu0 0.0
      %2311 = vmatpush1.msra.mxu0 0.0
      %2312 = vmatprep.subr.mxu0 0.0
      %2313 = vmatpush1.msra.mxu0 0.0
      %2314 = vmatprep.subr.mxu0 0.0
      %2315 = vmatpush1.msra.mxu0 0.0
      %2316 = vmatprep.subr.mxu0 0.0
      %2317 = vmatpush1.msra.mxu0 0.0
      %2318 = vmatprep.subr.mxu0 0.0
      %2319 = vmatpush1.msra.mxu0 0.0
      %2320 = vmatprep.subr.mxu0 0.0
      %2321 = vmatpush1.msra.mxu0 0.0
      %2322 = vmatprep.subr.mxu0 0.0
      %2323 = vmatpush1.msra.mxu0 0.0
      %2324 = vmatprep.subr.mxu0 0.0
      %2325 = vmatpush1.msra.mxu0 0.0
      %2326 = vmatprep.subr.mxu0 0.0
      %2327 = vmatpush1.msra.mxu0 0.0
      %2328 = vmatprep.subr.mxu0 0.0
      %2329 = vmatpush1.msra.mxu0 0.0
      %2330 = vmatprep.mubr.f32.mxu0 %v2193
      %2331 = vmatmul.mubr.f32.gmra.mrb[0].mxu0 %v2130
      %v2332 = vpop.f32.mrb[0].mxu0
      %v2333 = vadd.f32 %v2190, %v2332
      %v2334 = vpop.f32.mrb[0].mxu0
      %2335 = vdwg.mxu0
      %v2336 = vmax.f32 %v2262, 0.0
      %v2337 = vmax.f32 %v2264, 0.0
      %v2338 = vmax.f32 %v2333, 0.0
      %2339 = vst [vmem:[%s394] sm:$0xff] %v2336
      %2340 = vst [vmem:[%s394 + $0x8] sm:$0xff] %v2337
      %2341 = vst [vmem:[%s394 + $0x10] sm:$0xff] %v2338
      %p2342 = scmp.lt.s32.totalorder %s23, 1
      %s2343 = scalar_select %p2342, %s23, 1
      %s2344 = smul.addr %s2343, 3
      %s2345 = smul.addr %s2344, 8
      %s2346 = scalar_lea.vmem %s10, %s2345
      %p2347 = scmp.lt.s32.totalorder %s23, 1
      %s2348 = scalar_select %p2347, %s23, 1
      %s2349 = smul.addr %s2348, 6
      %s2350 = smul.addr %s2349, 8
      %s2351 = scalar_lea.vmem %s11, %s2350
      // Predicated region
      $region61: #{simple_conv_ae_forward.5} parent=59 // pred_check
        %p2352 = pneg %p256
      $region62: #{simple_conv_ae_forward.5} parent=59 // pred_check_branch
        %2354 = sbr.rel (%p2352) target = $region64
      $region63: #{simple_conv_ae_forward.5} parent=59 // pred_region
        _
      $region64: #{simple_conv_ae_forward.5} parent=59 // pred_fallthru
        _
      // Predicated region
      $region65: #{simple_conv_ae_forward.5} parent=59 // pred_check
        %p2355 = pneg %p282
      $region66: #{simple_conv_ae_forward.5} parent=59 // pred_check_branch
        %2357 = sbr.rel (%p2355) target = $region68
      $region67: #{simple_conv_ae_forward.5} parent=59 // pred_region
        _
      $region68: #{simple_conv_ae_forward.5} parent=59 // pred_fallthru
        _
    $region60: #{simple_conv_ae_forward.5} parent=5 // pred_fallthru
      _
    %p2358 = scmp.le.s32.totalorder 2, %s18
    // Predicated region
    $region69: #{simple_conv_ae_forward.5} parent=5 // pred_check
      %p2359 = pneg %p2358
    $region70: #{simple_conv_ae_forward.5} parent=5 // pred_check_branch
      %2361 = sbr.rel (%p2359) target = $region72
    $region71: #{simple_conv_ae_forward.5} parent=5 // pred_region
      %s2362 = ssub.s32 %s18, 2
      // Predicated region
      $region73: #{simple_conv_ae_forward.5} parent=71 // pred_check
        %p2363 = pneg %p262
      $region74: #{simple_conv_ae_forward.5} parent=71 // pred_check_branch
        %2365 = sbr.rel (%p2363) target = $region76
      $region75: #{simple_conv_ae_forward.5} parent=71 // pred_region
        %p2366 = scmp.lt.s32.totalorder %s24, 1
        %s2367 = scalar_select %p2366, %s24, 1
        %s2368 = smul.addr %s2367, 3
        %s2369 = smul.addr %s2368, 8
        %s2370 = scalar_lea.vmem %s10, %s2369
      $region76: #{simple_conv_ae_forward.5} parent=71 // pred_fallthru
        _
      // Predicated region
      $region77: #{simple_conv_ae_forward.5} parent=71 // pred_check
        %p2371 = pneg %p288
      $region78: #{simple_conv_ae_forward.5} parent=71 // pred_check_branch
        %2373 = sbr.rel (%p2371) target = $region80
      $region79: #{simple_conv_ae_forward.5} parent=71 // pred_region
        %p2374 = scmp.lt.s32.totalorder %s24, 1
        %s2375 = scalar_select %p2374, %s24, 1
        %s2376 = smul.addr %s2375, 6
        %s2377 = smul.addr %s2376, 8
        %s2378 = scalar_lea.vmem %s11, %s2377
      $region80: #{simple_conv_ae_forward.5} parent=71 // pred_fallthru
        _
    $region72: #{simple_conv_ae_forward.5} parent=5 // pred_fallthru
      _
  $region6: #{simple_conv_ae_forward.5} parent=0 // loop_footer
    %s22 = sadd.s32 1, %s18
  $region7: #{simple_conv_ae_forward.5} parent=0 // loop_footer_branch
    %17 = sbr.rel target = $region3
  $region8: #{simple_conv_ae_forward.5} parent=0 // loop_exit
    _

</llo_original>
